<compile_context>
chip_gen: v5e
topology: v5e:2x2
jax: 0.10.0
libtpu: 0.0.40
codegen_flags: <defaults>
</compile_context>

<pallas_src>
import jax
import jax.numpy as jnp
from jax import lax
from jax.experimental import pallas as pl
from jax.experimental.pallas import tpu as pltpu


# ----------------------------- Pallas kernel ------------------------------ #
def disc_kernel(emb_ref,                                    # (T*B, E)
                wih0_ref, bi0_ref, whh0_ref, bhn0_ref,      # layer 0
                wih1_ref, bi1_ref, whh1_ref, bhn1_ref,      # layer 1
                wg2h_ref, bg2h_ref,                         # (4H, H), (1, H)
                wh2o_ref, bh2o_ref,                         # (H, 1), (1, 1)
                out_ref,                                    # (B, 1)
                x1_scr):                                    # (T, B, 2H) layer-0 outputs
    T, B, H2 = x1_scr.shape
    H = H2 // 2

    def run_layer(x2d, wih_ref, bi_ref, whh_ref, bhn_ref, seq_out_ref):
        # Hoisted, time-independent input projections: one batched matmul per
        # direction per gate; bih (+ bhh for r,z) already folded into bi.
        # Order along leading axis: [f_r, f_z, f_n, b_r, b_z, b_n].
        gi = [(jnp.dot(x2d, wih_ref[k], preferred_element_type=jnp.float32)
               + bi_ref[k]).reshape(T, B, H) for k in range(6)]

        # Per-step lane-fused [fwd | bwd] gate inputs.  fwd uses time i, bwd
        # uses time T-1-i.  These depend only on gi (loop-invariant wrt the
        # recurrent state), so the scheduler keeps them off the serial path.
        g_r = [jnp.concatenate([gi[0][i], gi[3][T - 1 - i]], axis=-1) for i in range(T)]
        g_z = [jnp.concatenate([gi[1][i], gi[4][T - 1 - i]], axis=-1) for i in range(T)]
        g_n = [jnp.concatenate([gi[2][i], gi[5][T - 1 - i]], axis=-1) for i in range(T)]

        # Block-diagonal hidden weights fuse the two directions into one state:
        # gh[:, :H] = h_f @ W_f, gh[:, H:] = h_b @ W_b, exactly (added zeros).
        w_r, w_z, w_n = whh_ref[0], whh_ref[1], whh_ref[2]   # (2H, 2H) each
        b_n = bhn_ref[...]                                   # (1, 2H) = [bhh_n_f | bhh_n_b]

        h = jnp.zeros((B, 2 * H), jnp.float32)               # [h_fwd | h_bwd], zeros init
        for i in range(T):                                   # static unroll
            j = T - 1 - i
            # Only these 3 matmuls + gate math are on the serial critical path.
            gh_r = jnp.dot(h, w_r, preferred_element_type=jnp.float32)
            gh_z = jnp.dot(h, w_z, preferred_element_type=jnp.float32)
            gh_n = jnp.dot(h, w_n, preferred_element_type=jnp.float32)
            r = jax.nn.sigmoid(g_r[i] + gh_r)
            z = jax.nn.sigmoid(g_z[i] + gh_z)
            n = jnp.tanh(g_n[i] + r * (gh_n + b_n))
            h = (1.0 - z) * n + z * h
            if seq_out_ref is not None:
                seq_out_ref[i, :, 0:H] = h[:, 0:H]           # fwd output at time i
                seq_out_ref[j, :, H:2 * H] = h[:, H:2 * H]   # bwd output at time j
        return h                                             # (B, 2H) final [fwd | bwd]

    # ---- layer 0 (input: embeddings) ----
    h0 = run_layer(emb_ref[...], wih0_ref, bi0_ref, whh0_ref, bhn0_ref, x1_scr)

    # Inter-layer dropout is identity in eval mode.
    # ---- layer 1 (input: lane-stacked layer-0 outputs, no per-step concat) ----
    x1 = x1_scr[...].reshape(T * B, 2 * H)
    h1 = run_layer(x1, wih1_ref, bi1_ref, whh1_ref, bhn1_ref, None)

    # hidden.permute(1,0,2).view(-1, 4H): per-row concat [l0f, l0b, l1f, l1b]
    h_cat = jnp.concatenate([h0, h1], axis=-1)               # (B, 4H), once
    g = jnp.tanh(jnp.dot(h_cat, wg2h_ref[...],
                         preferred_element_type=jnp.float32) + bg2h_ref[...])
    # dropout_linear is identity in eval mode
    out_ref[...] = jax.nn.sigmoid(
        jnp.dot(g, wh2o_ref[...], preferred_element_type=jnp.float32)
        + bh2o_ref[...])


# --------------------------- parameter re-layout --------------------------- #
def _prep_layer(wih, whh, bih, bhh, H):
    """Split stacked GRU weights into per-direction/per-gate slabs (host-side).

    wih: (2, in, 3H), whh: (2, H, 3H), bih/bhh: (2, 3H); gate order (r|z|n).
    Returns:
      wih_s  (6, in, H)   input weights, order [f_r, f_z, f_n, b_r, b_z, b_n]
      bi     (6, 1, H)    bih + bhh folded for r,z; bih only for n
      whh_bd (3, 2H, 2H)  block-diagonal hidden weights per gate (fwd | bwd)
      bhn    (1, 2H)      [bhh_n_fwd | bhh_n_bwd] (stays inside r*(gh_n + bhn))
    """
    in_dim = wih.shape[1]
    wih_s = wih.reshape(2, in_dim, 3, H).transpose(0, 2, 1, 3).reshape(6, in_dim, H)
    bih_s = bih.reshape(2, 3, H)
    bhh_s = bhh.reshape(2, 3, H)
    mask = jnp.array([1.0, 1.0, 0.0], jnp.float32)[None, :, None]   # fold r,z only
    bi = (bih_s + bhh_s * mask).reshape(6, 1, H)

    whh_g = whh.reshape(2, H, 3, H).transpose(2, 0, 1, 3)    # (3 gates, 2 dirs, H, H)
    z = jnp.zeros((3, H, H), jnp.float32)
    top = jnp.concatenate([whh_g[:, 0], z], axis=-1)         # (3, H, 2H)
    bot = jnp.concatenate([z, whh_g[:, 1]], axis=-1)         # (3, H, 2H)
    whh_bd = jnp.concatenate([top, bot], axis=-2)            # (3, 2H, 2H) block-diag

    bhn = jnp.concatenate([bhh_s[0, 2], bhh_s[1, 2]]).reshape(1, 2 * H)
    return wih_s, bi, whh_bd, bhn


# ------------------------------ Python wrapper ----------------------------- #
def discriminator_forward(tokens, params):
    """tokens: (B, T) int32 token ids; returns (B, 1) float32 scores."""
    B, T = tokens.shape
    H = params["whh0"].shape[1]
    E = params["embedding"].shape[1]

    # Embedding gather + permute(1,0,2) stays in plain JAX (glue); flattened to
    # (T*B, E) so the kernel's hoisted input projections are single matmuls.
    emb = jnp.take(params["embedding"], tokens, axis=0)              # (B, T, E)
    emb = jnp.transpose(emb, (1, 0, 2)).reshape(T * B, E).astype(jnp.float32)

    wih0, bi0, whh0, bhn0 = _prep_layer(params["wih0"], params["whh0"],
                                        params["bih0"], params["bhh0"], H)
    wih1, bi1, whh1, bhn1 = _prep_layer(params["wih1"], params["whh1"],
                                        params["bih1"], params["bhh1"], H)

    vmem = pl.BlockSpec(memory_space=pltpu.MemorySpace.VMEM)
    return pl.pallas_call(
        disc_kernel,
        out_shape=jax.ShapeDtypeStruct((B, 1), jnp.float32),
        in_specs=[vmem] * 13,
        out_specs=vmem,
        scratch_shapes=[
            pltpu.VMEM((T, B, 2 * H), jnp.float32),   # layer-0 outputs [fwd|bwd]
        ],
    )(emb,
      wih0, bi0, whh0, bhn0,
      wih1, bi1, whh1, bhn1,
      params["wg2h"], params["bg2h"], params["wh2o"], params["bh2o"])


# --------------------------- pure-JAX reference ---------------------------- #
def _ref_gru_layer(x_seq, h0, wih, whh, bih, bhh):
    H = h0.shape[-1]

    def step(h, x):
        gi = x @ wih + bih
        gh = h @ whh + bhh
        r = jax.nn.sigmoid(gi[:, :H] + gh[:, :H])
        z = jax.nn.sigmoid(gi[:, H:2 * H] + gh[:, H:2 * H])
        n = jnp.tanh(gi[:, 2 * H:] + r * gh[:, 2 * H:])
        h_new = (1.0 - z) * n + z * h
        return h_new, h_new

    h_final, ys = lax.scan(step, h0, x_seq)
    return ys, h_final


def ref_forward(tokens, p):
    B, T = tokens.shape
    H = p["whh0"].shape[1]
    x = jnp.transpose(p["embedding"][tokens], (1, 0, 2))     # (T, B, E)
    h0 = jnp.zeros((B, H), jnp.float32)

    y0f, hf0 = _ref_gru_layer(x, h0, p["wih0"][0], p["whh0"][0], p["bih0"][0], p["bhh0"][0])
    y0b, hb0 = _ref_gru_layer(x[::-1], h0, p["wih0"][1], p["whh0"][1], p["bih0"][1], p["bhh0"][1])
    x1 = jnp.concatenate([y0f, y0b[::-1]], axis=-1)          # (T, B, 2H)
    _, hf1 = _ref_gru_layer(x1, h0, p["wih1"][0], p["whh1"][0], p["bih1"][0], p["bhh1"][0])
    _, hb1 = _ref_gru_layer(x1[::-1], h0, p["wih1"][1], p["whh1"][1], p["bih1"][1], p["bhh1"][1])

    h_cat = jnp.concatenate([hf0, hb0, hf1, hb1], axis=-1)   # (B, 4H)
    g = jnp.tanh(h_cat @ p["wg2h"] + p["bg2h"])
    return jax.nn.sigmoid(g @ p["wh2o"] + p["bh2o"])


# --------------------------------- main ------------------------------------ #
def make_params(key, vocab_size, E, H):
    ks = jax.random.split(key, 16)
    s = 1.0 / jnp.sqrt(jnp.float32(H))
    u = lambda k, shape: jax.random.uniform(k, shape, jnp.float32, -s, s)
    return {
        "embedding": jax.random.normal(ks[0], (vocab_size, E), jnp.float32) * 0.1,
        # layer 0 (input E), fwd/bwd stacked on axis 0; weights stored transposed
        "wih0": u(ks[1], (2, E, 3 * H)),
        "whh0": u(ks[2], (2, H, 3 * H)),
        "bih0": u(ks[3], (2, 3 * H)),
        "bhh0": u(ks[4], (2, 3 * H)),
        # layer 1 (input 2H)
        "wih1": u(ks[5], (2, 2 * H, 3 * H)),
        "whh1": u(ks[6], (2, H, 3 * H)),
        "bih1": u(ks[7], (2, 3 * H)),
        "bhh1": u(ks[8], (2, 3 * H)),
        # gru2hidden: Linear(4H, H); hidden2out: Linear(H, 1)  (transposed)
        "wg2h": u(ks[9], (4 * H, H)),
        "bg2h": u(ks[10], (1, H)),
        "wh2o": u(ks[11], (H, 1)),
        "bh2o": u(ks[12], (1, 1)),
    }


if __name__ == "__main__":
    VOCAB, E, H, T, B = 20, 32, 32, 8, 2
    key = jax.random.PRNGKey(0)
    k_par, k_tok = jax.random.split(key)
    params = make_params(k_par, VOCAB, E, H)
    tokens = jax.random.randint(k_tok, (B, T), 0, VOCAB, dtype=jnp.int32)

    out = jax.block_until_ready(discriminator_forward(tokens, params))
    ref = jax.block_until_ready(ref_forward(tokens, params))

    assert out.shape == (B, 1)
    assert jnp.allclose(out, ref, rtol=1e-5, atol=1e-5), (out, ref)
    print("KERNEL_OK")
</pallas_src>

<mosaic_0001>
module attributes {stable_mosaic.version = 11 : i64} {
  func.func @disc_kernel(%arg0: memref<16x32xf32, #tpu.memory_space<vmem>>, %arg1: memref<6x32x32xf32, #tpu.memory_space<vmem>>, %arg2: memref<6x1x32xf32, #tpu.memory_space<vmem>>, %arg3: memref<3x64x64xf32, #tpu.memory_space<vmem>>, %arg4: memref<1x64xf32, #tpu.memory_space<vmem>>, %arg5: memref<6x64x32xf32, #tpu.memory_space<vmem>>, %arg6: memref<6x1x32xf32, #tpu.memory_space<vmem>>, %arg7: memref<3x64x64xf32, #tpu.memory_space<vmem>>, %arg8: memref<1x64xf32, #tpu.memory_space<vmem>>, %arg9: memref<128x32xf32, #tpu.memory_space<vmem>>, %arg10: memref<1x32xf32, #tpu.memory_space<vmem>>, %arg11: memref<32x1xf32, #tpu.memory_space<vmem>>, %arg12: memref<1x1xf32, #tpu.memory_space<vmem>>, %arg13: memref<2x1xf32, #tpu.memory_space<vmem>>, %arg14: memref<8x2x64xf32, #tpu.memory_space<vmem>>) attributes {dimension_semantics = [], scalar_prefetch = 0 : i64, scratch_operands = 1 : i64, tpu.core_type = #tpu.core_type<tc>} {
    %c0 = arith.constant 0 : index
    %c0_0 = arith.constant 0 : index
    %0 = vector.load %arg0[%c0, %c0_0] : memref<16x32xf32, #tpu.memory_space<vmem>>, vector<16x32xf32>
    %c0_1 = arith.constant 0 : index
    %c0_2 = arith.constant 0 : index
    %c0_3 = arith.constant 0 : index
    %1 = vector.load %arg1[%c0_1, %c0_2, %c0_3] : memref<6x32x32xf32, #tpu.memory_space<vmem>>, vector<1x32x32xf32>
    %2 = vector.shape_cast %1 : vector<1x32x32xf32> to vector<32x32xf32>
    %cst = arith.constant dense<0.000000e+00> : vector<16x32xf32>
    %3 = tpu.matmul %0, %2, %cst {dimension_numbers = #tpu.dot_dimension_numbers<[1], [0], [0], [1], [0, 0, 1, 1], [], []>} : vector<16x32xf32>, vector<32x32xf32>, vector<16x32xf32> -> vector<16x32xf32>
    %c0_4 = arith.constant 0 : index
    %c0_5 = arith.constant 0 : index
    %c0_6 = arith.constant 0 : index
    %4 = vector.load %arg2[%c0_4, %c0_5, %c0_6] : memref<6x1x32xf32, #tpu.memory_space<vmem>>, vector<1x1x32xf32>
    %5 = vector.shape_cast %4 : vector<1x1x32xf32> to vector<1x32xf32>
    %6 = vector.broadcast %5 : vector<1x32xf32> to vector<16x32xf32>
    %7 = arith.addf %3, %6 : vector<16x32xf32>
    %8 = vector.shape_cast %7 : vector<16x32xf32> to vector<8x2x32xf32>
    %c1 = arith.constant 1 : index
    %c0_7 = arith.constant 0 : index
    %c0_8 = arith.constant 0 : index
    %9 = vector.load %arg1[%c1, %c0_7, %c0_8] : memref<6x32x32xf32, #tpu.memory_space<vmem>>, vector<1x32x32xf32>
    %10 = vector.shape_cast %9 : vector<1x32x32xf32> to vector<32x32xf32>
    %cst_9 = arith.constant dense<0.000000e+00> : vector<16x32xf32>
    %11 = tpu.matmul %0, %10, %cst_9 {dimension_numbers = #tpu.dot_dimension_numbers<[1], [0], [0], [1], [0, 0, 1, 1], [], []>} : vector<16x32xf32>, vector<32x32xf32>, vector<16x32xf32> -> vector<16x32xf32>
    %c1_10 = arith.constant 1 : index
    %c0_11 = arith.constant 0 : index
    %c0_12 = arith.constant 0 : index
    %12 = vector.load %arg2[%c1_10, %c0_11, %c0_12] : memref<6x1x32xf32, #tpu.memory_space<vmem>>, vector<1x1x32xf32>
    %13 = vector.shape_cast %12 : vector<1x1x32xf32> to vector<1x32xf32>
    %14 = vector.broadcast %13 : vector<1x32xf32> to vector<16x32xf32>
    %15 = arith.addf %11, %14 : vector<16x32xf32>
    %16 = vector.shape_cast %15 : vector<16x32xf32> to vector<8x2x32xf32>
    %c2 = arith.constant 2 : index
    %c0_13 = arith.constant 0 : index
    %c0_14 = arith.constant 0 : index
    %17 = vector.load %arg1[%c2, %c0_13, %c0_14] : memref<6x32x32xf32, #tpu.memory_space<vmem>>, vector<1x32x32xf32>
    %18 = vector.shape_cast %17 : vector<1x32x32xf32> to vector<32x32xf32>
    %cst_15 = arith.constant dense<0.000000e+00> : vector<16x32xf32>
    %19 = tpu.matmul %0, %18, %cst_15 {dimension_numbers = #tpu.dot_dimension_numbers<[1], [0], [0], [1], [0, 0, 1, 1], [], []>} : vector<16x32xf32>, vector<32x32xf32>, vector<16x32xf32> -> vector<16x32xf32>
    %c2_16 = arith.constant 2 : index
    %c0_17 = arith.constant 0 : index
    %c0_18 = arith.constant 0 : index
    %20 = vector.load %arg2[%c2_16, %c0_17, %c0_18] : memref<6x1x32xf32, #tpu.memory_space<vmem>>, vector<1x1x32xf32>
    %21 = vector.shape_cast %20 : vector<1x1x32xf32> to vector<1x32xf32>
    %22 = vector.broadcast %21 : vector<1x32xf32> to vector<16x32xf32>
    %23 = arith.addf %19, %22 : vector<16x32xf32>
    %24 = vector.shape_cast %23 : vector<16x32xf32> to vector<8x2x32xf32>
    %c3 = arith.constant 3 : index
    %c0_19 = arith.constant 0 : index
    %c0_20 = arith.constant 0 : index
    %25 = vector.load %arg1[%c3, %c0_19, %c0_20] : memref<6x32x32xf32, #tpu.memory_space<vmem>>, vector<1x32x32xf32>
    %26 = vector.shape_cast %25 : vector<1x32x32xf32> to vector<32x32xf32>
    %cst_21 = arith.constant dense<0.000000e+00> : vector<16x32xf32>
    %27 = tpu.matmul %0, %26, %cst_21 {dimension_numbers = #tpu.dot_dimension_numbers<[1], [0], [0], [1], [0, 0, 1, 1], [], []>} : vector<16x32xf32>, vector<32x32xf32>, vector<16x32xf32> -> vector<16x32xf32>
    %c3_22 = arith.constant 3 : index
    %c0_23 = arith.constant 0 : index
    %c0_24 = arith.constant 0 : index
    %28 = vector.load %arg2[%c3_22, %c0_23, %c0_24] : memref<6x1x32xf32, #tpu.memory_space<vmem>>, vector<1x1x32xf32>
    %29 = vector.shape_cast %28 : vector<1x1x32xf32> to vector<1x32xf32>
    %30 = vector.broadcast %29 : vector<1x32xf32> to vector<16x32xf32>
    %31 = arith.addf %27, %30 : vector<16x32xf32>
    %32 = vector.shape_cast %31 : vector<16x32xf32> to vector<8x2x32xf32>
    %c4 = arith.constant 4 : index
    %c0_25 = arith.constant 0 : index
    %c0_26 = arith.constant 0 : index
    %33 = vector.load %arg1[%c4, %c0_25, %c0_26] : memref<6x32x32xf32, #tpu.memory_space<vmem>>, vector<1x32x32xf32>
    %34 = vector.shape_cast %33 : vector<1x32x32xf32> to vector<32x32xf32>
    %cst_27 = arith.constant dense<0.000000e+00> : vector<16x32xf32>
    %35 = tpu.matmul %0, %34, %cst_27 {dimension_numbers = #tpu.dot_dimension_numbers<[1], [0], [0], [1], [0, 0, 1, 1], [], []>} : vector<16x32xf32>, vector<32x32xf32>, vector<16x32xf32> -> vector<16x32xf32>
    %c4_28 = arith.constant 4 : index
    %c0_29 = arith.constant 0 : index
    %c0_30 = arith.constant 0 : index
    %36 = vector.load %arg2[%c4_28, %c0_29, %c0_30] : memref<6x1x32xf32, #tpu.memory_space<vmem>>, vector<1x1x32xf32>
    %37 = vector.shape_cast %36 : vector<1x1x32xf32> to vector<1x32xf32>
    %38 = vector.broadcast %37 : vector<1x32xf32> to vector<16x32xf32>
    %39 = arith.addf %35, %38 : vector<16x32xf32>
    %40 = vector.shape_cast %39 : vector<16x32xf32> to vector<8x2x32xf32>
    %c5 = arith.constant 5 : index
    %c0_31 = arith.constant 0 : index
    %c0_32 = arith.constant 0 : index
    %41 = vector.load %arg1[%c5, %c0_31, %c0_32] : memref<6x32x32xf32, #tpu.memory_space<vmem>>, vector<1x32x32xf32>
    %42 = vector.shape_cast %41 : vector<1x32x32xf32> to vector<32x32xf32>
    %cst_33 = arith.constant dense<0.000000e+00> : vector<16x32xf32>
    %43 = tpu.matmul %0, %42, %cst_33 {dimension_numbers = #tpu.dot_dimension_numbers<[1], [0], [0], [1], [0, 0, 1, 1], [], []>} : vector<16x32xf32>, vector<32x32xf32>, vector<16x32xf32> -> vector<16x32xf32>
    %c5_34 = arith.constant 5 : index
    %c0_35 = arith.constant 0 : index
    %c0_36 = arith.constant 0 : index
    %44 = vector.load %arg2[%c5_34, %c0_35, %c0_36] : memref<6x1x32xf32, #tpu.memory_space<vmem>>, vector<1x1x32xf32>
    %45 = vector.shape_cast %44 : vector<1x1x32xf32> to vector<1x32xf32>
    %46 = vector.broadcast %45 : vector<1x32xf32> to vector<16x32xf32>
    %47 = arith.addf %43, %46 : vector<16x32xf32>
    %48 = vector.shape_cast %47 : vector<16x32xf32> to vector<8x2x32xf32>
    %49 = vector.extract_strided_slice %8 {offsets = [0, 0, 0], sizes = [1, 2, 32], strides = [1, 1, 1]} : vector<8x2x32xf32> to vector<1x2x32xf32>
    %50 = vector.shape_cast %49 : vector<1x2x32xf32> to vector<2x32xf32>
    %51 = vector.extract_strided_slice %32 {offsets = [7, 0, 0], sizes = [1, 2, 32], strides = [1, 1, 1]} : vector<8x2x32xf32> to vector<1x2x32xf32>
    %52 = vector.shape_cast %51 : vector<1x2x32xf32> to vector<2x32xf32>
    %53 = tpu.concatenate %50, %52 in 1 : vector<2x32xf32>, vector<2x32xf32> -> vector<2x64xf32>
    %54 = vector.extract_strided_slice %8 {offsets = [1, 0, 0], sizes = [1, 2, 32], strides = [1, 1, 1]} : vector<8x2x32xf32> to vector<1x2x32xf32>
    %55 = vector.shape_cast %54 : vector<1x2x32xf32> to vector<2x32xf32>
    %56 = vector.extract_strided_slice %32 {offsets = [6, 0, 0], sizes = [1, 2, 32], strides = [1, 1, 1]} : vector<8x2x32xf32> to vector<1x2x32xf32>
    %57 = vector.shape_cast %56 : vector<1x2x32xf32> to vector<2x32xf32>
    %58 = tpu.concatenate %55, %57 in 1 : vector<2x32xf32>, vector<2x32xf32> -> vector<2x64xf32>
    %59 = vector.extract_strided_slice %8 {offsets = [2, 0, 0], sizes = [1, 2, 32], strides = [1, 1, 1]} : vector<8x2x32xf32> to vector<1x2x32xf32>
    %60 = vector.shape_cast %59 : vector<1x2x32xf32> to vector<2x32xf32>
    %61 = vector.extract_strided_slice %32 {offsets = [5, 0, 0], sizes = [1, 2, 32], strides = [1, 1, 1]} : vector<8x2x32xf32> to vector<1x2x32xf32>
    %62 = vector.shape_cast %61 : vector<1x2x32xf32> to vector<2x32xf32>
    %63 = tpu.concatenate %60, %62 in 1 : vector<2x32xf32>, vector<2x32xf32> -> vector<2x64xf32>
    %64 = vector.extract_strided_slice %8 {offsets = [3, 0, 0], sizes = [1, 2, 32], strides = [1, 1, 1]} : vector<8x2x32xf32> to vector<1x2x32xf32>
    %65 = vector.shape_cast %64 : vector<1x2x32xf32> to vector<2x32xf32>
    %66 = vector.extract_strided_slice %32 {offsets = [4, 0, 0], sizes = [1, 2, 32], strides = [1, 1, 1]} : vector<8x2x32xf32> to vector<1x2x32xf32>
    %67 = vector.shape_cast %66 : vector<1x2x32xf32> to vector<2x32xf32>
    %68 = tpu.concatenate %65, %67 in 1 : vector<2x32xf32>, vector<2x32xf32> -> vector<2x64xf32>
    %69 = vector.extract_strided_slice %8 {offsets = [4, 0, 0], sizes = [1, 2, 32], strides = [1, 1, 1]} : vector<8x2x32xf32> to vector<1x2x32xf32>
    %70 = vector.shape_cast %69 : vector<1x2x32xf32> to vector<2x32xf32>
    %71 = vector.extract_strided_slice %32 {offsets = [3, 0, 0], sizes = [1, 2, 32], strides = [1, 1, 1]} : vector<8x2x32xf32> to vector<1x2x32xf32>
    %72 = vector.shape_cast %71 : vector<1x2x32xf32> to vector<2x32xf32>
    %73 = tpu.concatenate %70, %72 in 1 : vector<2x32xf32>, vector<2x32xf32> -> vector<2x64xf32>
    %74 = vector.extract_strided_slice %8 {offsets = [5, 0, 0], sizes = [1, 2, 32], strides = [1, 1, 1]} : vector<8x2x32xf32> to vector<1x2x32xf32>
    %75 = vector.shape_cast %74 : vector<1x2x32xf32> to vector<2x32xf32>
    %76 = vector.extract_strided_slice %32 {offsets = [2, 0, 0], sizes = [1, 2, 32], strides = [1, 1, 1]} : vector<8x2x32xf32> to vector<1x2x32xf32>
    %77 = vector.shape_cast %76 : vector<1x2x32xf32> to vector<2x32xf32>
    %78 = tpu.concatenate %75, %77 in 1 : vector<2x32xf32>, vector<2x32xf32> -> vector<2x64xf32>
    %79 = vector.extract_strided_slice %8 {offsets = [6, 0, 0], sizes = [1, 2, 32], strides = [1, 1, 1]} : vector<8x2x32xf32> to vector<1x2x32xf32>
    %80 = vector.shape_cast %79 : vector<1x2x32xf32> to vector<2x32xf32>
    %81 = vector.extract_strided_slice %32 {offsets = [1, 0, 0], sizes = [1, 2, 32], strides = [1, 1, 1]} : vector<8x2x32xf32> to vector<1x2x32xf32>
    %82 = vector.shape_cast %81 : vector<1x2x32xf32> to vector<2x32xf32>
    %83 = tpu.concatenate %80, %82 in 1 : vector<2x32xf32>, vector<2x32xf32> -> vector<2x64xf32>
    %84 = vector.extract_strided_slice %8 {offsets = [7, 0, 0], sizes = [1, 2, 32], strides = [1, 1, 1]} : vector<8x2x32xf32> to vector<1x2x32xf32>
    %85 = vector.shape_cast %84 : vector<1x2x32xf32> to vector<2x32xf32>
    %86 = vector.extract_strided_slice %32 {offsets = [0, 0, 0], sizes = [1, 2, 32], strides = [1, 1, 1]} : vector<8x2x32xf32> to vector<1x2x32xf32>
    %87 = vector.shape_cast %86 : vector<1x2x32xf32> to vector<2x32xf32>
    %88 = tpu.concatenate %85, %87 in 1 : vector<2x32xf32>, vector<2x32xf32> -> vector<2x64xf32>
    %89 = vector.extract_strided_slice %16 {offsets = [0, 0, 0], sizes = [1, 2, 32], strides = [1, 1, 1]} : vector<8x2x32xf32> to vector<1x2x32xf32>
    %90 = vector.shape_cast %89 : vector<1x2x32xf32> to vector<2x32xf32>
    %91 = vector.extract_strided_slice %40 {offsets = [7, 0, 0], sizes = [1, 2, 32], strides = [1, 1, 1]} : vector<8x2x32xf32> to vector<1x2x32xf32>
    %92 = vector.shape_cast %91 : vector<1x2x32xf32> to vector<2x32xf32>
    %93 = tpu.concatenate %90, %92 in 1 : vector<2x32xf32>, vector<2x32xf32> -> vector<2x64xf32>
    %94 = vector.extract_strided_slice %16 {offsets = [1, 0, 0], sizes = [1, 2, 32], strides = [1, 1, 1]} : vector<8x2x32xf32> to vector<1x2x32xf32>
    %95 = vector.shape_cast %94 : vector<1x2x32xf32> to vector<2x32xf32>
    %96 = vector.extract_strided_slice %40 {offsets = [6, 0, 0], sizes = [1, 2, 32], strides = [1, 1, 1]} : vector<8x2x32xf32> to vector<1x2x32xf32>
    %97 = vector.shape_cast %96 : vector<1x2x32xf32> to vector<2x32xf32>
    %98 = tpu.concatenate %95, %97 in 1 : vector<2x32xf32>, vector<2x32xf32> -> vector<2x64xf32>
    %99 = vector.extract_strided_slice %16 {offsets = [2, 0, 0], sizes = [1, 2, 32], strides = [1, 1, 1]} : vector<8x2x32xf32> to vector<1x2x32xf32>
    %100 = vector.shape_cast %99 : vector<1x2x32xf32> to vector<2x32xf32>
    %101 = vector.extract_strided_slice %40 {offsets = [5, 0, 0], sizes = [1, 2, 32], strides = [1, 1, 1]} : vector<8x2x32xf32> to vector<1x2x32xf32>
    %102 = vector.shape_cast %101 : vector<1x2x32xf32> to vector<2x32xf32>
    %103 = tpu.concatenate %100, %102 in 1 : vector<2x32xf32>, vector<2x32xf32> -> vector<2x64xf32>
    %104 = vector.extract_strided_slice %16 {offsets = [3, 0, 0], sizes = [1, 2, 32], strides = [1, 1, 1]} : vector<8x2x32xf32> to vector<1x2x32xf32>
    %105 = vector.shape_cast %104 : vector<1x2x32xf32> to vector<2x32xf32>
    %106 = vector.extract_strided_slice %40 {offsets = [4, 0, 0], sizes = [1, 2, 32], strides = [1, 1, 1]} : vector<8x2x32xf32> to vector<1x2x32xf32>
    %107 = vector.shape_cast %106 : vector<1x2x32xf32> to vector<2x32xf32>
    %108 = tpu.concatenate %105, %107 in 1 : vector<2x32xf32>, vector<2x32xf32> -> vector<2x64xf32>
    %109 = vector.extract_strided_slice %16 {offsets = [4, 0, 0], sizes = [1, 2, 32], strides = [1, 1, 1]} : vector<8x2x32xf32> to vector<1x2x32xf32>
    %110 = vector.shape_cast %109 : vector<1x2x32xf32> to vector<2x32xf32>
    %111 = vector.extract_strided_slice %40 {offsets = [3, 0, 0], sizes = [1, 2, 32], strides = [1, 1, 1]} : vector<8x2x32xf32> to vector<1x2x32xf32>
    %112 = vector.shape_cast %111 : vector<1x2x32xf32> to vector<2x32xf32>
    %113 = tpu.concatenate %110, %112 in 1 : vector<2x32xf32>, vector<2x32xf32> -> vector<2x64xf32>
    %114 = vector.extract_strided_slice %16 {offsets = [5, 0, 0], sizes = [1, 2, 32], strides = [1, 1, 1]} : vector<8x2x32xf32> to vector<1x2x32xf32>
    %115 = vector.shape_cast %114 : vector<1x2x32xf32> to vector<2x32xf32>
    %116 = vector.extract_strided_slice %40 {offsets = [2, 0, 0], sizes = [1, 2, 32], strides = [1, 1, 1]} : vector<8x2x32xf32> to vector<1x2x32xf32>
    %117 = vector.shape_cast %116 : vector<1x2x32xf32> to vector<2x32xf32>
    %118 = tpu.concatenate %115, %117 in 1 : vector<2x32xf32>, vector<2x32xf32> -> vector<2x64xf32>
    %119 = vector.extract_strided_slice %16 {offsets = [6, 0, 0], sizes = [1, 2, 32], strides = [1, 1, 1]} : vector<8x2x32xf32> to vector<1x2x32xf32>
    %120 = vector.shape_cast %119 : vector<1x2x32xf32> to vector<2x32xf32>
    %121 = vector.extract_strided_slice %40 {offsets = [1, 0, 0], sizes = [1, 2, 32], strides = [1, 1, 1]} : vector<8x2x32xf32> to vector<1x2x32xf32>
    %122 = vector.shape_cast %121 : vector<1x2x32xf32> to vector<2x32xf32>
    %123 = tpu.concatenate %120, %122 in 1 : vector<2x32xf32>, vector<2x32xf32> -> vector<2x64xf32>
    %124 = vector.extract_strided_slice %16 {offsets = [7, 0, 0], sizes = [1, 2, 32], strides = [1, 1, 1]} : vector<8x2x32xf32> to vector<1x2x32xf32>
    %125 = vector.shape_cast %124 : vector<1x2x32xf32> to vector<2x32xf32>
    %126 = vector.extract_strided_slice %40 {offsets = [0, 0, 0], sizes = [1, 2, 32], strides = [1, 1, 1]} : vector<8x2x32xf32> to vector<1x2x32xf32>
    %127 = vector.shape_cast %126 : vector<1x2x32xf32> to vector<2x32xf32>
    %128 = tpu.concatenate %125, %127 in 1 : vector<2x32xf32>, vector<2x32xf32> -> vector<2x64xf32>
    %129 = vector.extract_strided_slice %24 {offsets = [0, 0, 0], sizes = [1, 2, 32], strides = [1, 1, 1]} : vector<8x2x32xf32> to vector<1x2x32xf32>
    %130 = vector.shape_cast %129 : vector<1x2x32xf32> to vector<2x32xf32>
    %131 = vector.extract_strided_slice %48 {offsets = [7, 0, 0], sizes = [1, 2, 32], strides = [1, 1, 1]} : vector<8x2x32xf32> to vector<1x2x32xf32>
    %132 = vector.shape_cast %131 : vector<1x2x32xf32> to vector<2x32xf32>
    %133 = tpu.concatenate %130, %132 in 1 : vector<2x32xf32>, vector<2x32xf32> -> vector<2x64xf32>
    %134 = vector.extract_strided_slice %24 {offsets = [1, 0, 0], sizes = [1, 2, 32], strides = [1, 1, 1]} : vector<8x2x32xf32> to vector<1x2x32xf32>
    %135 = vector.shape_cast %134 : vector<1x2x32xf32> to vector<2x32xf32>
    %136 = vector.extract_strided_slice %48 {offsets = [6, 0, 0], sizes = [1, 2, 32], strides = [1, 1, 1]} : vector<8x2x32xf32> to vector<1x2x32xf32>
    %137 = vector.shape_cast %136 : vector<1x2x32xf32> to vector<2x32xf32>
    %138 = tpu.concatenate %135, %137 in 1 : vector<2x32xf32>, vector<2x32xf32> -> vector<2x64xf32>
    %139 = vector.extract_strided_slice %24 {offsets = [2, 0, 0], sizes = [1, 2, 32], strides = [1, 1, 1]} : vector<8x2x32xf32> to vector<1x2x32xf32>
    %140 = vector.shape_cast %139 : vector<1x2x32xf32> to vector<2x32xf32>
    %141 = vector.extract_strided_slice %48 {offsets = [5, 0, 0], sizes = [1, 2, 32], strides = [1, 1, 1]} : vector<8x2x32xf32> to vector<1x2x32xf32>
    %142 = vector.shape_cast %141 : vector<1x2x32xf32> to vector<2x32xf32>
    %143 = tpu.concatenate %140, %142 in 1 : vector<2x32xf32>, vector<2x32xf32> -> vector<2x64xf32>
    %144 = vector.extract_strided_slice %24 {offsets = [3, 0, 0], sizes = [1, 2, 32], strides = [1, 1, 1]} : vector<8x2x32xf32> to vector<1x2x32xf32>
    %145 = vector.shape_cast %144 : vector<1x2x32xf32> to vector<2x32xf32>
    %146 = vector.extract_strided_slice %48 {offsets = [4, 0, 0], sizes = [1, 2, 32], strides = [1, 1, 1]} : vector<8x2x32xf32> to vector<1x2x32xf32>
    %147 = vector.shape_cast %146 : vector<1x2x32xf32> to vector<2x32xf32>
    %148 = tpu.concatenate %145, %147 in 1 : vector<2x32xf32>, vector<2x32xf32> -> vector<2x64xf32>
    %149 = vector.extract_strided_slice %24 {offsets = [4, 0, 0], sizes = [1, 2, 32], strides = [1, 1, 1]} : vector<8x2x32xf32> to vector<1x2x32xf32>
    %150 = vector.shape_cast %149 : vector<1x2x32xf32> to vector<2x32xf32>
    %151 = vector.extract_strided_slice %48 {offsets = [3, 0, 0], sizes = [1, 2, 32], strides = [1, 1, 1]} : vector<8x2x32xf32> to vector<1x2x32xf32>
    %152 = vector.shape_cast %151 : vector<1x2x32xf32> to vector<2x32xf32>
    %153 = tpu.concatenate %150, %152 in 1 : vector<2x32xf32>, vector<2x32xf32> -> vector<2x64xf32>
    %154 = vector.extract_strided_slice %24 {offsets = [5, 0, 0], sizes = [1, 2, 32], strides = [1, 1, 1]} : vector<8x2x32xf32> to vector<1x2x32xf32>
    %155 = vector.shape_cast %154 : vector<1x2x32xf32> to vector<2x32xf32>
    %156 = vector.extract_strided_slice %48 {offsets = [2, 0, 0], sizes = [1, 2, 32], strides = [1, 1, 1]} : vector<8x2x32xf32> to vector<1x2x32xf32>
    %157 = vector.shape_cast %156 : vector<1x2x32xf32> to vector<2x32xf32>
    %158 = tpu.concatenate %155, %157 in 1 : vector<2x32xf32>, vector<2x32xf32> -> vector<2x64xf32>
    %159 = vector.extract_strided_slice %24 {offsets = [6, 0, 0], sizes = [1, 2, 32], strides = [1, 1, 1]} : vector<8x2x32xf32> to vector<1x2x32xf32>
    %160 = vector.shape_cast %159 : vector<1x2x32xf32> to vector<2x32xf32>
    %161 = vector.extract_strided_slice %48 {offsets = [1, 0, 0], sizes = [1, 2, 32], strides = [1, 1, 1]} : vector<8x2x32xf32> to vector<1x2x32xf32>
    %162 = vector.shape_cast %161 : vector<1x2x32xf32> to vector<2x32xf32>
    %163 = tpu.concatenate %160, %162 in 1 : vector<2x32xf32>, vector<2x32xf32> -> vector<2x64xf32>
    %164 = vector.extract_strided_slice %24 {offsets = [7, 0, 0], sizes = [1, 2, 32], strides = [1, 1, 1]} : vector<8x2x32xf32> to vector<1x2x32xf32>
    %165 = vector.shape_cast %164 : vector<1x2x32xf32> to vector<2x32xf32>
    %166 = vector.extract_strided_slice %48 {offsets = [0, 0, 0], sizes = [1, 2, 32], strides = [1, 1, 1]} : vector<8x2x32xf32> to vector<1x2x32xf32>
    %167 = vector.shape_cast %166 : vector<1x2x32xf32> to vector<2x32xf32>
    %168 = tpu.concatenate %165, %167 in 1 : vector<2x32xf32>, vector<2x32xf32> -> vector<2x64xf32>
    %c0_37 = arith.constant 0 : index
    %c0_38 = arith.constant 0 : index
    %c0_39 = arith.constant 0 : index
    %169 = vector.load %arg3[%c0_37, %c0_38, %c0_39] : memref<3x64x64xf32, #tpu.memory_space<vmem>>, vector<1x64x64xf32>
    %170 = vector.shape_cast %169 : vector<1x64x64xf32> to vector<64x64xf32>
    %c1_40 = arith.constant 1 : index
    %c0_41 = arith.constant 0 : index
    %c0_42 = arith.constant 0 : index
    %171 = vector.load %arg3[%c1_40, %c0_41, %c0_42] : memref<3x64x64xf32, #tpu.memory_space<vmem>>, vector<1x64x64xf32>
    %172 = vector.shape_cast %171 : vector<1x64x64xf32> to vector<64x64xf32>
    %c2_43 = arith.constant 2 : index
    %c0_44 = arith.constant 0 : index
    %c0_45 = arith.constant 0 : index
    %173 = vector.load %arg3[%c2_43, %c0_44, %c0_45] : memref<3x64x64xf32, #tpu.memory_space<vmem>>, vector<1x64x64xf32>
    %174 = vector.shape_cast %173 : vector<1x64x64xf32> to vector<64x64xf32>
    %c0_46 = arith.constant 0 : index
    %c0_47 = arith.constant 0 : index
    %175 = vector.load %arg4[%c0_46, %c0_47] : memref<1x64xf32, #tpu.memory_space<vmem>>, vector<1x64xf32>
    %cst_48 = arith.constant 0.000000e+00 : f32
    %176 = vector.broadcast %cst_48 : f32 to vector<2x64xf32>
    %cst_49 = arith.constant dense<0.000000e+00> : vector<2x64xf32>
    %177 = tpu.matmul %176, %170, %cst_49 {dimension_numbers = #tpu.dot_dimension_numbers<[1], [0], [0], [1], [0, 0, 1, 1], [], []>} : vector<2x64xf32>, vector<64x64xf32>, vector<2x64xf32> -> vector<2x64xf32>
    %cst_50 = arith.constant dense<0.000000e+00> : vector<2x64xf32>
    %178 = tpu.matmul %176, %172, %cst_50 {dimension_numbers = #tpu.dot_dimension_numbers<[1], [0], [0], [1], [0, 0, 1, 1], [], []>} : vector<2x64xf32>, vector<64x64xf32>, vector<2x64xf32> -> vector<2x64xf32>
    %cst_51 = arith.constant dense<0.000000e+00> : vector<2x64xf32>
    %179 = tpu.matmul %176, %174, %cst_51 {dimension_numbers = #tpu.dot_dimension_numbers<[1], [0], [0], [1], [0, 0, 1, 1], [], []>} : vector<2x64xf32>, vector<64x64xf32>, vector<2x64xf32> -> vector<2x64xf32>
    %180 = arith.addf %53, %177 : vector<2x64xf32>
    %181 = arith.negf %180 : vector<2x64xf32>
    %182 = math.exp %181 : vector<2x64xf32>
    %cst_52 = arith.constant 1.000000e+00 : f32
    %183 = vector.broadcast %cst_52 : f32 to vector<2x64xf32>
    %184 = arith.addf %183, %182 : vector<2x64xf32>
    %185 = arith.divf %183, %184 : vector<2x64xf32>
    %186 = arith.addf %93, %178 : vector<2x64xf32>
    %187 = arith.negf %186 : vector<2x64xf32>
    %188 = math.exp %187 : vector<2x64xf32>
    %cst_53 = arith.constant 1.000000e+00 : f32
    %189 = vector.broadcast %cst_53 : f32 to vector<2x64xf32>
    %190 = arith.addf %189, %188 : vector<2x64xf32>
    %191 = arith.divf %189, %190 : vector<2x64xf32>
    %192 = vector.broadcast %175 : vector<1x64xf32> to vector<2x64xf32>
    %193 = arith.addf %179, %192 : vector<2x64xf32>
    %194 = arith.mulf %185, %193 : vector<2x64xf32>
    %195 = arith.addf %133, %194 : vector<2x64xf32>
    %196 = math.tanh %195 : vector<2x64xf32>
    %cst_54 = arith.constant 1.000000e+00 : f32
    %197 = vector.broadcast %cst_54 : f32 to vector<2x64xf32>
    %198 = arith.subf %197, %191 : vector<2x64xf32>
    %199 = arith.mulf %198, %196 : vector<2x64xf32>
    %200 = arith.mulf %191, %176 : vector<2x64xf32>
    %201 = arith.addf %199, %200 : vector<2x64xf32>
    %202 = vector.extract_strided_slice %201 {offsets = [0, 0], sizes = [2, 32], strides = [1, 1]} : vector<2x64xf32> to vector<2x32xf32>
    %c0_55 = arith.constant 0 : index
    %c0_56 = arith.constant 0 : index
    %c0_57 = arith.constant 0 : index
    %203 = vector.load %arg14[%c0_55, %c0_56, %c0_57] : memref<8x2x64xf32, #tpu.memory_space<vmem>>, vector<1x2x32xf32>
    %204 = vector.shape_cast %203 : vector<1x2x32xf32> to vector<2x32xf32>
    %205 = vector.shape_cast %202 : vector<2x32xf32> to vector<1x2x32xf32>
    tpu.vector_store %arg14[%c0_55, %c0_56, %c0_57], %205 {strides = array<i32>} : memref<8x2x64xf32, #tpu.memory_space<vmem>>, vector<1x2x32xf32>,
    %206 = vector.extract_strided_slice %201 {offsets = [0, 32], sizes = [2, 32], strides = [1, 1]} : vector<2x64xf32> to vector<2x32xf32>
    %c7 = arith.constant 7 : index
    %c0_58 = arith.constant 0 : index
    %c32 = arith.constant 32 : index
    %207 = vector.load %arg14[%c7, %c0_58, %c32] : memref<8x2x64xf32, #tpu.memory_space<vmem>>, vector<1x2x32xf32>
    %208 = vector.shape_cast %207 : vector<1x2x32xf32> to vector<2x32xf32>
    %209 = vector.shape_cast %206 : vector<2x32xf32> to vector<1x2x32xf32>
    tpu.vector_store %arg14[%c7, %c0_58, %c32], %209 {strides = array<i32>} : memref<8x2x64xf32, #tpu.memory_space<vmem>>, vector<1x2x32xf32>,
    %cst_59 = arith.constant dense<0.000000e+00> : vector<2x64xf32>
    %210 = tpu.matmul %201, %170, %cst_59 {dimension_numbers = #tpu.dot_dimension_numbers<[1], [0], [0], [1], [0, 0, 1, 1], [], []>} : vector<2x64xf32>, vector<64x64xf32>, vector<2x64xf32> -> vector<2x64xf32>
    %cst_60 = arith.constant dense<0.000000e+00> : vector<2x64xf32>
    %211 = tpu.matmul %201, %172, %cst_60 {dimension_numbers = #tpu.dot_dimension_numbers<[1], [0], [0], [1], [0, 0, 1, 1], [], []>} : vector<2x64xf32>, vector<64x64xf32>, vector<2x64xf32> -> vector<2x64xf32>
    %cst_61 = arith.constant dense<0.000000e+00> : vector<2x64xf32>
    %212 = tpu.matmul %201, %174, %cst_61 {dimension_numbers = #tpu.dot_dimension_numbers<[1], [0], [0], [1], [0, 0, 1, 1], [], []>} : vector<2x64xf32>, vector<64x64xf32>, vector<2x64xf32> -> vector<2x64xf32>
    %213 = arith.addf %58, %210 : vector<2x64xf32>
    %214 = arith.negf %213 : vector<2x64xf32>
    %215 = math.exp %214 : vector<2x64xf32>
    %cst_62 = arith.constant 1.000000e+00 : f32
    %216 = vector.broadcast %cst_62 : f32 to vector<2x64xf32>
    %217 = arith.addf %216, %215 : vector<2x64xf32>
    %218 = arith.divf %216, %217 : vector<2x64xf32>
    %219 = arith.addf %98, %211 : vector<2x64xf32>
    %220 = arith.negf %219 : vector<2x64xf32>
    %221 = math.exp %220 : vector<2x64xf32>
    %cst_63 = arith.constant 1.000000e+00 : f32
    %222 = vector.broadcast %cst_63 : f32 to vector<2x64xf32>
    %223 = arith.addf %222, %221 : vector<2x64xf32>
    %224 = arith.divf %222, %223 : vector<2x64xf32>
    %225 = vector.broadcast %175 : vector<1x64xf32> to vector<2x64xf32>
    %226 = arith.addf %212, %225 : vector<2x64xf32>
    %227 = arith.mulf %218, %226 : vector<2x64xf32>
    %228 = arith.addf %138, %227 : vector<2x64xf32>
    %229 = math.tanh %228 : vector<2x64xf32>
    %cst_64 = arith.constant 1.000000e+00 : f32
    %230 = vector.broadcast %cst_64 : f32 to vector<2x64xf32>
    %231 = arith.subf %230, %224 : vector<2x64xf32>
    %232 = arith.mulf %231, %229 : vector<2x64xf32>
    %233 = arith.mulf %224, %201 : vector<2x64xf32>
    %234 = arith.addf %232, %233 : vector<2x64xf32>
    %235 = vector.extract_strided_slice %234 {offsets = [0, 0], sizes = [2, 32], strides = [1, 1]} : vector<2x64xf32> to vector<2x32xf32>
    %c1_65 = arith.constant 1 : index
    %c0_66 = arith.constant 0 : index
    %c0_67 = arith.constant 0 : index
    %236 = vector.load %arg14[%c1_65, %c0_66, %c0_67] : memref<8x2x64xf32, #tpu.memory_space<vmem>>, vector<1x2x32xf32>
    %237 = vector.shape_cast %236 : vector<1x2x32xf32> to vector<2x32xf32>
    %238 = vector.shape_cast %235 : vector<2x32xf32> to vector<1x2x32xf32>
    tpu.vector_store %arg14[%c1_65, %c0_66, %c0_67], %238 {strides = array<i32>} : memref<8x2x64xf32, #tpu.memory_space<vmem>>, vector<1x2x32xf32>,
    %239 = vector.extract_strided_slice %234 {offsets = [0, 32], sizes = [2, 32], strides = [1, 1]} : vector<2x64xf32> to vector<2x32xf32>
    %c6 = arith.constant 6 : index
    %c0_68 = arith.constant 0 : index
    %c32_69 = arith.constant 32 : index
    %240 = vector.load %arg14[%c6, %c0_68, %c32_69] : memref<8x2x64xf32, #tpu.memory_space<vmem>>, vector<1x2x32xf32>
    %241 = vector.shape_cast %240 : vector<1x2x32xf32> to vector<2x32xf32>
    %242 = vector.shape_cast %239 : vector<2x32xf32> to vector<1x2x32xf32>
    tpu.vector_store %arg14[%c6, %c0_68, %c32_69], %242 {strides = array<i32>} : memref<8x2x64xf32, #tpu.memory_space<vmem>>, vector<1x2x32xf32>,
    %cst_70 = arith.constant dense<0.000000e+00> : vector<2x64xf32>
    %243 = tpu.matmul %234, %170, %cst_70 {dimension_numbers = #tpu.dot_dimension_numbers<[1], [0], [0], [1], [0, 0, 1, 1], [], []>} : vector<2x64xf32>, vector<64x64xf32>, vector<2x64xf32> -> vector<2x64xf32>
    %cst_71 = arith.constant dense<0.000000e+00> : vector<2x64xf32>
    %244 = tpu.matmul %234, %172, %cst_71 {dimension_numbers = #tpu.dot_dimension_numbers<[1], [0], [0], [1], [0, 0, 1, 1], [], []>} : vector<2x64xf32>, vector<64x64xf32>, vector<2x64xf32> -> vector<2x64xf32>
    %cst_72 = arith.constant dense<0.000000e+00> : vector<2x64xf32>
    %245 = tpu.matmul %234, %174, %cst_72 {dimension_numbers = #tpu.dot_dimension_numbers<[1], [0], [0], [1], [0, 0, 1, 1], [], []>} : vector<2x64xf32>, vector<64x64xf32>, vector<2x64xf32> -> vector<2x64xf32>
    %246 = arith.addf %63, %243 : vector<2x64xf32>
    %247 = arith.negf %246 : vector<2x64xf32>
    %248 = math.exp %247 : vector<2x64xf32>
    %cst_73 = arith.constant 1.000000e+00 : f32
    %249 = vector.broadcast %cst_73 : f32 to vector<2x64xf32>
    %250 = arith.addf %249, %248 : vector<2x64xf32>
    %251 = arith.divf %249, %250 : vector<2x64xf32>
    %252 = arith.addf %103, %244 : vector<2x64xf32>
    %253 = arith.negf %252 : vector<2x64xf32>
    %254 = math.exp %253 : vector<2x64xf32>
    %cst_74 = arith.constant 1.000000e+00 : f32
    %255 = vector.broadcast %cst_74 : f32 to vector<2x64xf32>
    %256 = arith.addf %255, %254 : vector<2x64xf32>
    %257 = arith.divf %255, %256 : vector<2x64xf32>
    %258 = vector.broadcast %175 : vector<1x64xf32> to vector<2x64xf32>
    %259 = arith.addf %245, %258 : vector<2x64xf32>
    %260 = arith.mulf %251, %259 : vector<2x64xf32>
    %261 = arith.addf %143, %260 : vector<2x64xf32>
    %262 = math.tanh %261 : vector<2x64xf32>
    %cst_75 = arith.constant 1.000000e+00 : f32
    %263 = vector.broadcast %cst_75 : f32 to vector<2x64xf32>
    %264 = arith.subf %263, %257 : vector<2x64xf32>
    %265 = arith.mulf %264, %262 : vector<2x64xf32>
    %266 = arith.mulf %257, %234 : vector<2x64xf32>
    %267 = arith.addf %265, %266 : vector<2x64xf32>
    %268 = vector.extract_strided_slice %267 {offsets = [0, 0], sizes = [2, 32], strides = [1, 1]} : vector<2x64xf32> to vector<2x32xf32>
    %c2_76 = arith.constant 2 : index
    %c0_77 = arith.constant 0 : index
    %c0_78 = arith.constant 0 : index
    %269 = vector.load %arg14[%c2_76, %c0_77, %c0_78] : memref<8x2x64xf32, #tpu.memory_space<vmem>>, vector<1x2x32xf32>
    %270 = vector.shape_cast %269 : vector<1x2x32xf32> to vector<2x32xf32>
    %271 = vector.shape_cast %268 : vector<2x32xf32> to vector<1x2x32xf32>
    tpu.vector_store %arg14[%c2_76, %c0_77, %c0_78], %271 {strides = array<i32>} : memref<8x2x64xf32, #tpu.memory_space<vmem>>, vector<1x2x32xf32>,
    %272 = vector.extract_strided_slice %267 {offsets = [0, 32], sizes = [2, 32], strides = [1, 1]} : vector<2x64xf32> to vector<2x32xf32>
    %c5_79 = arith.constant 5 : index
    %c0_80 = arith.constant 0 : index
    %c32_81 = arith.constant 32 : index
    %273 = vector.load %arg14[%c5_79, %c0_80, %c32_81] : memref<8x2x64xf32, #tpu.memory_space<vmem>>, vector<1x2x32xf32>
    %274 = vector.shape_cast %273 : vector<1x2x32xf32> to vector<2x32xf32>
    %275 = vector.shape_cast %272 : vector<2x32xf32> to vector<1x2x32xf32>
    tpu.vector_store %arg14[%c5_79, %c0_80, %c32_81], %275 {strides = array<i32>} : memref<8x2x64xf32, #tpu.memory_space<vmem>>, vector<1x2x32xf32>,
    %cst_82 = arith.constant dense<0.000000e+00> : vector<2x64xf32>
    %276 = tpu.matmul %267, %170, %cst_82 {dimension_numbers = #tpu.dot_dimension_numbers<[1], [0], [0], [1], [0, 0, 1, 1], [], []>} : vector<2x64xf32>, vector<64x64xf32>, vector<2x64xf32> -> vector<2x64xf32>
    %cst_83 = arith.constant dense<0.000000e+00> : vector<2x64xf32>
    %277 = tpu.matmul %267, %172, %cst_83 {dimension_numbers = #tpu.dot_dimension_numbers<[1], [0], [0], [1], [0, 0, 1, 1], [], []>} : vector<2x64xf32>, vector<64x64xf32>, vector<2x64xf32> -> vector<2x64xf32>
    %cst_84 = arith.constant dense<0.000000e+00> : vector<2x64xf32>
    %278 = tpu.matmul %267, %174, %cst_84 {dimension_numbers = #tpu.dot_dimension_numbers<[1], [0], [0], [1], [0, 0, 1, 1], [], []>} : vector<2x64xf32>, vector<64x64xf32>, vector<2x64xf32> -> vector<2x64xf32>
    %279 = arith.addf %68, %276 : vector<2x64xf32>
    %280 = arith.negf %279 : vector<2x64xf32>
    %281 = math.exp %280 : vector<2x64xf32>
    %cst_85 = arith.constant 1.000000e+00 : f32
    %282 = vector.broadcast %cst_85 : f32 to vector<2x64xf32>
    %283 = arith.addf %282, %281 : vector<2x64xf32>
    %284 = arith.divf %282, %283 : vector<2x64xf32>
    %285 = arith.addf %108, %277 : vector<2x64xf32>
    %286 = arith.negf %285 : vector<2x64xf32>
    %287 = math.exp %286 : vector<2x64xf32>
    %cst_86 = arith.constant 1.000000e+00 : f32
    %288 = vector.broadcast %cst_86 : f32 to vector<2x64xf32>
    %289 = arith.addf %288, %287 : vector<2x64xf32>
    %290 = arith.divf %288, %289 : vector<2x64xf32>
    %291 = vector.broadcast %175 : vector<1x64xf32> to vector<2x64xf32>
    %292 = arith.addf %278, %291 : vector<2x64xf32>
    %293 = arith.mulf %284, %292 : vector<2x64xf32>
    %294 = arith.addf %148, %293 : vector<2x64xf32>
    %295 = math.tanh %294 : vector<2x64xf32>
    %cst_87 = arith.constant 1.000000e+00 : f32
    %296 = vector.broadcast %cst_87 : f32 to vector<2x64xf32>
    %297 = arith.subf %296, %290 : vector<2x64xf32>
    %298 = arith.mulf %297, %295 : vector<2x64xf32>
    %299 = arith.mulf %290, %267 : vector<2x64xf32>
    %300 = arith.addf %298, %299 : vector<2x64xf32>
    %301 = vector.extract_strided_slice %300 {offsets = [0, 0], sizes = [2, 32], strides = [1, 1]} : vector<2x64xf32> to vector<2x32xf32>
    %c3_88 = arith.constant 3 : index
    %c0_89 = arith.constant 0 : index
    %c0_90 = arith.constant 0 : index
    %302 = vector.load %arg14[%c3_88, %c0_89, %c0_90] : memref<8x2x64xf32, #tpu.memory_space<vmem>>, vector<1x2x32xf32>
    %303 = vector.shape_cast %302 : vector<1x2x32xf32> to vector<2x32xf32>
    %304 = vector.shape_cast %301 : vector<2x32xf32> to vector<1x2x32xf32>
    tpu.vector_store %arg14[%c3_88, %c0_89, %c0_90], %304 {strides = array<i32>} : memref<8x2x64xf32, #tpu.memory_space<vmem>>, vector<1x2x32xf32>,
    %305 = vector.extract_strided_slice %300 {offsets = [0, 32], sizes = [2, 32], strides = [1, 1]} : vector<2x64xf32> to vector<2x32xf32>
    %c4_91 = arith.constant 4 : index
    %c0_92 = arith.constant 0 : index
    %c32_93 = arith.constant 32 : index
    %306 = vector.load %arg14[%c4_91, %c0_92, %c32_93] : memref<8x2x64xf32, #tpu.memory_space<vmem>>, vector<1x2x32xf32>
    %307 = vector.shape_cast %306 : vector<1x2x32xf32> to vector<2x32xf32>
    %308 = vector.shape_cast %305 : vector<2x32xf32> to vector<1x2x32xf32>
    tpu.vector_store %arg14[%c4_91, %c0_92, %c32_93], %308 {strides = array<i32>} : memref<8x2x64xf32, #tpu.memory_space<vmem>>, vector<1x2x32xf32>,
    %cst_94 = arith.constant dense<0.000000e+00> : vector<2x64xf32>
    %309 = tpu.matmul %300, %170, %cst_94 {dimension_numbers = #tpu.dot_dimension_numbers<[1], [0], [0], [1], [0, 0, 1, 1], [], []>} : vector<2x64xf32>, vector<64x64xf32>, vector<2x64xf32> -> vector<2x64xf32>
    %cst_95 = arith.constant dense<0.000000e+00> : vector<2x64xf32>
    %310 = tpu.matmul %300, %172, %cst_95 {dimension_numbers = #tpu.dot_dimension_numbers<[1], [0], [0], [1], [0, 0, 1, 1], [], []>} : vector<2x64xf32>, vector<64x64xf32>, vector<2x64xf32> -> vector<2x64xf32>
    %cst_96 = arith.constant dense<0.000000e+00> : vector<2x64xf32>
    %311 = tpu.matmul %300, %174, %cst_96 {dimension_numbers = #tpu.dot_dimension_numbers<[1], [0], [0], [1], [0, 0, 1, 1], [], []>} : vector<2x64xf32>, vector<64x64xf32>, vector<2x64xf32> -> vector<2x64xf32>
    %312 = arith.addf %73, %309 : vector<2x64xf32>
    %313 = arith.negf %312 : vector<2x64xf32>
    %314 = math.exp %313 : vector<2x64xf32>
    %cst_97 = arith.constant 1.000000e+00 : f32
    %315 = vector.broadcast %cst_97 : f32 to vector<2x64xf32>
    %316 = arith.addf %315, %314 : vector<2x64xf32>
    %317 = arith.divf %315, %316 : vector<2x64xf32>
    %318 = arith.addf %113, %310 : vector<2x64xf32>
    %319 = arith.negf %318 : vector<2x64xf32>
    %320 = math.exp %319 : vector<2x64xf32>
    %cst_98 = arith.constant 1.000000e+00 : f32
    %321 = vector.broadcast %cst_98 : f32 to vector<2x64xf32>
    %322 = arith.addf %321, %320 : vector<2x64xf32>
    %323 = arith.divf %321, %322 : vector<2x64xf32>
    %324 = vector.broadcast %175 : vector<1x64xf32> to vector<2x64xf32>
    %325 = arith.addf %311, %324 : vector<2x64xf32>
    %326 = arith.mulf %317, %325 : vector<2x64xf32>
    %327 = arith.addf %153, %326 : vector<2x64xf32>
    %328 = math.tanh %327 : vector<2x64xf32>
    %cst_99 = arith.constant 1.000000e+00 : f32
    %329 = vector.broadcast %cst_99 : f32 to vector<2x64xf32>
    %330 = arith.subf %329, %323 : vector<2x64xf32>
    %331 = arith.mulf %330, %328 : vector<2x64xf32>
    %332 = arith.mulf %323, %300 : vector<2x64xf32>
    %333 = arith.addf %331, %332 : vector<2x64xf32>
    %334 = vector.extract_strided_slice %333 {offsets = [0, 0], sizes = [2, 32], strides = [1, 1]} : vector<2x64xf32> to vector<2x32xf32>
    %c4_100 = arith.constant 4 : index
    %c0_101 = arith.constant 0 : index
    %c0_102 = arith.constant 0 : index
    %335 = vector.load %arg14[%c4_100, %c0_101, %c0_102] : memref<8x2x64xf32, #tpu.memory_space<vmem>>, vector<1x2x32xf32>
    %336 = vector.shape_cast %335 : vector<1x2x32xf32> to vector<2x32xf32>
    %337 = vector.shape_cast %334 : vector<2x32xf32> to vector<1x2x32xf32>
    tpu.vector_store %arg14[%c4_100, %c0_101, %c0_102], %337 {strides = array<i32>} : memref<8x2x64xf32, #tpu.memory_space<vmem>>, vector<1x2x32xf32>,
    %338 = vector.extract_strided_slice %333 {offsets = [0, 32], sizes = [2, 32], strides = [1, 1]} : vector<2x64xf32> to vector<2x32xf32>
    %c3_103 = arith.constant 3 : index
    %c0_104 = arith.constant 0 : index
    %c32_105 = arith.constant 32 : index
    %339 = vector.load %arg14[%c3_103, %c0_104, %c32_105] : memref<8x2x64xf32, #tpu.memory_space<vmem>>, vector<1x2x32xf32>
    %340 = vector.shape_cast %339 : vector<1x2x32xf32> to vector<2x32xf32>
    %341 = vector.shape_cast %338 : vector<2x32xf32> to vector<1x2x32xf32>
    tpu.vector_store %arg14[%c3_103, %c0_104, %c32_105], %341 {strides = array<i32>} : memref<8x2x64xf32, #tpu.memory_space<vmem>>, vector<1x2x32xf32>,
    %cst_106 = arith.constant dense<0.000000e+00> : vector<2x64xf32>
    %342 = tpu.matmul %333, %170, %cst_106 {dimension_numbers = #tpu.dot_dimension_numbers<[1], [0], [0], [1], [0, 0, 1, 1], [], []>} : vector<2x64xf32>, vector<64x64xf32>, vector<2x64xf32> -> vector<2x64xf32>
    %cst_107 = arith.constant dense<0.000000e+00> : vector<2x64xf32>
    %343 = tpu.matmul %333, %172, %cst_107 {dimension_numbers = #tpu.dot_dimension_numbers<[1], [0], [0], [1], [0, 0, 1, 1], [], []>} : vector<2x64xf32>, vector<64x64xf32>, vector<2x64xf32> -> vector<2x64xf32>
    %cst_108 = arith.constant dense<0.000000e+00> : vector<2x64xf32>
    %344 = tpu.matmul %333, %174, %cst_108 {dimension_numbers = #tpu.dot_dimension_numbers<[1], [0], [0], [1], [0, 0, 1, 1], [], []>} : vector<2x64xf32>, vector<64x64xf32>, vector<2x64xf32> -> vector<2x64xf32>
    %345 = arith.addf %78, %342 : vector<2x64xf32>
    %346 = arith.negf %345 : vector<2x64xf32>
    %347 = math.exp %346 : vector<2x64xf32>
    %cst_109 = arith.constant 1.000000e+00 : f32
    %348 = vector.broadcast %cst_109 : f32 to vector<2x64xf32>
    %349 = arith.addf %348, %347 : vector<2x64xf32>
    %350 = arith.divf %348, %349 : vector<2x64xf32>
    %351 = arith.addf %118, %343 : vector<2x64xf32>
    %352 = arith.negf %351 : vector<2x64xf32>
    %353 = math.exp %352 : vector<2x64xf32>
    %cst_110 = arith.constant 1.000000e+00 : f32
    %354 = vector.broadcast %cst_110 : f32 to vector<2x64xf32>
    %355 = arith.addf %354, %353 : vector<2x64xf32>
    %356 = arith.divf %354, %355 : vector<2x64xf32>
    %357 = vector.broadcast %175 : vector<1x64xf32> to vector<2x64xf32>
    %358 = arith.addf %344, %357 : vector<2x64xf32>
    %359 = arith.mulf %350, %358 : vector<2x64xf32>
    %360 = arith.addf %158, %359 : vector<2x64xf32>
    %361 = math.tanh %360 : vector<2x64xf32>
    %cst_111 = arith.constant 1.000000e+00 : f32
    %362 = vector.broadcast %cst_111 : f32 to vector<2x64xf32>
    %363 = arith.subf %362, %356 : vector<2x64xf32>
    %364 = arith.mulf %363, %361 : vector<2x64xf32>
    %365 = arith.mulf %356, %333 : vector<2x64xf32>
    %366 = arith.addf %364, %365 : vector<2x64xf32>
    %367 = vector.extract_strided_slice %366 {offsets = [0, 0], sizes = [2, 32], strides = [1, 1]} : vector<2x64xf32> to vector<2x32xf32>
    %c5_112 = arith.constant 5 : index
    %c0_113 = arith.constant 0 : index
    %c0_114 = arith.constant 0 : index
    %368 = vector.load %arg14[%c5_112, %c0_113, %c0_114] : memref<8x2x64xf32, #tpu.memory_space<vmem>>, vector<1x2x32xf32>
    %369 = vector.shape_cast %368 : vector<1x2x32xf32> to vector<2x32xf32>
    %370 = vector.shape_cast %367 : vector<2x32xf32> to vector<1x2x32xf32>
    tpu.vector_store %arg14[%c5_112, %c0_113, %c0_114], %370 {strides = array<i32>} : memref<8x2x64xf32, #tpu.memory_space<vmem>>, vector<1x2x32xf32>,
    %371 = vector.extract_strided_slice %366 {offsets = [0, 32], sizes = [2, 32], strides = [1, 1]} : vector<2x64xf32> to vector<2x32xf32>
    %c2_115 = arith.constant 2 : index
    %c0_116 = arith.constant 0 : index
    %c32_117 = arith.constant 32 : index
    %372 = vector.load %arg14[%c2_115, %c0_116, %c32_117] : memref<8x2x64xf32, #tpu.memory_space<vmem>>, vector<1x2x32xf32>
    %373 = vector.shape_cast %372 : vector<1x2x32xf32> to vector<2x32xf32>
    %374 = vector.shape_cast %371 : vector<2x32xf32> to vector<1x2x32xf32>
    tpu.vector_store %arg14[%c2_115, %c0_116, %c32_117], %374 {strides = array<i32>} : memref<8x2x64xf32, #tpu.memory_space<vmem>>, vector<1x2x32xf32>,
    %cst_118 = arith.constant dense<0.000000e+00> : vector<2x64xf32>
    %375 = tpu.matmul %366, %170, %cst_118 {dimension_numbers = #tpu.dot_dimension_numbers<[1], [0], [0], [1], [0, 0, 1, 1], [], []>} : vector<2x64xf32>, vector<64x64xf32>, vector<2x64xf32> -> vector<2x64xf32>
    %cst_119 = arith.constant dense<0.000000e+00> : vector<2x64xf32>
    %376 = tpu.matmul %366, %172, %cst_119 {dimension_numbers = #tpu.dot_dimension_numbers<[1], [0], [0], [1], [0, 0, 1, 1], [], []>} : vector<2x64xf32>, vector<64x64xf32>, vector<2x64xf32> -> vector<2x64xf32>
    %cst_120 = arith.constant dense<0.000000e+00> : vector<2x64xf32>
    %377 = tpu.matmul %366, %174, %cst_120 {dimension_numbers = #tpu.dot_dimension_numbers<[1], [0], [0], [1], [0, 0, 1, 1], [], []>} : vector<2x64xf32>, vector<64x64xf32>, vector<2x64xf32> -> vector<2x64xf32>
    %378 = arith.addf %83, %375 : vector<2x64xf32>
    %379 = arith.negf %378 : vector<2x64xf32>
    %380 = math.exp %379 : vector<2x64xf32>
    %cst_121 = arith.constant 1.000000e+00 : f32
    %381 = vector.broadcast %cst_121 : f32 to vector<2x64xf32>
    %382 = arith.addf %381, %380 : vector<2x64xf32>
    %383 = arith.divf %381, %382 : vector<2x64xf32>
    %384 = arith.addf %123, %376 : vector<2x64xf32>
    %385 = arith.negf %384 : vector<2x64xf32>
    %386 = math.exp %385 : vector<2x64xf32>
    %cst_122 = arith.constant 1.000000e+00 : f32
    %387 = vector.broadcast %cst_122 : f32 to vector<2x64xf32>
    %388 = arith.addf %387, %386 : vector<2x64xf32>
    %389 = arith.divf %387, %388 : vector<2x64xf32>
    %390 = vector.broadcast %175 : vector<1x64xf32> to vector<2x64xf32>
    %391 = arith.addf %377, %390 : vector<2x64xf32>
    %392 = arith.mulf %383, %391 : vector<2x64xf32>
    %393 = arith.addf %163, %392 : vector<2x64xf32>
    %394 = math.tanh %393 : vector<2x64xf32>
    %cst_123 = arith.constant 1.000000e+00 : f32
    %395 = vector.broadcast %cst_123 : f32 to vector<2x64xf32>
    %396 = arith.subf %395, %389 : vector<2x64xf32>
    %397 = arith.mulf %396, %394 : vector<2x64xf32>
    %398 = arith.mulf %389, %366 : vector<2x64xf32>
    %399 = arith.addf %397, %398 : vector<2x64xf32>
    %400 = vector.extract_strided_slice %399 {offsets = [0, 0], sizes = [2, 32], strides = [1, 1]} : vector<2x64xf32> to vector<2x32xf32>
    %c6_124 = arith.constant 6 : index
    %c0_125 = arith.constant 0 : index
    %c0_126 = arith.constant 0 : index
    %401 = vector.load %arg14[%c6_124, %c0_125, %c0_126] : memref<8x2x64xf32, #tpu.memory_space<vmem>>, vector<1x2x32xf32>
    %402 = vector.shape_cast %401 : vector<1x2x32xf32> to vector<2x32xf32>
    %403 = vector.shape_cast %400 : vector<2x32xf32> to vector<1x2x32xf32>
    tpu.vector_store %arg14[%c6_124, %c0_125, %c0_126], %403 {strides = array<i32>} : memref<8x2x64xf32, #tpu.memory_space<vmem>>, vector<1x2x32xf32>,
    %404 = vector.extract_strided_slice %399 {offsets = [0, 32], sizes = [2, 32], strides = [1, 1]} : vector<2x64xf32> to vector<2x32xf32>
    %c1_127 = arith.constant 1 : index
    %c0_128 = arith.constant 0 : index
    %c32_129 = arith.constant 32 : index
    %405 = vector.load %arg14[%c1_127, %c0_128, %c32_129] : memref<8x2x64xf32, #tpu.memory_space<vmem>>, vector<1x2x32xf32>
    %406 = vector.shape_cast %405 : vector<1x2x32xf32> to vector<2x32xf32>
    %407 = vector.shape_cast %404 : vector<2x32xf32> to vector<1x2x32xf32>
    tpu.vector_store %arg14[%c1_127, %c0_128, %c32_129], %407 {strides = array<i32>} : memref<8x2x64xf32, #tpu.memory_space<vmem>>, vector<1x2x32xf32>,
    %cst_130 = arith.constant dense<0.000000e+00> : vector<2x64xf32>
    %408 = tpu.matmul %399, %170, %cst_130 {dimension_numbers = #tpu.dot_dimension_numbers<[1], [0], [0], [1], [0, 0, 1, 1], [], []>} : vector<2x64xf32>, vector<64x64xf32>, vector<2x64xf32> -> vector<2x64xf32>
    %cst_131 = arith.constant dense<0.000000e+00> : vector<2x64xf32>
    %409 = tpu.matmul %399, %172, %cst_131 {dimension_numbers = #tpu.dot_dimension_numbers<[1], [0], [0], [1], [0, 0, 1, 1], [], []>} : vector<2x64xf32>, vector<64x64xf32>, vector<2x64xf32> -> vector<2x64xf32>
    %cst_132 = arith.constant dense<0.000000e+00> : vector<2x64xf32>
    %410 = tpu.matmul %399, %174, %cst_132 {dimension_numbers = #tpu.dot_dimension_numbers<[1], [0], [0], [1], [0, 0, 1, 1], [], []>} : vector<2x64xf32>, vector<64x64xf32>, vector<2x64xf32> -> vector<2x64xf32>
    %411 = arith.addf %88, %408 : vector<2x64xf32>
    %412 = arith.negf %411 : vector<2x64xf32>
    %413 = math.exp %412 : vector<2x64xf32>
    %cst_133 = arith.constant 1.000000e+00 : f32
    %414 = vector.broadcast %cst_133 : f32 to vector<2x64xf32>
    %415 = arith.addf %414, %413 : vector<2x64xf32>
    %416 = arith.divf %414, %415 : vector<2x64xf32>
    %417 = arith.addf %128, %409 : vector<2x64xf32>
    %418 = arith.negf %417 : vector<2x64xf32>
    %419 = math.exp %418 : vector<2x64xf32>
    %cst_134 = arith.constant 1.000000e+00 : f32
    %420 = vector.broadcast %cst_134 : f32 to vector<2x64xf32>
    %421 = arith.addf %420, %419 : vector<2x64xf32>
    %422 = arith.divf %420, %421 : vector<2x64xf32>
    %423 = vector.broadcast %175 : vector<1x64xf32> to vector<2x64xf32>
    %424 = arith.addf %410, %423 : vector<2x64xf32>
    %425 = arith.mulf %416, %424 : vector<2x64xf32>
    %426 = arith.addf %168, %425 : vector<2x64xf32>
    %427 = math.tanh %426 : vector<2x64xf32>
    %cst_135 = arith.constant 1.000000e+00 : f32
    %428 = vector.broadcast %cst_135 : f32 to vector<2x64xf32>
    %429 = arith.subf %428, %422 : vector<2x64xf32>
    %430 = arith.mulf %429, %427 : vector<2x64xf32>
    %431 = arith.mulf %422, %399 : vector<2x64xf32>
    %432 = arith.addf %430, %431 : vector<2x64xf32>
    %433 = vector.extract_strided_slice %432 {offsets = [0, 0], sizes = [2, 32], strides = [1, 1]} : vector<2x64xf32> to vector<2x32xf32>
    %c7_136 = arith.constant 7 : index
    %c0_137 = arith.constant 0 : index
    %c0_138 = arith.constant 0 : index
    %434 = vector.load %arg14[%c7_136, %c0_137, %c0_138] : memref<8x2x64xf32, #tpu.memory_space<vmem>>, vector<1x2x32xf32>
    %435 = vector.shape_cast %434 : vector<1x2x32xf32> to vector<2x32xf32>
    %436 = vector.shape_cast %433 : vector<2x32xf32> to vector<1x2x32xf32>
    tpu.vector_store %arg14[%c7_136, %c0_137, %c0_138], %436 {strides = array<i32>} : memref<8x2x64xf32, #tpu.memory_space<vmem>>, vector<1x2x32xf32>,
    %437 = vector.extract_strided_slice %432 {offsets = [0, 32], sizes = [2, 32], strides = [1, 1]} : vector<2x64xf32> to vector<2x32xf32>
    %c0_139 = arith.constant 0 : index
    %c0_140 = arith.constant 0 : index
    %c32_141 = arith.constant 32 : index
    %438 = vector.load %arg14[%c0_139, %c0_140, %c32_141] : memref<8x2x64xf32, #tpu.memory_space<vmem>>, vector<1x2x32xf32>
    %439 = vector.shape_cast %438 : vector<1x2x32xf32> to vector<2x32xf32>
    %440 = vector.shape_cast %437 : vector<2x32xf32> to vector<1x2x32xf32>
    tpu.vector_store %arg14[%c0_139, %c0_140, %c32_141], %440 {strides = array<i32>} : memref<8x2x64xf32, #tpu.memory_space<vmem>>, vector<1x2x32xf32>,
    %c0_142 = arith.constant 0 : index
    %c0_143 = arith.constant 0 : index
    %c0_144 = arith.constant 0 : index
    %441 = vector.load %arg14[%c0_142, %c0_143, %c0_144] : memref<8x2x64xf32, #tpu.memory_space<vmem>>, vector<8x2x64xf32>
    %442 = vector.shape_cast %441 : vector<8x2x64xf32> to vector<16x64xf32>
    %c0_145 = arith.constant 0 : index
    %c0_146 = arith.constant 0 : index
    %c0_147 = arith.constant 0 : index
    %443 = vector.load %arg5[%c0_145, %c0_146, %c0_147] : memref<6x64x32xf32, #tpu.memory_space<vmem>>, vector<1x64x32xf32>
    %444 = vector.shape_cast %443 : vector<1x64x32xf32> to vector<64x32xf32>
    %cst_148 = arith.constant dense<0.000000e+00> : vector<16x32xf32>
    %445 = tpu.matmul %442, %444, %cst_148 {dimension_numbers = #tpu.dot_dimension_numbers<[1], [0], [0], [1], [0, 0, 1, 1], [], []>} : vector<16x64xf32>, vector<64x32xf32>, vector<16x32xf32> -> vector<16x32xf32>
    %c0_149 = arith.constant 0 : index
    %c0_150 = arith.constant 0 : index
    %c0_151 = arith.constant 0 : index
    %446 = vector.load %arg6[%c0_149, %c0_150, %c0_151] : memref<6x1x32xf32, #tpu.memory_space<vmem>>, vector<1x1x32xf32>
    %447 = vector.shape_cast %446 : vector<1x1x32xf32> to vector<1x32xf32>
    %448 = vector.broadcast %447 : vector<1x32xf32> to vector<16x32xf32>
    %449 = arith.addf %445, %448 : vector<16x32xf32>
    %450 = vector.shape_cast %449 : vector<16x32xf32> to vector<8x2x32xf32>
    %c1_152 = arith.constant 1 : index
    %c0_153 = arith.constant 0 : index
    %c0_154 = arith.constant 0 : index
    %451 = vector.load %arg5[%c1_152, %c0_153, %c0_154] : memref<6x64x32xf32, #tpu.memory_space<vmem>>, vector<1x64x32xf32>
    %452 = vector.shape_cast %451 : vector<1x64x32xf32> to vector<64x32xf32>
    %cst_155 = arith.constant dense<0.000000e+00> : vector<16x32xf32>
    %453 = tpu.matmul %442, %452, %cst_155 {dimension_numbers = #tpu.dot_dimension_numbers<[1], [0], [0], [1], [0, 0, 1, 1], [], []>} : vector<16x64xf32>, vector<64x32xf32>, vector<16x32xf32> -> vector<16x32xf32>
    %c1_156 = arith.constant 1 : index
    %c0_157 = arith.constant 0 : index
    %c0_158 = arith.constant 0 : index
    %454 = vector.load %arg6[%c1_156, %c0_157, %c0_158] : memref<6x1x32xf32, #tpu.memory_space<vmem>>, vector<1x1x32xf32>
    %455 = vector.shape_cast %454 : vector<1x1x32xf32> to vector<1x32xf32>
    %456 = vector.broadcast %455 : vector<1x32xf32> to vector<16x32xf32>
    %457 = arith.addf %453, %456 : vector<16x32xf32>
    %458 = vector.shape_cast %457 : vector<16x32xf32> to vector<8x2x32xf32>
    %c2_159 = arith.constant 2 : index
    %c0_160 = arith.constant 0 : index
    %c0_161 = arith.constant 0 : index
    %459 = vector.load %arg5[%c2_159, %c0_160, %c0_161] : memref<6x64x32xf32, #tpu.memory_space<vmem>>, vector<1x64x32xf32>
    %460 = vector.shape_cast %459 : vector<1x64x32xf32> to vector<64x32xf32>
    %cst_162 = arith.constant dense<0.000000e+00> : vector<16x32xf32>
    %461 = tpu.matmul %442, %460, %cst_162 {dimension_numbers = #tpu.dot_dimension_numbers<[1], [0], [0], [1], [0, 0, 1, 1], [], []>} : vector<16x64xf32>, vector<64x32xf32>, vector<16x32xf32> -> vector<16x32xf32>
    %c2_163 = arith.constant 2 : index
    %c0_164 = arith.constant 0 : index
    %c0_165 = arith.constant 0 : index
    %462 = vector.load %arg6[%c2_163, %c0_164, %c0_165] : memref<6x1x32xf32, #tpu.memory_space<vmem>>, vector<1x1x32xf32>
    %463 = vector.shape_cast %462 : vector<1x1x32xf32> to vector<1x32xf32>
    %464 = vector.broadcast %463 : vector<1x32xf32> to vector<16x32xf32>
    %465 = arith.addf %461, %464 : vector<16x32xf32>
    %466 = vector.shape_cast %465 : vector<16x32xf32> to vector<8x2x32xf32>
    %c3_166 = arith.constant 3 : index
    %c0_167 = arith.constant 0 : index
    %c0_168 = arith.constant 0 : index
    %467 = vector.load %arg5[%c3_166, %c0_167, %c0_168] : memref<6x64x32xf32, #tpu.memory_space<vmem>>, vector<1x64x32xf32>
    %468 = vector.shape_cast %467 : vector<1x64x32xf32> to vector<64x32xf32>
    %cst_169 = arith.constant dense<0.000000e+00> : vector<16x32xf32>
    %469 = tpu.matmul %442, %468, %cst_169 {dimension_numbers = #tpu.dot_dimension_numbers<[1], [0], [0], [1], [0, 0, 1, 1], [], []>} : vector<16x64xf32>, vector<64x32xf32>, vector<16x32xf32> -> vector<16x32xf32>
    %c3_170 = arith.constant 3 : index
    %c0_171 = arith.constant 0 : index
    %c0_172 = arith.constant 0 : index
    %470 = vector.load %arg6[%c3_170, %c0_171, %c0_172] : memref<6x1x32xf32, #tpu.memory_space<vmem>>, vector<1x1x32xf32>
    %471 = vector.shape_cast %470 : vector<1x1x32xf32> to vector<1x32xf32>
    %472 = vector.broadcast %471 : vector<1x32xf32> to vector<16x32xf32>
    %473 = arith.addf %469, %472 : vector<16x32xf32>
    %474 = vector.shape_cast %473 : vector<16x32xf32> to vector<8x2x32xf32>
    %c4_173 = arith.constant 4 : index
    %c0_174 = arith.constant 0 : index
    %c0_175 = arith.constant 0 : index
    %475 = vector.load %arg5[%c4_173, %c0_174, %c0_175] : memref<6x64x32xf32, #tpu.memory_space<vmem>>, vector<1x64x32xf32>
    %476 = vector.shape_cast %475 : vector<1x64x32xf32> to vector<64x32xf32>
    %cst_176 = arith.constant dense<0.000000e+00> : vector<16x32xf32>
    %477 = tpu.matmul %442, %476, %cst_176 {dimension_numbers = #tpu.dot_dimension_numbers<[1], [0], [0], [1], [0, 0, 1, 1], [], []>} : vector<16x64xf32>, vector<64x32xf32>, vector<16x32xf32> -> vector<16x32xf32>
    %c4_177 = arith.constant 4 : index
    %c0_178 = arith.constant 0 : index
    %c0_179 = arith.constant 0 : index
    %478 = vector.load %arg6[%c4_177, %c0_178, %c0_179] : memref<6x1x32xf32, #tpu.memory_space<vmem>>, vector<1x1x32xf32>
    %479 = vector.shape_cast %478 : vector<1x1x32xf32> to vector<1x32xf32>
    %480 = vector.broadcast %479 : vector<1x32xf32> to vector<16x32xf32>
    %481 = arith.addf %477, %480 : vector<16x32xf32>
    %482 = vector.shape_cast %481 : vector<16x32xf32> to vector<8x2x32xf32>
    %c5_180 = arith.constant 5 : index
    %c0_181 = arith.constant 0 : index
    %c0_182 = arith.constant 0 : index
    %483 = vector.load %arg5[%c5_180, %c0_181, %c0_182] : memref<6x64x32xf32, #tpu.memory_space<vmem>>, vector<1x64x32xf32>
    %484 = vector.shape_cast %483 : vector<1x64x32xf32> to vector<64x32xf32>
    %cst_183 = arith.constant dense<0.000000e+00> : vector<16x32xf32>
    %485 = tpu.matmul %442, %484, %cst_183 {dimension_numbers = #tpu.dot_dimension_numbers<[1], [0], [0], [1], [0, 0, 1, 1], [], []>} : vector<16x64xf32>, vector<64x32xf32>, vector<16x32xf32> -> vector<16x32xf32>
    %c5_184 = arith.constant 5 : index
    %c0_185 = arith.constant 0 : index
    %c0_186 = arith.constant 0 : index
    %486 = vector.load %arg6[%c5_184, %c0_185, %c0_186] : memref<6x1x32xf32, #tpu.memory_space<vmem>>, vector<1x1x32xf32>
    %487 = vector.shape_cast %486 : vector<1x1x32xf32> to vector<1x32xf32>
    %488 = vector.broadcast %487 : vector<1x32xf32> to vector<16x32xf32>
    %489 = arith.addf %485, %488 : vector<16x32xf32>
    %490 = vector.shape_cast %489 : vector<16x32xf32> to vector<8x2x32xf32>
    %491 = vector.extract_strided_slice %450 {offsets = [0, 0, 0], sizes = [1, 2, 32], strides = [1, 1, 1]} : vector<8x2x32xf32> to vector<1x2x32xf32>
    %492 = vector.shape_cast %491 : vector<1x2x32xf32> to vector<2x32xf32>
    %493 = vector.extract_strided_slice %474 {offsets = [7, 0, 0], sizes = [1, 2, 32], strides = [1, 1, 1]} : vector<8x2x32xf32> to vector<1x2x32xf32>
    %494 = vector.shape_cast %493 : vector<1x2x32xf32> to vector<2x32xf32>
    %495 = tpu.concatenate %492, %494 in 1 : vector<2x32xf32>, vector<2x32xf32> -> vector<2x64xf32>
    %496 = vector.extract_strided_slice %450 {offsets = [1, 0, 0], sizes = [1, 2, 32], strides = [1, 1, 1]} : vector<8x2x32xf32> to vector<1x2x32xf32>
    %497 = vector.shape_cast %496 : vector<1x2x32xf32> to vector<2x32xf32>
    %498 = vector.extract_strided_slice %474 {offsets = [6, 0, 0], sizes = [1, 2, 32], strides = [1, 1, 1]} : vector<8x2x32xf32> to vector<1x2x32xf32>
    %499 = vector.shape_cast %498 : vector<1x2x32xf32> to vector<2x32xf32>
    %500 = tpu.concatenate %497, %499 in 1 : vector<2x32xf32>, vector<2x32xf32> -> vector<2x64xf32>
    %501 = vector.extract_strided_slice %450 {offsets = [2, 0, 0], sizes = [1, 2, 32], strides = [1, 1, 1]} : vector<8x2x32xf32> to vector<1x2x32xf32>
    %502 = vector.shape_cast %501 : vector<1x2x32xf32> to vector<2x32xf32>
    %503 = vector.extract_strided_slice %474 {offsets = [5, 0, 0], sizes = [1, 2, 32], strides = [1, 1, 1]} : vector<8x2x32xf32> to vector<1x2x32xf32>
    %504 = vector.shape_cast %503 : vector<1x2x32xf32> to vector<2x32xf32>
    %505 = tpu.concatenate %502, %504 in 1 : vector<2x32xf32>, vector<2x32xf32> -> vector<2x64xf32>
    %506 = vector.extract_strided_slice %450 {offsets = [3, 0, 0], sizes = [1, 2, 32], strides = [1, 1, 1]} : vector<8x2x32xf32> to vector<1x2x32xf32>
    %507 = vector.shape_cast %506 : vector<1x2x32xf32> to vector<2x32xf32>
    %508 = vector.extract_strided_slice %474 {offsets = [4, 0, 0], sizes = [1, 2, 32], strides = [1, 1, 1]} : vector<8x2x32xf32> to vector<1x2x32xf32>
    %509 = vector.shape_cast %508 : vector<1x2x32xf32> to vector<2x32xf32>
    %510 = tpu.concatenate %507, %509 in 1 : vector<2x32xf32>, vector<2x32xf32> -> vector<2x64xf32>
    %511 = vector.extract_strided_slice %450 {offsets = [4, 0, 0], sizes = [1, 2, 32], strides = [1, 1, 1]} : vector<8x2x32xf32> to vector<1x2x32xf32>
    %512 = vector.shape_cast %511 : vector<1x2x32xf32> to vector<2x32xf32>
    %513 = vector.extract_strided_slice %474 {offsets = [3, 0, 0], sizes = [1, 2, 32], strides = [1, 1, 1]} : vector<8x2x32xf32> to vector<1x2x32xf32>
    %514 = vector.shape_cast %513 : vector<1x2x32xf32> to vector<2x32xf32>
    %515 = tpu.concatenate %512, %514 in 1 : vector<2x32xf32>, vector<2x32xf32> -> vector<2x64xf32>
    %516 = vector.extract_strided_slice %450 {offsets = [5, 0, 0], sizes = [1, 2, 32], strides = [1, 1, 1]} : vector<8x2x32xf32> to vector<1x2x32xf32>
    %517 = vector.shape_cast %516 : vector<1x2x32xf32> to vector<2x32xf32>
    %518 = vector.extract_strided_slice %474 {offsets = [2, 0, 0], sizes = [1, 2, 32], strides = [1, 1, 1]} : vector<8x2x32xf32> to vector<1x2x32xf32>
    %519 = vector.shape_cast %518 : vector<1x2x32xf32> to vector<2x32xf32>
    %520 = tpu.concatenate %517, %519 in 1 : vector<2x32xf32>, vector<2x32xf32> -> vector<2x64xf32>
    %521 = vector.extract_strided_slice %450 {offsets = [6, 0, 0], sizes = [1, 2, 32], strides = [1, 1, 1]} : vector<8x2x32xf32> to vector<1x2x32xf32>
    %522 = vector.shape_cast %521 : vector<1x2x32xf32> to vector<2x32xf32>
    %523 = vector.extract_strided_slice %474 {offsets = [1, 0, 0], sizes = [1, 2, 32], strides = [1, 1, 1]} : vector<8x2x32xf32> to vector<1x2x32xf32>
    %524 = vector.shape_cast %523 : vector<1x2x32xf32> to vector<2x32xf32>
    %525 = tpu.concatenate %522, %524 in 1 : vector<2x32xf32>, vector<2x32xf32> -> vector<2x64xf32>
    %526 = vector.extract_strided_slice %450 {offsets = [7, 0, 0], sizes = [1, 2, 32], strides = [1, 1, 1]} : vector<8x2x32xf32> to vector<1x2x32xf32>
    %527 = vector.shape_cast %526 : vector<1x2x32xf32> to vector<2x32xf32>
    %528 = vector.extract_strided_slice %474 {offsets = [0, 0, 0], sizes = [1, 2, 32], strides = [1, 1, 1]} : vector<8x2x32xf32> to vector<1x2x32xf32>
    %529 = vector.shape_cast %528 : vector<1x2x32xf32> to vector<2x32xf32>
    %530 = tpu.concatenate %527, %529 in 1 : vector<2x32xf32>, vector<2x32xf32> -> vector<2x64xf32>
    %531 = vector.extract_strided_slice %458 {offsets = [0, 0, 0], sizes = [1, 2, 32], strides = [1, 1, 1]} : vector<8x2x32xf32> to vector<1x2x32xf32>
    %532 = vector.shape_cast %531 : vector<1x2x32xf32> to vector<2x32xf32>
    %533 = vector.extract_strided_slice %482 {offsets = [7, 0, 0], sizes = [1, 2, 32], strides = [1, 1, 1]} : vector<8x2x32xf32> to vector<1x2x32xf32>
    %534 = vector.shape_cast %533 : vector<1x2x32xf32> to vector<2x32xf32>
    %535 = tpu.concatenate %532, %534 in 1 : vector<2x32xf32>, vector<2x32xf32> -> vector<2x64xf32>
    %536 = vector.extract_strided_slice %458 {offsets = [1, 0, 0], sizes = [1, 2, 32], strides = [1, 1, 1]} : vector<8x2x32xf32> to vector<1x2x32xf32>
    %537 = vector.shape_cast %536 : vector<1x2x32xf32> to vector<2x32xf32>
    %538 = vector.extract_strided_slice %482 {offsets = [6, 0, 0], sizes = [1, 2, 32], strides = [1, 1, 1]} : vector<8x2x32xf32> to vector<1x2x32xf32>
    %539 = vector.shape_cast %538 : vector<1x2x32xf32> to vector<2x32xf32>
    %540 = tpu.concatenate %537, %539 in 1 : vector<2x32xf32>, vector<2x32xf32> -> vector<2x64xf32>
    %541 = vector.extract_strided_slice %458 {offsets = [2, 0, 0], sizes = [1, 2, 32], strides = [1, 1, 1]} : vector<8x2x32xf32> to vector<1x2x32xf32>
    %542 = vector.shape_cast %541 : vector<1x2x32xf32> to vector<2x32xf32>
    %543 = vector.extract_strided_slice %482 {offsets = [5, 0, 0], sizes = [1, 2, 32], strides = [1, 1, 1]} : vector<8x2x32xf32> to vector<1x2x32xf32>
    %544 = vector.shape_cast %543 : vector<1x2x32xf32> to vector<2x32xf32>
    %545 = tpu.concatenate %542, %544 in 1 : vector<2x32xf32>, vector<2x32xf32> -> vector<2x64xf32>
    %546 = vector.extract_strided_slice %458 {offsets = [3, 0, 0], sizes = [1, 2, 32], strides = [1, 1, 1]} : vector<8x2x32xf32> to vector<1x2x32xf32>
    %547 = vector.shape_cast %546 : vector<1x2x32xf32> to vector<2x32xf32>
    %548 = vector.extract_strided_slice %482 {offsets = [4, 0, 0], sizes = [1, 2, 32], strides = [1, 1, 1]} : vector<8x2x32xf32> to vector<1x2x32xf32>
    %549 = vector.shape_cast %548 : vector<1x2x32xf32> to vector<2x32xf32>
    %550 = tpu.concatenate %547, %549 in 1 : vector<2x32xf32>, vector<2x32xf32> -> vector<2x64xf32>
    %551 = vector.extract_strided_slice %458 {offsets = [4, 0, 0], sizes = [1, 2, 32], strides = [1, 1, 1]} : vector<8x2x32xf32> to vector<1x2x32xf32>
    %552 = vector.shape_cast %551 : vector<1x2x32xf32> to vector<2x32xf32>
    %553 = vector.extract_strided_slice %482 {offsets = [3, 0, 0], sizes = [1, 2, 32], strides = [1, 1, 1]} : vector<8x2x32xf32> to vector<1x2x32xf32>
    %554 = vector.shape_cast %553 : vector<1x2x32xf32> to vector<2x32xf32>
    %555 = tpu.concatenate %552, %554 in 1 : vector<2x32xf32>, vector<2x32xf32> -> vector<2x64xf32>
    %556 = vector.extract_strided_slice %458 {offsets = [5, 0, 0], sizes = [1, 2, 32], strides = [1, 1, 1]} : vector<8x2x32xf32> to vector<1x2x32xf32>
    %557 = vector.shape_cast %556 : vector<1x2x32xf32> to vector<2x32xf32>
    %558 = vector.extract_strided_slice %482 {offsets = [2, 0, 0], sizes = [1, 2, 32], strides = [1, 1, 1]} : vector<8x2x32xf32> to vector<1x2x32xf32>
    %559 = vector.shape_cast %558 : vector<1x2x32xf32> to vector<2x32xf32>
    %560 = tpu.concatenate %557, %559 in 1 : vector<2x32xf32>, vector<2x32xf32> -> vector<2x64xf32>
    %561 = vector.extract_strided_slice %458 {offsets = [6, 0, 0], sizes = [1, 2, 32], strides = [1, 1, 1]} : vector<8x2x32xf32> to vector<1x2x32xf32>
    %562 = vector.shape_cast %561 : vector<1x2x32xf32> to vector<2x32xf32>
    %563 = vector.extract_strided_slice %482 {offsets = [1, 0, 0], sizes = [1, 2, 32], strides = [1, 1, 1]} : vector<8x2x32xf32> to vector<1x2x32xf32>
    %564 = vector.shape_cast %563 : vector<1x2x32xf32> to vector<2x32xf32>
    %565 = tpu.concatenate %562, %564 in 1 : vector<2x32xf32>, vector<2x32xf32> -> vector<2x64xf32>
    %566 = vector.extract_strided_slice %458 {offsets = [7, 0, 0], sizes = [1, 2, 32], strides = [1, 1, 1]} : vector<8x2x32xf32> to vector<1x2x32xf32>
    %567 = vector.shape_cast %566 : vector<1x2x32xf32> to vector<2x32xf32>
    %568 = vector.extract_strided_slice %482 {offsets = [0, 0, 0], sizes = [1, 2, 32], strides = [1, 1, 1]} : vector<8x2x32xf32> to vector<1x2x32xf32>
    %569 = vector.shape_cast %568 : vector<1x2x32xf32> to vector<2x32xf32>
    %570 = tpu.concatenate %567, %569 in 1 : vector<2x32xf32>, vector<2x32xf32> -> vector<2x64xf32>
    %571 = vector.extract_strided_slice %466 {offsets = [0, 0, 0], sizes = [1, 2, 32], strides = [1, 1, 1]} : vector<8x2x32xf32> to vector<1x2x32xf32>
    %572 = vector.shape_cast %571 : vector<1x2x32xf32> to vector<2x32xf32>
    %573 = vector.extract_strided_slice %490 {offsets = [7, 0, 0], sizes = [1, 2, 32], strides = [1, 1, 1]} : vector<8x2x32xf32> to vector<1x2x32xf32>
    %574 = vector.shape_cast %573 : vector<1x2x32xf32> to vector<2x32xf32>
    %575 = tpu.concatenate %572, %574 in 1 : vector<2x32xf32>, vector<2x32xf32> -> vector<2x64xf32>
    %576 = vector.extract_strided_slice %466 {offsets = [1, 0, 0], sizes = [1, 2, 32], strides = [1, 1, 1]} : vector<8x2x32xf32> to vector<1x2x32xf32>
    %577 = vector.shape_cast %576 : vector<1x2x32xf32> to vector<2x32xf32>
    %578 = vector.extract_strided_slice %490 {offsets = [6, 0, 0], sizes = [1, 2, 32], strides = [1, 1, 1]} : vector<8x2x32xf32> to vector<1x2x32xf32>
    %579 = vector.shape_cast %578 : vector<1x2x32xf32> to vector<2x32xf32>
    %580 = tpu.concatenate %577, %579 in 1 : vector<2x32xf32>, vector<2x32xf32> -> vector<2x64xf32>
    %581 = vector.extract_strided_slice %466 {offsets = [2, 0, 0], sizes = [1, 2, 32], strides = [1, 1, 1]} : vector<8x2x32xf32> to vector<1x2x32xf32>
    %582 = vector.shape_cast %581 : vector<1x2x32xf32> to vector<2x32xf32>
    %583 = vector.extract_strided_slice %490 {offsets = [5, 0, 0], sizes = [1, 2, 32], strides = [1, 1, 1]} : vector<8x2x32xf32> to vector<1x2x32xf32>
    %584 = vector.shape_cast %583 : vector<1x2x32xf32> to vector<2x32xf32>
    %585 = tpu.concatenate %582, %584 in 1 : vector<2x32xf32>, vector<2x32xf32> -> vector<2x64xf32>
    %586 = vector.extract_strided_slice %466 {offsets = [3, 0, 0], sizes = [1, 2, 32], strides = [1, 1, 1]} : vector<8x2x32xf32> to vector<1x2x32xf32>
    %587 = vector.shape_cast %586 : vector<1x2x32xf32> to vector<2x32xf32>
    %588 = vector.extract_strided_slice %490 {offsets = [4, 0, 0], sizes = [1, 2, 32], strides = [1, 1, 1]} : vector<8x2x32xf32> to vector<1x2x32xf32>
    %589 = vector.shape_cast %588 : vector<1x2x32xf32> to vector<2x32xf32>
    %590 = tpu.concatenate %587, %589 in 1 : vector<2x32xf32>, vector<2x32xf32> -> vector<2x64xf32>
    %591 = vector.extract_strided_slice %466 {offsets = [4, 0, 0], sizes = [1, 2, 32], strides = [1, 1, 1]} : vector<8x2x32xf32> to vector<1x2x32xf32>
    %592 = vector.shape_cast %591 : vector<1x2x32xf32> to vector<2x32xf32>
    %593 = vector.extract_strided_slice %490 {offsets = [3, 0, 0], sizes = [1, 2, 32], strides = [1, 1, 1]} : vector<8x2x32xf32> to vector<1x2x32xf32>
    %594 = vector.shape_cast %593 : vector<1x2x32xf32> to vector<2x32xf32>
    %595 = tpu.concatenate %592, %594 in 1 : vector<2x32xf32>, vector<2x32xf32> -> vector<2x64xf32>
    %596 = vector.extract_strided_slice %466 {offsets = [5, 0, 0], sizes = [1, 2, 32], strides = [1, 1, 1]} : vector<8x2x32xf32> to vector<1x2x32xf32>
    %597 = vector.shape_cast %596 : vector<1x2x32xf32> to vector<2x32xf32>
    %598 = vector.extract_strided_slice %490 {offsets = [2, 0, 0], sizes = [1, 2, 32], strides = [1, 1, 1]} : vector<8x2x32xf32> to vector<1x2x32xf32>
    %599 = vector.shape_cast %598 : vector<1x2x32xf32> to vector<2x32xf32>
    %600 = tpu.concatenate %597, %599 in 1 : vector<2x32xf32>, vector<2x32xf32> -> vector<2x64xf32>
    %601 = vector.extract_strided_slice %466 {offsets = [6, 0, 0], sizes = [1, 2, 32], strides = [1, 1, 1]} : vector<8x2x32xf32> to vector<1x2x32xf32>
    %602 = vector.shape_cast %601 : vector<1x2x32xf32> to vector<2x32xf32>
    %603 = vector.extract_strided_slice %490 {offsets = [1, 0, 0], sizes = [1, 2, 32], strides = [1, 1, 1]} : vector<8x2x32xf32> to vector<1x2x32xf32>
    %604 = vector.shape_cast %603 : vector<1x2x32xf32> to vector<2x32xf32>
    %605 = tpu.concatenate %602, %604 in 1 : vector<2x32xf32>, vector<2x32xf32> -> vector<2x64xf32>
    %606 = vector.extract_strided_slice %466 {offsets = [7, 0, 0], sizes = [1, 2, 32], strides = [1, 1, 1]} : vector<8x2x32xf32> to vector<1x2x32xf32>
    %607 = vector.shape_cast %606 : vector<1x2x32xf32> to vector<2x32xf32>
    %608 = vector.extract_strided_slice %490 {offsets = [0, 0, 0], sizes = [1, 2, 32], strides = [1, 1, 1]} : vector<8x2x32xf32> to vector<1x2x32xf32>
    %609 = vector.shape_cast %608 : vector<1x2x32xf32> to vector<2x32xf32>
    %610 = tpu.concatenate %607, %609 in 1 : vector<2x32xf32>, vector<2x32xf32> -> vector<2x64xf32>
    %c0_187 = arith.constant 0 : index
    %c0_188 = arith.constant 0 : index
    %c0_189 = arith.constant 0 : index
    %611 = vector.load %arg7[%c0_187, %c0_188, %c0_189] : memref<3x64x64xf32, #tpu.memory_space<vmem>>, vector<1x64x64xf32>
    %612 = vector.shape_cast %611 : vector<1x64x64xf32> to vector<64x64xf32>
    %c1_190 = arith.constant 1 : index
    %c0_191 = arith.constant 0 : index
    %c0_192 = arith.constant 0 : index
    %613 = vector.load %arg7[%c1_190, %c0_191, %c0_192] : memref<3x64x64xf32, #tpu.memory_space<vmem>>, vector<1x64x64xf32>
    %614 = vector.shape_cast %613 : vector<1x64x64xf32> to vector<64x64xf32>
    %c2_193 = arith.constant 2 : index
    %c0_194 = arith.constant 0 : index
    %c0_195 = arith.constant 0 : index
    %615 = vector.load %arg7[%c2_193, %c0_194, %c0_195] : memref<3x64x64xf32, #tpu.memory_space<vmem>>, vector<1x64x64xf32>
    %616 = vector.shape_cast %615 : vector<1x64x64xf32> to vector<64x64xf32>
    %c0_196 = arith.constant 0 : index
    %c0_197 = arith.constant 0 : index
    %617 = vector.load %arg8[%c0_196, %c0_197] : memref<1x64xf32, #tpu.memory_space<vmem>>, vector<1x64xf32>
    %cst_198 = arith.constant 0.000000e+00 : f32
    %618 = vector.broadcast %cst_198 : f32 to vector<2x64xf32>
    %cst_199 = arith.constant dense<0.000000e+00> : vector<2x64xf32>
    %619 = tpu.matmul %618, %612, %cst_199 {dimension_numbers = #tpu.dot_dimension_numbers<[1], [0], [0], [1], [0, 0, 1, 1], [], []>} : vector<2x64xf32>, vector<64x64xf32>, vector<2x64xf32> -> vector<2x64xf32>
    %cst_200 = arith.constant dense<0.000000e+00> : vector<2x64xf32>
    %620 = tpu.matmul %618, %614, %cst_200 {dimension_numbers = #tpu.dot_dimension_numbers<[1], [0], [0], [1], [0, 0, 1, 1], [], []>} : vector<2x64xf32>, vector<64x64xf32>, vector<2x64xf32> -> vector<2x64xf32>
    %cst_201 = arith.constant dense<0.000000e+00> : vector<2x64xf32>
    %621 = tpu.matmul %618, %616, %cst_201 {dimension_numbers = #tpu.dot_dimension_numbers<[1], [0], [0], [1], [0, 0, 1, 1], [], []>} : vector<2x64xf32>, vector<64x64xf32>, vector<2x64xf32> -> vector<2x64xf32>
    %622 = arith.addf %495, %619 : vector<2x64xf32>
    %623 = arith.negf %622 : vector<2x64xf32>
    %624 = math.exp %623 : vector<2x64xf32>
    %cst_202 = arith.constant 1.000000e+00 : f32
    %625 = vector.broadcast %cst_202 : f32 to vector<2x64xf32>
    %626 = arith.addf %625, %624 : vector<2x64xf32>
    %627 = arith.divf %625, %626 : vector<2x64xf32>
    %628 = arith.addf %535, %620 : vector<2x64xf32>
    %629 = arith.negf %628 : vector<2x64xf32>
    %630 = math.exp %629 : vector<2x64xf32>
    %cst_203 = arith.constant 1.000000e+00 : f32
    %631 = vector.broadcast %cst_203 : f32 to vector<2x64xf32>
    %632 = arith.addf %631, %630 : vector<2x64xf32>
    %633 = arith.divf %631, %632 : vector<2x64xf32>
    %634 = vector.broadcast %617 : vector<1x64xf32> to vector<2x64xf32>
    %635 = arith.addf %621, %634 : vector<2x64xf32>
    %636 = arith.mulf %627, %635 : vector<2x64xf32>
    %637 = arith.addf %575, %636 : vector<2x64xf32>
    %638 = math.tanh %637 : vector<2x64xf32>
    %cst_204 = arith.constant 1.000000e+00 : f32
    %639 = vector.broadcast %cst_204 : f32 to vector<2x64xf32>
    %640 = arith.subf %639, %633 : vector<2x64xf32>
    %641 = arith.mulf %640, %638 : vector<2x64xf32>
    %642 = arith.mulf %633, %618 : vector<2x64xf32>
    %643 = arith.addf %641, %642 : vector<2x64xf32>
    %cst_205 = arith.constant dense<0.000000e+00> : vector<2x64xf32>
    %644 = tpu.matmul %643, %612, %cst_205 {dimension_numbers = #tpu.dot_dimension_numbers<[1], [0], [0], [1], [0, 0, 1, 1], [], []>} : vector<2x64xf32>, vector<64x64xf32>, vector<2x64xf32> -> vector<2x64xf32>
    %cst_206 = arith.constant dense<0.000000e+00> : vector<2x64xf32>
    %645 = tpu.matmul %643, %614, %cst_206 {dimension_numbers = #tpu.dot_dimension_numbers<[1], [0], [0], [1], [0, 0, 1, 1], [], []>} : vector<2x64xf32>, vector<64x64xf32>, vector<2x64xf32> -> vector<2x64xf32>
    %cst_207 = arith.constant dense<0.000000e+00> : vector<2x64xf32>
    %646 = tpu.matmul %643, %616, %cst_207 {dimension_numbers = #tpu.dot_dimension_numbers<[1], [0], [0], [1], [0, 0, 1, 1], [], []>} : vector<2x64xf32>, vector<64x64xf32>, vector<2x64xf32> -> vector<2x64xf32>
    %647 = arith.addf %500, %644 : vector<2x64xf32>
    %648 = arith.negf %647 : vector<2x64xf32>
    %649 = math.exp %648 : vector<2x64xf32>
    %cst_208 = arith.constant 1.000000e+00 : f32
    %650 = vector.broadcast %cst_208 : f32 to vector<2x64xf32>
    %651 = arith.addf %650, %649 : vector<2x64xf32>
    %652 = arith.divf %650, %651 : vector<2x64xf32>
    %653 = arith.addf %540, %645 : vector<2x64xf32>
    %654 = arith.negf %653 : vector<2x64xf32>
    %655 = math.exp %654 : vector<2x64xf32>
    %cst_209 = arith.constant 1.000000e+00 : f32
    %656 = vector.broadcast %cst_209 : f32 to vector<2x64xf32>
    %657 = arith.addf %656, %655 : vector<2x64xf32>
    %658 = arith.divf %656, %657 : vector<2x64xf32>
    %659 = vector.broadcast %617 : vector<1x64xf32> to vector<2x64xf32>
    %660 = arith.addf %646, %659 : vector<2x64xf32>
    %661 = arith.mulf %652, %660 : vector<2x64xf32>
    %662 = arith.addf %580, %661 : vector<2x64xf32>
    %663 = math.tanh %662 : vector<2x64xf32>
    %cst_210 = arith.constant 1.000000e+00 : f32
    %664 = vector.broadcast %cst_210 : f32 to vector<2x64xf32>
    %665 = arith.subf %664, %658 : vector<2x64xf32>
    %666 = arith.mulf %665, %663 : vector<2x64xf32>
    %667 = arith.mulf %658, %643 : vector<2x64xf32>
    %668 = arith.addf %666, %667 : vector<2x64xf32>
    %cst_211 = arith.constant dense<0.000000e+00> : vector<2x64xf32>
    %669 = tpu.matmul %668, %612, %cst_211 {dimension_numbers = #tpu.dot_dimension_numbers<[1], [0], [0], [1], [0, 0, 1, 1], [], []>} : vector<2x64xf32>, vector<64x64xf32>, vector<2x64xf32> -> vector<2x64xf32>
    %cst_212 = arith.constant dense<0.000000e+00> : vector<2x64xf32>
    %670 = tpu.matmul %668, %614, %cst_212 {dimension_numbers = #tpu.dot_dimension_numbers<[1], [0], [0], [1], [0, 0, 1, 1], [], []>} : vector<2x64xf32>, vector<64x64xf32>, vector<2x64xf32> -> vector<2x64xf32>
    %cst_213 = arith.constant dense<0.000000e+00> : vector<2x64xf32>
    %671 = tpu.matmul %668, %616, %cst_213 {dimension_numbers = #tpu.dot_dimension_numbers<[1], [0], [0], [1], [0, 0, 1, 1], [], []>} : vector<2x64xf32>, vector<64x64xf32>, vector<2x64xf32> -> vector<2x64xf32>
    %672 = arith.addf %505, %669 : vector<2x64xf32>
    %673 = arith.negf %672 : vector<2x64xf32>
    %674 = math.exp %673 : vector<2x64xf32>
    %cst_214 = arith.constant 1.000000e+00 : f32
    %675 = vector.broadcast %cst_214 : f32 to vector<2x64xf32>
    %676 = arith.addf %675, %674 : vector<2x64xf32>
    %677 = arith.divf %675, %676 : vector<2x64xf32>
    %678 = arith.addf %545, %670 : vector<2x64xf32>
    %679 = arith.negf %678 : vector<2x64xf32>
    %680 = math.exp %679 : vector<2x64xf32>
    %cst_215 = arith.constant 1.000000e+00 : f32
    %681 = vector.broadcast %cst_215 : f32 to vector<2x64xf32>
    %682 = arith.addf %681, %680 : vector<2x64xf32>
    %683 = arith.divf %681, %682 : vector<2x64xf32>
    %684 = vector.broadcast %617 : vector<1x64xf32> to vector<2x64xf32>
    %685 = arith.addf %671, %684 : vector<2x64xf32>
    %686 = arith.mulf %677, %685 : vector<2x64xf32>
    %687 = arith.addf %585, %686 : vector<2x64xf32>
    %688 = math.tanh %687 : vector<2x64xf32>
    %cst_216 = arith.constant 1.000000e+00 : f32
    %689 = vector.broadcast %cst_216 : f32 to vector<2x64xf32>
    %690 = arith.subf %689, %683 : vector<2x64xf32>
    %691 = arith.mulf %690, %688 : vector<2x64xf32>
    %692 = arith.mulf %683, %668 : vector<2x64xf32>
    %693 = arith.addf %691, %692 : vector<2x64xf32>
    %cst_217 = arith.constant dense<0.000000e+00> : vector<2x64xf32>
    %694 = tpu.matmul %693, %612, %cst_217 {dimension_numbers = #tpu.dot_dimension_numbers<[1], [0], [0], [1], [0, 0, 1, 1], [], []>} : vector<2x64xf32>, vector<64x64xf32>, vector<2x64xf32> -> vector<2x64xf32>
    %cst_218 = arith.constant dense<0.000000e+00> : vector<2x64xf32>
    %695 = tpu.matmul %693, %614, %cst_218 {dimension_numbers = #tpu.dot_dimension_numbers<[1], [0], [0], [1], [0, 0, 1, 1], [], []>} : vector<2x64xf32>, vector<64x64xf32>, vector<2x64xf32> -> vector<2x64xf32>
    %cst_219 = arith.constant dense<0.000000e+00> : vector<2x64xf32>
    %696 = tpu.matmul %693, %616, %cst_219 {dimension_numbers = #tpu.dot_dimension_numbers<[1], [0], [0], [1], [0, 0, 1, 1], [], []>} : vector<2x64xf32>, vector<64x64xf32>, vector<2x64xf32> -> vector<2x64xf32>
    %697 = arith.addf %510, %694 : vector<2x64xf32>
    %698 = arith.negf %697 : vector<2x64xf32>
    %699 = math.exp %698 : vector<2x64xf32>
    %cst_220 = arith.constant 1.000000e+00 : f32
    %700 = vector.broadcast %cst_220 : f32 to vector<2x64xf32>
    %701 = arith.addf %700, %699 : vector<2x64xf32>
    %702 = arith.divf %700, %701 : vector<2x64xf32>
    %703 = arith.addf %550, %695 : vector<2x64xf32>
    %704 = arith.negf %703 : vector<2x64xf32>
    %705 = math.exp %704 : vector<2x64xf32>
    %cst_221 = arith.constant 1.000000e+00 : f32
    %706 = vector.broadcast %cst_221 : f32 to vector<2x64xf32>
    %707 = arith.addf %706, %705 : vector<2x64xf32>
    %708 = arith.divf %706, %707 : vector<2x64xf32>
    %709 = vector.broadcast %617 : vector<1x64xf32> to vector<2x64xf32>
    %710 = arith.addf %696, %709 : vector<2x64xf32>
    %711 = arith.mulf %702, %710 : vector<2x64xf32>
    %712 = arith.addf %590, %711 : vector<2x64xf32>
    %713 = math.tanh %712 : vector<2x64xf32>
    %cst_222 = arith.constant 1.000000e+00 : f32
    %714 = vector.broadcast %cst_222 : f32 to vector<2x64xf32>
    %715 = arith.subf %714, %708 : vector<2x64xf32>
    %716 = arith.mulf %715, %713 : vector<2x64xf32>
    %717 = arith.mulf %708, %693 : vector<2x64xf32>
    %718 = arith.addf %716, %717 : vector<2x64xf32>
    %cst_223 = arith.constant dense<0.000000e+00> : vector<2x64xf32>
    %719 = tpu.matmul %718, %612, %cst_223 {dimension_numbers = #tpu.dot_dimension_numbers<[1], [0], [0], [1], [0, 0, 1, 1], [], []>} : vector<2x64xf32>, vector<64x64xf32>, vector<2x64xf32> -> vector<2x64xf32>
    %cst_224 = arith.constant dense<0.000000e+00> : vector<2x64xf32>
    %720 = tpu.matmul %718, %614, %cst_224 {dimension_numbers = #tpu.dot_dimension_numbers<[1], [0], [0], [1], [0, 0, 1, 1], [], []>} : vector<2x64xf32>, vector<64x64xf32>, vector<2x64xf32> -> vector<2x64xf32>
    %cst_225 = arith.constant dense<0.000000e+00> : vector<2x64xf32>
    %721 = tpu.matmul %718, %616, %cst_225 {dimension_numbers = #tpu.dot_dimension_numbers<[1], [0], [0], [1], [0, 0, 1, 1], [], []>} : vector<2x64xf32>, vector<64x64xf32>, vector<2x64xf32> -> vector<2x64xf32>
    %722 = arith.addf %515, %719 : vector<2x64xf32>
    %723 = arith.negf %722 : vector<2x64xf32>
    %724 = math.exp %723 : vector<2x64xf32>
    %cst_226 = arith.constant 1.000000e+00 : f32
    %725 = vector.broadcast %cst_226 : f32 to vector<2x64xf32>
    %726 = arith.addf %725, %724 : vector<2x64xf32>
    %727 = arith.divf %725, %726 : vector<2x64xf32>
    %728 = arith.addf %555, %720 : vector<2x64xf32>
    %729 = arith.negf %728 : vector<2x64xf32>
    %730 = math.exp %729 : vector<2x64xf32>
    %cst_227 = arith.constant 1.000000e+00 : f32
    %731 = vector.broadcast %cst_227 : f32 to vector<2x64xf32>
    %732 = arith.addf %731, %730 : vector<2x64xf32>
    %733 = arith.divf %731, %732 : vector<2x64xf32>
    %734 = vector.broadcast %617 : vector<1x64xf32> to vector<2x64xf32>
    %735 = arith.addf %721, %734 : vector<2x64xf32>
    %736 = arith.mulf %727, %735 : vector<2x64xf32>
    %737 = arith.addf %595, %736 : vector<2x64xf32>
    %738 = math.tanh %737 : vector<2x64xf32>
    %cst_228 = arith.constant 1.000000e+00 : f32
    %739 = vector.broadcast %cst_228 : f32 to vector<2x64xf32>
    %740 = arith.subf %739, %733 : vector<2x64xf32>
    %741 = arith.mulf %740, %738 : vector<2x64xf32>
    %742 = arith.mulf %733, %718 : vector<2x64xf32>
    %743 = arith.addf %741, %742 : vector<2x64xf32>
    %cst_229 = arith.constant dense<0.000000e+00> : vector<2x64xf32>
    %744 = tpu.matmul %743, %612, %cst_229 {dimension_numbers = #tpu.dot_dimension_numbers<[1], [0], [0], [1], [0, 0, 1, 1], [], []>} : vector<2x64xf32>, vector<64x64xf32>, vector<2x64xf32> -> vector<2x64xf32>
    %cst_230 = arith.constant dense<0.000000e+00> : vector<2x64xf32>
    %745 = tpu.matmul %743, %614, %cst_230 {dimension_numbers = #tpu.dot_dimension_numbers<[1], [0], [0], [1], [0, 0, 1, 1], [], []>} : vector<2x64xf32>, vector<64x64xf32>, vector<2x64xf32> -> vector<2x64xf32>
    %cst_231 = arith.constant dense<0.000000e+00> : vector<2x64xf32>
    %746 = tpu.matmul %743, %616, %cst_231 {dimension_numbers = #tpu.dot_dimension_numbers<[1], [0], [0], [1], [0, 0, 1, 1], [], []>} : vector<2x64xf32>, vector<64x64xf32>, vector<2x64xf32> -> vector<2x64xf32>
    %747 = arith.addf %520, %744 : vector<2x64xf32>
    %748 = arith.negf %747 : vector<2x64xf32>
    %749 = math.exp %748 : vector<2x64xf32>
    %cst_232 = arith.constant 1.000000e+00 : f32
    %750 = vector.broadcast %cst_232 : f32 to vector<2x64xf32>
    %751 = arith.addf %750, %749 : vector<2x64xf32>
    %752 = arith.divf %750, %751 : vector<2x64xf32>
    %753 = arith.addf %560, %745 : vector<2x64xf32>
    %754 = arith.negf %753 : vector<2x64xf32>
    %755 = math.exp %754 : vector<2x64xf32>
    %cst_233 = arith.constant 1.000000e+00 : f32
    %756 = vector.broadcast %cst_233 : f32 to vector<2x64xf32>
    %757 = arith.addf %756, %755 : vector<2x64xf32>
    %758 = arith.divf %756, %757 : vector<2x64xf32>
    %759 = vector.broadcast %617 : vector<1x64xf32> to vector<2x64xf32>
    %760 = arith.addf %746, %759 : vector<2x64xf32>
    %761 = arith.mulf %752, %760 : vector<2x64xf32>
    %762 = arith.addf %600, %761 : vector<2x64xf32>
    %763 = math.tanh %762 : vector<2x64xf32>
    %cst_234 = arith.constant 1.000000e+00 : f32
    %764 = vector.broadcast %cst_234 : f32 to vector<2x64xf32>
    %765 = arith.subf %764, %758 : vector<2x64xf32>
    %766 = arith.mulf %765, %763 : vector<2x64xf32>
    %767 = arith.mulf %758, %743 : vector<2x64xf32>
    %768 = arith.addf %766, %767 : vector<2x64xf32>
    %cst_235 = arith.constant dense<0.000000e+00> : vector<2x64xf32>
    %769 = tpu.matmul %768, %612, %cst_235 {dimension_numbers = #tpu.dot_dimension_numbers<[1], [0], [0], [1], [0, 0, 1, 1], [], []>} : vector<2x64xf32>, vector<64x64xf32>, vector<2x64xf32> -> vector<2x64xf32>
    %cst_236 = arith.constant dense<0.000000e+00> : vector<2x64xf32>
    %770 = tpu.matmul %768, %614, %cst_236 {dimension_numbers = #tpu.dot_dimension_numbers<[1], [0], [0], [1], [0, 0, 1, 1], [], []>} : vector<2x64xf32>, vector<64x64xf32>, vector<2x64xf32> -> vector<2x64xf32>
    %cst_237 = arith.constant dense<0.000000e+00> : vector<2x64xf32>
    %771 = tpu.matmul %768, %616, %cst_237 {dimension_numbers = #tpu.dot_dimension_numbers<[1], [0], [0], [1], [0, 0, 1, 1], [], []>} : vector<2x64xf32>, vector<64x64xf32>, vector<2x64xf32> -> vector<2x64xf32>
    %772 = arith.addf %525, %769 : vector<2x64xf32>
    %773 = arith.negf %772 : vector<2x64xf32>
    %774 = math.exp %773 : vector<2x64xf32>
    %cst_238 = arith.constant 1.000000e+00 : f32
    %775 = vector.broadcast %cst_238 : f32 to vector<2x64xf32>
    %776 = arith.addf %775, %774 : vector<2x64xf32>
    %777 = arith.divf %775, %776 : vector<2x64xf32>
    %778 = arith.addf %565, %770 : vector<2x64xf32>
    %779 = arith.negf %778 : vector<2x64xf32>
    %780 = math.exp %779 : vector<2x64xf32>
    %cst_239 = arith.constant 1.000000e+00 : f32
    %781 = vector.broadcast %cst_239 : f32 to vector<2x64xf32>
    %782 = arith.addf %781, %780 : vector<2x64xf32>
    %783 = arith.divf %781, %782 : vector<2x64xf32>
    %784 = vector.broadcast %617 : vector<1x64xf32> to vector<2x64xf32>
    %785 = arith.addf %771, %784 : vector<2x64xf32>
    %786 = arith.mulf %777, %785 : vector<2x64xf32>
    %787 = arith.addf %605, %786 : vector<2x64xf32>
    %788 = math.tanh %787 : vector<2x64xf32>
    %cst_240 = arith.constant 1.000000e+00 : f32
    %789 = vector.broadcast %cst_240 : f32 to vector<2x64xf32>
    %790 = arith.subf %789, %783 : vector<2x64xf32>
    %791 = arith.mulf %790, %788 : vector<2x64xf32>
    %792 = arith.mulf %783, %768 : vector<2x64xf32>
    %793 = arith.addf %791, %792 : vector<2x64xf32>
    %cst_241 = arith.constant dense<0.000000e+00> : vector<2x64xf32>
    %794 = tpu.matmul %793, %612, %cst_241 {dimension_numbers = #tpu.dot_dimension_numbers<[1], [0], [0], [1], [0, 0, 1, 1], [], []>} : vector<2x64xf32>, vector<64x64xf32>, vector<2x64xf32> -> vector<2x64xf32>
    %cst_242 = arith.constant dense<0.000000e+00> : vector<2x64xf32>
    %795 = tpu.matmul %793, %614, %cst_242 {dimension_numbers = #tpu.dot_dimension_numbers<[1], [0], [0], [1], [0, 0, 1, 1], [], []>} : vector<2x64xf32>, vector<64x64xf32>, vector<2x64xf32> -> vector<2x64xf32>
    %cst_243 = arith.constant dense<0.000000e+00> : vector<2x64xf32>
    %796 = tpu.matmul %793, %616, %cst_243 {dimension_numbers = #tpu.dot_dimension_numbers<[1], [0], [0], [1], [0, 0, 1, 1], [], []>} : vector<2x64xf32>, vector<64x64xf32>, vector<2x64xf32> -> vector<2x64xf32>
    %797 = arith.addf %530, %794 : vector<2x64xf32>
    %798 = arith.negf %797 : vector<2x64xf32>
    %799 = math.exp %798 : vector<2x64xf32>
    %cst_244 = arith.constant 1.000000e+00 : f32
    %800 = vector.broadcast %cst_244 : f32 to vector<2x64xf32>
    %801 = arith.addf %800, %799 : vector<2x64xf32>
    %802 = arith.divf %800, %801 : vector<2x64xf32>
    %803 = arith.addf %570, %795 : vector<2x64xf32>
    %804 = arith.negf %803 : vector<2x64xf32>
    %805 = math.exp %804 : vector<2x64xf32>
    %cst_245 = arith.constant 1.000000e+00 : f32
    %806 = vector.broadcast %cst_245 : f32 to vector<2x64xf32>
    %807 = arith.addf %806, %805 : vector<2x64xf32>
    %808 = arith.divf %806, %807 : vector<2x64xf32>
    %809 = vector.broadcast %617 : vector<1x64xf32> to vector<2x64xf32>
    %810 = arith.addf %796, %809 : vector<2x64xf32>
    %811 = arith.mulf %802, %810 : vector<2x64xf32>
    %812 = arith.addf %610, %811 : vector<2x64xf32>
    %813 = math.tanh %812 : vector<2x64xf32>
    %cst_246 = arith.constant 1.000000e+00 : f32
    %814 = vector.broadcast %cst_246 : f32 to vector<2x64xf32>
    %815 = arith.subf %814, %808 : vector<2x64xf32>
    %816 = arith.mulf %815, %813 : vector<2x64xf32>
    %817 = arith.mulf %808, %793 : vector<2x64xf32>
    %818 = arith.addf %816, %817 : vector<2x64xf32>
    %819 = tpu.concatenate %432, %818 in 1 : vector<2x64xf32>, vector<2x64xf32> -> vector<2x128xf32>
    %c0_247 = arith.constant 0 : index
    %c0_248 = arith.constant 0 : index
    %820 = vector.load %arg9[%c0_247, %c0_248] : memref<128x32xf32, #tpu.memory_space<vmem>>, vector<128x32xf32>
    %cst_249 = arith.constant dense<0.000000e+00> : vector<2x32xf32>
    %821 = tpu.matmul %819, %820, %cst_249 {dimension_numbers = #tpu.dot_dimension_numbers<[1], [0], [0], [1], [0, 0, 1, 1], [], []>} : vector<2x128xf32>, vector<128x32xf32>, vector<2x32xf32> -> vector<2x32xf32>
    %c0_250 = arith.constant 0 : index
    %c0_251 = arith.constant 0 : index
    %822 = vector.load %arg10[%c0_250, %c0_251] : memref<1x32xf32, #tpu.memory_space<vmem>>, vector<1x32xf32>
    %823 = vector.broadcast %822 : vector<1x32xf32> to vector<2x32xf32>
    %824 = arith.addf %821, %823 : vector<2x32xf32>
    %825 = math.tanh %824 : vector<2x32xf32>
    %c0_252 = arith.constant 0 : index
    %c0_253 = arith.constant 0 : index
    %826 = vector.load %arg11[%c0_252, %c0_253] : memref<32x1xf32, #tpu.memory_space<vmem>>, vector<32x1xf32>
    %cst_254 = arith.constant dense<0.000000e+00> : vector<2x1xf32>
    %827 = tpu.matmul %825, %826, %cst_254 {dimension_numbers = #tpu.dot_dimension_numbers<[1], [0], [0], [1], [0, 0, 1, 1], [], []>} : vector<2x32xf32>, vector<32x1xf32>, vector<2x1xf32> -> vector<2x1xf32>
    %c0_255 = arith.constant 0 : index
    %c0_256 = arith.constant 0 : index
    %828 = vector.load %arg12[%c0_255, %c0_256] : memref<1x1xf32, #tpu.memory_space<vmem>>, vector<1x1xf32>
    %829 = vector.broadcast %828 : vector<1x1xf32> to vector<2x1xf32>
    %830 = arith.addf %827, %829 : vector<2x1xf32>
    %831 = arith.negf %830 : vector<2x1xf32>
    %832 = math.exp %831 : vector<2x1xf32>
    %cst_257 = arith.constant 1.000000e+00 : f32
    %833 = vector.broadcast %cst_257 : f32 to vector<2x1xf32>
    %834 = arith.addf %833, %832 : vector<2x1xf32>
    %835 = arith.divf %833, %834 : vector<2x1xf32>
    %c0_258 = arith.constant 0 : index
    %c0_259 = arith.constant 0 : index
    %836 = vector.load %arg13[%c0_258, %c0_259] : memref<2x1xf32, #tpu.memory_space<vmem>>, vector<2x1xf32>
    tpu.vector_store %arg13[%c0_258, %c0_259], %835 {strides = array<i32>} : memref<2x1xf32, #tpu.memory_space<vmem>>, vector<2x1xf32>,
    return
  }
}

</mosaic_0001>

<llo_original>
// kernel: tpu_custom_call.1
$region0: #{tpu_custom_call.1}
  #allocation0 [shape = 'u32[]', space=smem, size = 0x4, offset = 0x4, fixed_abs, tag = 'smem constant byte address 0x4 - core index']
  #allocation1 [shape = 'u32[72,128]{1,0:T(1,128)}', space=vmem, size = 0x9000, scoped, tag = 'internal scratch']
  #allocation2 [shape = 'f32[8,2,64]{2,1,0:T(2,128)}', space=vmem, size = 0x2000, scoped, tag = 'scratch operand']
  #allocation3 [shape = 'f32[1,1]{1,0:T(1,128)S(1)}', space=vmem, size = 0x200, scoped, tag = 'scoped memory for tpu_custom_call.1']
  %s0 = inlined_call_operand.hbm [shape: f32[16,32], index: 0, kind: input, shape index: {}]
  %s1 = inlined_call_operand.vmem [shape: f32[6,32,32], index: 1, kind: input, shape index: {}]
  %s2 = inlined_call_operand.vmem [shape: f32[6,1,32], index: 2, kind: input, shape index: {}]
  %s3 = inlined_call_operand.vmem [shape: f32[3,64,64], index: 3, kind: input, shape index: {}]
  %s4 = inlined_call_operand.vmem [shape: f32[1,64], index: 4, kind: input, shape index: {}]
  %s5 = inlined_call_operand.vmem [shape: f32[6,64,32], index: 5, kind: input, shape index: {}]
  %s6 = inlined_call_operand.hbm [shape: f32[6,1,32], index: 6, kind: input, shape index: {}]
  %s7 = inlined_call_operand.vmem [shape: f32[3,64,64], index: 7, kind: input, shape index: {}]
  %s8 = inlined_call_operand.vmem [shape: f32[1,64], index: 8, kind: input, shape index: {}]
  %s9 = inlined_call_operand.vmem [shape: f32[128,32], index: 9, kind: input, shape index: {}]
  %s10 = inlined_call_operand.hbm [shape: f32[1,32], index: 10, kind: input, shape index: {}]
  %s11 = inlined_call_operand.vmem [shape: f32[32,1], index: 11, kind: input, shape index: {}]
  %s12 = inlined_call_operand.<no memory space> [shape: f32[1,1], index: 12, kind: input, shape index: {}]
  %s13 = inlined_call_operand.vmem [shape: f32[2,1], index: 13, kind: output, shape index: {}]
  %s14 = sld [smem:[#allocation0]]
  $region74: #{tpu_custom_call.1} parent=0
    _
  %s16 = ssub.s32 1, %s14
  %s17 = scalar_select 0, %s16, %s14
  %v18 = vstv %s12
  %19 = vst [vmem:[#allocation3] sm:$0x1] %v18
  $region1: #{tpu_custom_call.1} parent=0
    #allocation4 [shape = 'u8[8192]{0}', space=vmem, size = 0x2000, scoped, tag = 'input window, operand 0, single buffered']
    #allocation5 [shape = 's32[1]{0}', space=sflag, size = 0x4, scoped, tag = 'scoped memory for tpu_custom_call.1']
    #allocation6 [shape = 'u8[3072]{0}', space=vmem, size = 0xc00, scoped, tag = 'input window, operand 6, single buffered']
    #allocation7 [shape = 's32[1]{0}', space=sflag, size = 0x4, scoped, tag = 'scoped memory for tpu_custom_call.1']
    #allocation8 [shape = 'u8[512]{0}', space=vmem, size = 0x400, scoped, tag = 'input window, operand 10, single buffered']
    %20 = vsyncpa [#allocation5], 0
    %21 = vsyncpa [#allocation7], 0
    // Predicated region
    $region2: #{tpu_custom_call.1} parent=1 // pred_check
      _
    $region3: #{tpu_custom_call.1} parent=1 // pred_check_branch
      %23 = sbr.rel (0) target = $region5
    $region4: #{tpu_custom_call.1} parent=1 // pred_region
      %25 = vsyncadd [#allocation5], 0
      %s26 = sshll.u32 %s0, 4
      %s27 = int_to_ptr.hbm [resolvable:$true] %s26
      %s28 = sshll.u32 [#allocation4], 4
      %s29 = int_to_ptr.vmem [resolvable:$true] %s28
      %34 = dma.hbm_to_vmem [thread:$0]  %s27, 256, %s29, [#allocation5], 128, 128, 8
    $region5: #{tpu_custom_call.1} parent=1 // pred_fallthru
      _
    // Predicated region
    $region6: #{tpu_custom_call.1} parent=1 // pred_check
      _
    $region7: #{tpu_custom_call.1} parent=1 // pred_check_branch
      %36 = sbr.rel (0) target = $region9
    $region8: #{tpu_custom_call.1} parent=1 // pred_region
      _
    $region9: #{tpu_custom_call.1} parent=1 // pred_fallthru
      _
    // Predicated region
    $region10: #{tpu_custom_call.1} parent=1 // pred_check
      _
    $region11: #{tpu_custom_call.1} parent=1 // pred_check_branch
      %38 = sbr.rel (0) target = $region13
    $region12: #{tpu_custom_call.1} parent=1 // pred_region
      _
    $region13: #{tpu_custom_call.1} parent=1 // pred_fallthru
      _
    // Predicated region
    $region14: #{tpu_custom_call.1} parent=1 // pred_check
      _
    $region15: #{tpu_custom_call.1} parent=1 // pred_check_branch
      %40 = sbr.rel (0) target = $region17
    $region16: #{tpu_custom_call.1} parent=1 // pred_region
      _
    $region17: #{tpu_custom_call.1} parent=1 // pred_fallthru
      _
    // Predicated region
    $region18: #{tpu_custom_call.1} parent=1 // pred_check
      _
    $region19: #{tpu_custom_call.1} parent=1 // pred_check_branch
      %42 = sbr.rel (0) target = $region21
    $region20: #{tpu_custom_call.1} parent=1 // pred_region
      _
    $region21: #{tpu_custom_call.1} parent=1 // pred_fallthru
      _
    // Predicated region
    $region22: #{tpu_custom_call.1} parent=1 // pred_check
      _
    $region23: #{tpu_custom_call.1} parent=1 // pred_check_branch
      %44 = sbr.rel (0) target = $region25
    $region24: #{tpu_custom_call.1} parent=1 // pred_region
      _
    $region25: #{tpu_custom_call.1} parent=1 // pred_fallthru
      _
    // Predicated region
    $region26: #{tpu_custom_call.1} parent=1 // pred_check
      _
    $region27: #{tpu_custom_call.1} parent=1 // pred_check_branch
      %46 = sbr.rel (0) target = $region29
    $region28: #{tpu_custom_call.1} parent=1 // pred_region
      %48 = vsyncadd [#allocation7], 0
      %s49 = sshll.u32 %s6, 4
      %s50 = int_to_ptr.hbm [resolvable:$true] %s49
      %s51 = sshll.u32 [#allocation6], 4
      %s52 = int_to_ptr.vmem [resolvable:$true] %s51
      %57 = dma.hbm_to_vmem [thread:$0]  %s50, 96, %s52, [#allocation7], 16, 16, 1
    $region29: #{tpu_custom_call.1} parent=1 // pred_fallthru
      _
    // Predicated region
    $region30: #{tpu_custom_call.1} parent=1 // pred_check
      _
    $region31: #{tpu_custom_call.1} parent=1 // pred_check_branch
      %59 = sbr.rel (0) target = $region33
    $region32: #{tpu_custom_call.1} parent=1 // pred_region
      _
    $region33: #{tpu_custom_call.1} parent=1 // pred_fallthru
      _
    // Predicated region
    $region34: #{tpu_custom_call.1} parent=1 // pred_check
      _
    $region35: #{tpu_custom_call.1} parent=1 // pred_check_branch
      %61 = sbr.rel (0) target = $region37
    $region36: #{tpu_custom_call.1} parent=1 // pred_region
      _
    $region37: #{tpu_custom_call.1} parent=1 // pred_fallthru
      _
    // Predicated region
    $region38: #{tpu_custom_call.1} parent=1 // pred_check
      _
    $region39: #{tpu_custom_call.1} parent=1 // pred_check_branch
      %63 = sbr.rel (0) target = $region41
    $region40: #{tpu_custom_call.1} parent=1 // pred_region
      _
    $region41: #{tpu_custom_call.1} parent=1 // pred_fallthru
      _
    // Predicated region
    $region42: #{tpu_custom_call.1} parent=1 // pred_check
      _
    $region43: #{tpu_custom_call.1} parent=1 // pred_check_branch
      %65 = sbr.rel (0) target = $region45
    $region44: #{tpu_custom_call.1} parent=1 // pred_region
      %67 = vsyncadd [#allocation7], 0
      %s69 = sshll.u32 %s10, 4
      %s70 = int_to_ptr.hbm [resolvable:$true] %s69
      %s71 = sshll.u32 [#allocation8], 4
      %s72 = int_to_ptr.vmem [resolvable:$true] %s71
      %74 = dma.hbm_to_vmem [thread:$0]  %s70, 16, %s72, [#allocation7]
    $region45: #{tpu_custom_call.1} parent=1 // pred_fallthru
      _
    // Predicated region
    $region46: #{tpu_custom_call.1} parent=1 // pred_check
      _
    $region47: #{tpu_custom_call.1} parent=1 // pred_check_branch
      %76 = sbr.rel (0) target = $region49
    $region48: #{tpu_custom_call.1} parent=1 // pred_region
      _
    $region49: #{tpu_custom_call.1} parent=1 // pred_fallthru
      _
    // Predicated region
    $region50: #{tpu_custom_call.1} parent=1 // pred_check
      _
    $region51: #{tpu_custom_call.1} parent=1 // pred_check_branch
      %78 = sbr.rel (0) target = $region53
    $region52: #{tpu_custom_call.1} parent=1 // pred_region
      _
    $region53: #{tpu_custom_call.1} parent=1 // pred_fallthru
      _
    // Predicated region
    $region54: #{tpu_custom_call.1} parent=1 // pred_check
      _
    $region55: #{tpu_custom_call.1} parent=1 // pred_check_branch
      %80 = sbr.rel (0) target = $region57
    $region56: #{tpu_custom_call.1} parent=1 // pred_region
      %82 = dma.done [#allocation5], 256
    $region57: #{tpu_custom_call.1} parent=1 // pred_fallthru
      _
    // Predicated region
    $region58: #{tpu_custom_call.1} parent=1 // pred_check
      _
    $region59: #{tpu_custom_call.1} parent=1 // pred_check_branch
      %84 = sbr.rel (0) target = $region61
    $region60: #{tpu_custom_call.1} parent=1 // pred_region
      %86 = dma.done [#allocation7], 96
    $region61: #{tpu_custom_call.1} parent=1 // pred_fallthru
      _
    // Predicated region
    $region62: #{tpu_custom_call.1} parent=1 // pred_check
      _
    $region63: #{tpu_custom_call.1} parent=1 // pred_check_branch
      %88 = sbr.rel (0) target = $region65
    $region64: #{tpu_custom_call.1} parent=1 // pred_region
      %90 = dma.done [#allocation7], 16
    $region65: #{tpu_custom_call.1} parent=1 // pred_fallthru
      _
    %v91 = vld [vmem:[#allocation4] sm:$0xff]
    %v92 = vld [vmem:[#allocation4 + $0x8] sm:$0xff]
    %v93 = vld [vmem:[%s1] sm:$0xff]
    %v94 = vld [vmem:[%s1 + $0x8] sm:$0xff]
    %v95 = vld [vmem:[%s1 + $0x10] sm:$0xff]
    %v96 = vld [vmem:[%s1 + $0x18] sm:$0xff]
    %v97 = vld [vmem:[%s2] sm:$0x1]
    %v99 = vperm.slane %v97, 0
    %vm101 = vcmask 261120
    %v103 = vsel %vm101, %v91, 0
    %v106 = vsel %vm101, %v92, 0
    %108 = vmatpush.msra.mxu0 0.0
    %109 = vmatpush.msra.mxu0 0.0
    %110 = vmatpush.msra.mxu0 0.0
    %111 = vmatpush.msra.mxu0 0.0
    %112 = vmatpush.msra.mxu0 0.0
    %113 = vmatpush.msra.mxu0 0.0
    %114 = vmatpush.msra.mxu0 0.0
    %115 = vmatpush.msra.mxu0 0.0
    %116 = vmatpush.msra.mxu0 0.0
    %117 = vmatpush.msra.mxu0 0.0
    %118 = vmatpush.msra.mxu0 0.0
    %119 = vmatpush.msra.mxu0 0.0
    %120 = vmatpush.msra.mxu0 %v96
    %121 = vmatpush.msra.mxu0 %v95
    %122 = vmatpush.msra.mxu0 %v94
    %123 = vmatpush.msra.mxu0 %v93
    %124 = vmatmul.f32.gmra.mxu0 %v103
    %v125 = vpop.f32.mrf.mxu0
    %v126 = vadd.f32 %v99, %v125
    %127 = vmatmul.f32.gmra.mxu0 %v106
    %v128 = vpop.f32.mrf.mxu0
    %v129 = vadd.f32 %v99, %v128
    %130 = vdwg.mxu0
    %v133 = vrot.slane %v126, 2
    %v134 = vrot.slane %v126, 4
    %v135 = vrot.slane %v126, 6
    %v136 = vrot.slane %v129, 2
    %v137 = vrot.slane %v129, 4
    %v138 = vrot.slane %v129, 6
    %s145 = scalar_lea.vmem %s1, 32
    %v146 = vld [vmem:[%s145] sm:$0xff]
    %v147 = vld [vmem:[%s145 + $0x8] sm:$0xff]
    %v148 = vld [vmem:[%s145 + $0x10] sm:$0xff]
    %v149 = vld [vmem:[%s145 + $0x18] sm:$0xff]
    %s150 = scalar_lea.vmem %s2, 1
    %v151 = vld [vmem:[%s150] sm:$0x1]
    %v153 = vperm.slane %v151, 0
    %155 = vmatpush.msra.mxu0 0.0
    %156 = vmatpush.msra.mxu0 0.0
    %157 = vmatpush.msra.mxu0 0.0
    %158 = vmatpush.msra.mxu0 0.0
    %159 = vmatpush.msra.mxu0 0.0
    %160 = vmatpush.msra.mxu0 0.0
    %161 = vmatpush.msra.mxu0 0.0
    %162 = vmatpush.msra.mxu0 0.0
    %163 = vmatpush.msra.mxu0 0.0
    %164 = vmatpush.msra.mxu0 0.0
    %165 = vmatpush.msra.mxu0 0.0
    %166 = vmatpush.msra.mxu0 0.0
    %167 = vmatpush.msra.mxu0 %v149
    %168 = vmatpush.msra.mxu0 %v148
    %169 = vmatpush.msra.mxu0 %v147
    %170 = vmatpush.msra.mxu0 %v146
    %171 = vmatmul.f32.gmra.mxu0 %v103
    %v172 = vpop.f32.mrf.mxu0
    %v173 = vadd.f32 %v153, %v172
    %174 = vmatmul.f32.gmra.mxu0 %v106
    %v175 = vpop.f32.mrf.mxu0
    %v176 = vadd.f32 %v153, %v175
    %177 = vdwg.mxu0
    %v180 = vrot.slane %v173, 2
    %v181 = vrot.slane %v173, 4
    %v182 = vrot.slane %v173, 6
    %v183 = vrot.slane %v176, 2
    %v184 = vrot.slane %v176, 4
    %v185 = vrot.slane %v176, 6
    %s192 = scalar_lea.vmem %s1, 64
    %v193 = vld [vmem:[%s192] sm:$0xff]
    %v194 = vld [vmem:[%s192 + $0x8] sm:$0xff]
    %v195 = vld [vmem:[%s192 + $0x10] sm:$0xff]
    %v196 = vld [vmem:[%s192 + $0x18] sm:$0xff]
    %s197 = scalar_lea.vmem %s2, 2
    %v198 = vld [vmem:[%s197] sm:$0x1]
    %v200 = vperm.slane %v198, 0
    %202 = vmatpush.msra.mxu0 0.0
    %203 = vmatpush.msra.mxu0 0.0
    %204 = vmatpush.msra.mxu0 0.0
    %205 = vmatpush.msra.mxu0 0.0
    %206 = vmatpush.msra.mxu0 0.0
    %207 = vmatpush.msra.mxu0 0.0
    %208 = vmatpush.msra.mxu0 0.0
    %209 = vmatpush.msra.mxu0 0.0
    %210 = vmatpush.msra.mxu0 0.0
    %211 = vmatpush.msra.mxu0 0.0
    %212 = vmatpush.msra.mxu0 0.0
    %213 = vmatpush.msra.mxu0 0.0
    %214 = vmatpush.msra.mxu0 %v196
    %215 = vmatpush.msra.mxu0 %v195
    %216 = vmatpush.msra.mxu0 %v194
    %217 = vmatpush.msra.mxu0 %v193
    %218 = vmatmul.f32.gmra.mxu0 %v103
    %v219 = vpop.f32.mrf.mxu0
    %v220 = vadd.f32 %v200, %v219
    %221 = vmatmul.f32.gmra.mxu0 %v106
    %v222 = vpop.f32.mrf.mxu0
    %v223 = vadd.f32 %v200, %v222
    %224 = vdwg.mxu0
    %v227 = vrot.slane %v220, 2
    %v228 = vrot.slane %v220, 4
    %v229 = vrot.slane %v220, 6
    %v230 = vrot.slane %v223, 2
    %v231 = vrot.slane %v223, 4
    %v232 = vrot.slane %v223, 6
    %s239 = scalar_lea.vmem %s1, 96
    %v240 = vld [vmem:[%s239] sm:$0xff]
    %v241 = vld [vmem:[%s239 + $0x8] sm:$0xff]
    %v242 = vld [vmem:[%s239 + $0x10] sm:$0xff]
    %v243 = vld [vmem:[%s239 + $0x18] sm:$0xff]
    %s244 = scalar_lea.vmem %s2, 3
    %v245 = vld [vmem:[%s244] sm:$0x1]
    %v247 = vperm.slane %v245, 0
    %249 = vmatpush.msra.mxu0 0.0
    %250 = vmatpush.msra.mxu0 0.0
    %251 = vmatpush.msra.mxu0 0.0
    %252 = vmatpush.msra.mxu0 0.0
    %253 = vmatpush.msra.mxu0 0.0
    %254 = vmatpush.msra.mxu0 0.0
    %255 = vmatpush.msra.mxu0 0.0
    %256 = vmatpush.msra.mxu0 0.0
    %257 = vmatpush.msra.mxu0 0.0
    %258 = vmatpush.msra.mxu0 0.0
    %259 = vmatpush.msra.mxu0 0.0
    %260 = vmatpush.msra.mxu0 0.0
    %261 = vmatpush.msra.mxu0 %v243
    %262 = vmatpush.msra.mxu0 %v242
    %263 = vmatpush.msra.mxu0 %v241
    %264 = vmatpush.msra.mxu0 %v240
    %265 = vmatmul.f32.gmra.mxu0 %v103
    %v266 = vpop.f32.mrf.mxu0
    %v267 = vadd.f32 %v247, %v266
    %268 = vmatmul.f32.gmra.mxu0 %v106
    %v269 = vpop.f32.mrf.mxu0
    %v270 = vadd.f32 %v247, %v269
    %271 = vdwg.mxu0
    %v274 = vrot.slane %v267, 2
    %v275 = vrot.slane %v267, 4
    %v276 = vrot.slane %v267, 6
    %v277 = vrot.slane %v270, 2
    %v278 = vrot.slane %v270, 4
    %v279 = vrot.slane %v270, 6
    %s280 = scalar_lea.vmem %s1, 128
    %v281 = vld [vmem:[%s280] sm:$0xff]
    %v282 = vld [vmem:[%s280 + $0x8] sm:$0xff]
    %v283 = vld [vmem:[%s280 + $0x10] sm:$0xff]
    %v284 = vld [vmem:[%s280 + $0x18] sm:$0xff]
    %s285 = scalar_lea.vmem %s2, 4
    %v286 = vld [vmem:[%s285] sm:$0x1]
    %v288 = vperm.slane %v286, 0
    %290 = vmatpush.msra.mxu0 0.0
    %291 = vmatpush.msra.mxu0 0.0
    %292 = vmatpush.msra.mxu0 0.0
    %293 = vmatpush.msra.mxu0 0.0
    %294 = vmatpush.msra.mxu0 0.0
    %295 = vmatpush.msra.mxu0 0.0
    %296 = vmatpush.msra.mxu0 0.0
    %297 = vmatpush.msra.mxu0 0.0
    %298 = vmatpush.msra.mxu0 0.0
    %299 = vmatpush.msra.mxu0 0.0
    %300 = vmatpush.msra.mxu0 0.0
    %301 = vmatpush.msra.mxu0 0.0
    %302 = vmatpush.msra.mxu0 %v284
    %303 = vmatpush.msra.mxu0 %v283
    %304 = vmatpush.msra.mxu0 %v282
    %305 = vmatpush.msra.mxu0 %v281
    %306 = vmatmul.f32.gmra.mxu0 %v103
    %v307 = vpop.f32.mrf.mxu0
    %v308 = vadd.f32 %v288, %v307
    %309 = vmatmul.f32.gmra.mxu0 %v106
    %v310 = vpop.f32.mrf.mxu0
    %v311 = vadd.f32 %v288, %v310
    %312 = vdwg.mxu0
    %v315 = vrot.slane %v308, 2
    %v316 = vrot.slane %v308, 4
    %v317 = vrot.slane %v308, 6
    %v318 = vrot.slane %v311, 2
    %v319 = vrot.slane %v311, 4
    %v320 = vrot.slane %v311, 6
    %s321 = scalar_lea.vmem %s1, 160
    %v322 = vld [vmem:[%s321] sm:$0xff]
    %v323 = vld [vmem:[%s321 + $0x8] sm:$0xff]
    %v324 = vld [vmem:[%s321 + $0x10] sm:$0xff]
    %v325 = vld [vmem:[%s321 + $0x18] sm:$0xff]
    %s326 = scalar_lea.vmem %s2, 5
    %v327 = vld [vmem:[%s326] sm:$0x1]
    %v329 = vperm.slane %v327, 0
    %331 = vmatpush.msra.mxu0 0.0
    %332 = vmatpush.msra.mxu0 0.0
    %333 = vmatpush.msra.mxu0 0.0
    %334 = vmatpush.msra.mxu0 0.0
    %335 = vmatpush.msra.mxu0 0.0
    %336 = vmatpush.msra.mxu0 0.0
    %337 = vmatpush.msra.mxu0 0.0
    %338 = vmatpush.msra.mxu0 0.0
    %339 = vmatpush.msra.mxu0 0.0
    %340 = vmatpush.msra.mxu0 0.0
    %341 = vmatpush.msra.mxu0 0.0
    %342 = vmatpush.msra.mxu0 0.0
    %343 = vmatpush.msra.mxu0 %v325
    %344 = vmatpush.msra.mxu0 %v324
    %345 = vmatpush.msra.mxu0 %v323
    %346 = vmatpush.msra.mxu0 %v322
    %347 = vmatmul.f32.gmra.mxu0 %v103
    %v348 = vpop.f32.mrf.mxu0
    %v349 = vadd.f32 %v329, %v348
    %350 = vmatmul.f32.gmra.mxu0 %v106
    %v351 = vpop.f32.mrf.mxu0
    %v352 = vadd.f32 %v329, %v351
    %353 = vdwg.mxu0
    %v356 = vrot.slane %v349, 2
    %v357 = vrot.slane %v349, 4
    %v358 = vrot.slane %v349, 6
    %v359 = vrot.slane %v352, 2
    %v360 = vrot.slane %v352, 4
    %v361 = vrot.slane %v352, 6
    %362 = vst [vmem:[#allocation1] ss:$4 sm:$0xff] %v279
    %v363 = vld.sshfl [vmem:[#allocation1] sm:$0xff pattern:$0x73625140]
    %364 = vrot.lane.b32.xlu0 %v363, 32
    %v365 = vpop.permute.xlu0 %364
    %v367 = vsel %vm101, %v126, %v365
    %368 = vst [vmem:[#allocation1] ss:$4 sm:$0xff] %v278
    %v369 = vld.sshfl [vmem:[#allocation1] sm:$0xff pattern:$0x73625140]
    %370 = vrot.lane.b32.xlu0 %v369, 32
    %v371 = vpop.permute.xlu0 %370
    %v373 = vsel %vm101, %v133, %v371
    %374 = vst [vmem:[#allocation1] ss:$4 sm:$0xff] %v277
    %v375 = vld.sshfl [vmem:[#allocation1] sm:$0xff pattern:$0x73625140]
    %376 = vrot.lane.b32.xlu0 %v375, 32
    %v377 = vpop.permute.xlu0 %376
    %v379 = vsel %vm101, %v134, %v377
    %380 = vst [vmem:[#allocation1] ss:$4 sm:$0xff] %v270
    %v381 = vld.sshfl [vmem:[#allocation1] sm:$0xff pattern:$0x73625140]
    %382 = vrot.lane.b32.xlu0 %v381, 32
    %v383 = vpop.permute.xlu0 %382
    %v385 = vsel %vm101, %v135, %v383
    %386 = vst [vmem:[#allocation1] ss:$4 sm:$0xff] %v276
    %v387 = vld.sshfl [vmem:[#allocation1] sm:$0xff pattern:$0x73625140]
    %388 = vrot.lane.b32.xlu0 %v387, 32
    %v389 = vpop.permute.xlu0 %388
    %v391 = vsel %vm101, %v129, %v389
    %392 = vst [vmem:[#allocation1] ss:$4 sm:$0xff] %v275
    %v393 = vld.sshfl [vmem:[#allocation1] sm:$0xff pattern:$0x73625140]
    %394 = vrot.lane.b32.xlu0 %v393, 32
    %v395 = vpop.permute.xlu0 %394
    %v397 = vsel %vm101, %v136, %v395
    %398 = vst [vmem:[#allocation1] ss:$4 sm:$0xff] %v274
    %v399 = vld.sshfl [vmem:[#allocation1] sm:$0xff pattern:$0x73625140]
    %400 = vrot.lane.b32.xlu0 %v399, 32
    %v401 = vpop.permute.xlu0 %400
    %v403 = vsel %vm101, %v137, %v401
    %404 = vst [vmem:[#allocation1] ss:$4 sm:$0xff] %v267
    %v405 = vld.sshfl [vmem:[#allocation1] sm:$0xff pattern:$0x73625140]
    %406 = vrot.lane.b32.xlu0 %v405, 32
    %v407 = vpop.permute.xlu0 %406
    %v409 = vsel %vm101, %v138, %v407
    %410 = vst [vmem:[#allocation1] ss:$4 sm:$0xff] %v320
    %v411 = vld.sshfl [vmem:[#allocation1] sm:$0xff pattern:$0x73625140]
    %412 = vrot.lane.b32.xlu0 %v411, 32
    %v413 = vpop.permute.xlu0 %412
    %v415 = vsel %vm101, %v173, %v413
    %416 = vst [vmem:[#allocation1] ss:$4 sm:$0xff] %v319
    %v417 = vld.sshfl [vmem:[#allocation1] sm:$0xff pattern:$0x73625140]
    %418 = vrot.lane.b32.xlu0 %v417, 32
    %v419 = vpop.permute.xlu0 %418
    %v421 = vsel %vm101, %v180, %v419
    %422 = vst [vmem:[#allocation1] ss:$4 sm:$0xff] %v318
    %v423 = vld.sshfl [vmem:[#allocation1] sm:$0xff pattern:$0x73625140]
    %424 = vrot.lane.b32.xlu0 %v423, 32
    %v425 = vpop.permute.xlu0 %424
    %v427 = vsel %vm101, %v181, %v425
    %428 = vst [vmem:[#allocation1] ss:$4 sm:$0xff] %v311
    %v429 = vld.sshfl [vmem:[#allocation1] sm:$0xff pattern:$0x73625140]
    %430 = vrot.lane.b32.xlu0 %v429, 32
    %v431 = vpop.permute.xlu0 %430
    %v433 = vsel %vm101, %v182, %v431
    %434 = vst [vmem:[#allocation1] ss:$4 sm:$0xff] %v317
    %v435 = vld.sshfl [vmem:[#allocation1] sm:$0xff pattern:$0x73625140]
    %436 = vrot.lane.b32.xlu0 %v435, 32
    %v437 = vpop.permute.xlu0 %436
    %v439 = vsel %vm101, %v176, %v437
    %440 = vst [vmem:[#allocation1] ss:$4 sm:$0xff] %v316
    %v441 = vld.sshfl [vmem:[#allocation1] sm:$0xff pattern:$0x73625140]
    %442 = vrot.lane.b32.xlu0 %v441, 32
    %v443 = vpop.permute.xlu0 %442
    %v445 = vsel %vm101, %v183, %v443
    %446 = vst [vmem:[#allocation1] ss:$4 sm:$0xff] %v315
    %v447 = vld.sshfl [vmem:[#allocation1] sm:$0xff pattern:$0x73625140]
    %448 = vrot.lane.b32.xlu0 %v447, 32
    %v449 = vpop.permute.xlu0 %448
    %v451 = vsel %vm101, %v184, %v449
    %452 = vst [vmem:[#allocation1] ss:$4 sm:$0xff] %v308
    %v453 = vld.sshfl [vmem:[#allocation1] sm:$0xff pattern:$0x73625140]
    %454 = vrot.lane.b32.xlu0 %v453, 32
    %v455 = vpop.permute.xlu0 %454
    %v457 = vsel %vm101, %v185, %v455
    %458 = vst [vmem:[#allocation1] ss:$4 sm:$0xff] %v361
    %v459 = vld.sshfl [vmem:[#allocation1] sm:$0xff pattern:$0x73625140]
    %460 = vrot.lane.b32.xlu0 %v459, 32
    %v461 = vpop.permute.xlu0 %460
    %v463 = vsel %vm101, %v220, %v461
    %464 = vst [vmem:[#allocation1] ss:$4 sm:$0xff] %v360
    %v465 = vld.sshfl [vmem:[#allocation1] sm:$0xff pattern:$0x73625140]
    %466 = vrot.lane.b32.xlu0 %v465, 32
    %v467 = vpop.permute.xlu0 %466
    %v469 = vsel %vm101, %v227, %v467
    %470 = vst [vmem:[#allocation1] ss:$4 sm:$0xff] %v359
    %v471 = vld.sshfl [vmem:[#allocation1] sm:$0xff pattern:$0x73625140]
    %472 = vrot.lane.b32.xlu0 %v471, 32
    %v473 = vpop.permute.xlu0 %472
    %v475 = vsel %vm101, %v228, %v473
    %476 = vst [vmem:[#allocation1] ss:$4 sm:$0xff] %v352
    %v477 = vld.sshfl [vmem:[#allocation1] sm:$0xff pattern:$0x73625140]
    %478 = vrot.lane.b32.xlu0 %v477, 32
    %v479 = vpop.permute.xlu0 %478
    %v481 = vsel %vm101, %v229, %v479
    %482 = vst [vmem:[#allocation1] ss:$4 sm:$0xff] %v358
    %v483 = vld.sshfl [vmem:[#allocation1] sm:$0xff pattern:$0x73625140]
    %484 = vrot.lane.b32.xlu0 %v483, 32
    %v485 = vpop.permute.xlu0 %484
    %v487 = vsel %vm101, %v223, %v485
    %488 = vst [vmem:[#allocation1] ss:$4 sm:$0xff] %v357
    %v489 = vld.sshfl [vmem:[#allocation1] sm:$0xff pattern:$0x73625140]
    %490 = vrot.lane.b32.xlu0 %v489, 32
    %v491 = vpop.permute.xlu0 %490
    %v493 = vsel %vm101, %v230, %v491
    %494 = vst [vmem:[#allocation1] ss:$4 sm:$0xff] %v356
    %v495 = vld.sshfl [vmem:[#allocation1] sm:$0xff pattern:$0x73625140]
    %496 = vrot.lane.b32.xlu0 %v495, 32
    %v497 = vpop.permute.xlu0 %496
    %v499 = vsel %vm101, %v231, %v497
    %500 = vst [vmem:[#allocation1] ss:$4 sm:$0xff] %v349
    %v501 = vld.sshfl [vmem:[#allocation1] sm:$0xff pattern:$0x73625140]
    %502 = vrot.lane.b32.xlu0 %v501, 32
    %v503 = vpop.permute.xlu0 %502
    %v505 = vsel %vm101, %v232, %v503
    %v506 = vld [vmem:[%s3] sm:$0xff]
    %v507 = vld [vmem:[%s3 + $0x8] sm:$0xff]
    %v508 = vld [vmem:[%s3 + $0x10] sm:$0xff]
    %v509 = vld [vmem:[%s3 + $0x18] sm:$0xff]
    %v510 = vld [vmem:[%s3 + $0x20] sm:$0xff]
    %v511 = vld [vmem:[%s3 + $0x28] sm:$0xff]
    %v512 = vld [vmem:[%s3 + $0x30] sm:$0xff]
    %v513 = vld [vmem:[%s3 + $0x38] sm:$0xff]
    %s514 = scalar_lea.vmem %s3, 64
    %v515 = vld [vmem:[%s514] sm:$0xff]
    %v516 = vld [vmem:[%s514 + $0x8] sm:$0xff]
    %v517 = vld [vmem:[%s514 + $0x10] sm:$0xff]
    %v518 = vld [vmem:[%s514 + $0x18] sm:$0xff]
    %v519 = vld [vmem:[%s514 + $0x20] sm:$0xff]
    %v520 = vld [vmem:[%s514 + $0x28] sm:$0xff]
    %v521 = vld [vmem:[%s514 + $0x30] sm:$0xff]
    %v522 = vld [vmem:[%s514 + $0x38] sm:$0xff]
    %s523 = scalar_lea.vmem %s3, 128
    %v524 = vld [vmem:[%s523] sm:$0xff]
    %v525 = vld [vmem:[%s523 + $0x8] sm:$0xff]
    %v526 = vld [vmem:[%s523 + $0x10] sm:$0xff]
    %v527 = vld [vmem:[%s523 + $0x18] sm:$0xff]
    %v528 = vld [vmem:[%s523 + $0x20] sm:$0xff]
    %v529 = vld [vmem:[%s523 + $0x28] sm:$0xff]
    %v530 = vld [vmem:[%s523 + $0x30] sm:$0xff]
    %v531 = vld [vmem:[%s523 + $0x38] sm:$0xff]
    %v532 = vld [vmem:[%s4] sm:$0x1]
    %vm533 = vcmask 523264
    %v535 = vsel %vm533, 0.0, 0
    %537 = vmatpush.msra.mxu0 0.0
    %538 = vmatpush.msra.mxu0 0.0
    %539 = vmatpush.msra.mxu0 0.0
    %540 = vmatpush.msra.mxu0 0.0
    %541 = vmatpush.msra.mxu0 0.0
    %542 = vmatpush.msra.mxu0 0.0
    %543 = vmatpush.msra.mxu0 0.0
    %544 = vmatpush.msra.mxu0 0.0
    %545 = vmatpush.msra.mxu0 %v513
    %546 = vmatpush.msra.mxu0 %v512
    %547 = vmatpush.msra.mxu0 %v511
    %548 = vmatpush.msra.mxu0 %v510
    %549 = vmatpush.msra.mxu0 %v509
    %550 = vmatpush.msra.mxu0 %v508
    %551 = vmatpush.msra.mxu0 %v507
    %552 = vmatpush.msra.mxu0 %v506
    %553 = vmatmul.f32.gmra.mxu0 %v535
    %v554 = vpop.f32.mrf.mxu0
    %v555 = vadd.f32 0.0, %v554
    %556 = vdwg.mxu0
    %557 = vmatpush.msra.mxu0 0.0
    %558 = vmatpush.msra.mxu0 0.0
    %559 = vmatpush.msra.mxu0 0.0
    %560 = vmatpush.msra.mxu0 0.0
    %561 = vmatpush.msra.mxu0 0.0
    %562 = vmatpush.msra.mxu0 0.0
    %563 = vmatpush.msra.mxu0 0.0
    %564 = vmatpush.msra.mxu0 0.0
    %565 = vmatpush.msra.mxu0 %v522
    %566 = vmatpush.msra.mxu0 %v521
    %567 = vmatpush.msra.mxu0 %v520
    %568 = vmatpush.msra.mxu0 %v519
    %569 = vmatpush.msra.mxu0 %v518
    %570 = vmatpush.msra.mxu0 %v517
    %571 = vmatpush.msra.mxu0 %v516
    %572 = vmatpush.msra.mxu0 %v515
    %573 = vmatmul.f32.gmra.mxu0 %v535
    %v574 = vpop.f32.mrf.mxu0
    %v575 = vadd.f32 0.0, %v574
    %576 = vdwg.mxu0
    %v577 = vadd.f32 %v367, %v555
    %v578 = vxor.u32 %v577, 2147483648
    %v579 = vmul.f32 %v578, 1.442695
    %v580 = vpow.pop %v579
    %v581 = vadd.f32 %v580, 1.0
    %v582 = vrcp.pop %v581
    %v583 = vmul.f32 %v581, %v582
    %v584 = vsub.f32 1.0, %v583
    %v585 = vmul.f32 %v582, %v584
    %v586 = vadd.f32 %v582, %v585
    %vm587 = vweird.f32 %v581
    %vm588 = vweird.f32 %v582
    %vm589 = vmor %vm587, %vm588
    %v590 = vsel %vm589, %v582, %v586
    %v591 = vand.u32 2147483647, %v581
    %vm592 = vcmp.eq.f32.partialorder %v591, 8.507059e+37
    %v593 = vand.u32 %v581, 2147483648
    %v594 = vor.u32 1.1754944e-38, %v593
    %v595 = vsel %vm592, %v594, %v590
    %v596 = vmul.f32 1.0, %v595
    %v597 = vadd.f32 %v415, %v575
    %v598 = vxor.u32 %v597, 2147483648
    %v599 = vmul.f32 %v598, 1.442695
    %v600 = vpow.pop %v599
    %v601 = vadd.f32 %v600, 1.0
    %v602 = vrcp.pop %v601
    %v603 = vmul.f32 %v601, %v602
    %v604 = vsub.f32 1.0, %v603
    %v605 = vmul.f32 %v602, %v604
    %v606 = vadd.f32 %v602, %v605
    %vm607 = vweird.f32 %v601
    %vm608 = vweird.f32 %v602
    %vm609 = vmor %vm607, %vm608
    %v610 = vsel %vm609, %v602, %v606
    %v611 = vand.u32 2147483647, %v601
    %vm612 = vcmp.eq.f32.partialorder %v611, 8.507059e+37
    %v613 = vand.u32 %v601, 2147483648
    %v614 = vor.u32 1.1754944e-38, %v613
    %v615 = vsel %vm612, %v614, %v610
    %v616 = vmul.f32 1.0, %v615
    %v618 = vperm.slane %v532, 0
    %620 = vmatpush.msra.mxu0 0.0
    %621 = vmatpush.msra.mxu0 0.0
    %622 = vmatpush.msra.mxu0 0.0
    %623 = vmatpush.msra.mxu0 0.0
    %624 = vmatpush.msra.mxu0 0.0
    %625 = vmatpush.msra.mxu0 0.0
    %626 = vmatpush.msra.mxu0 0.0
    %627 = vmatpush.msra.mxu0 0.0
    %628 = vmatpush.msra.mxu0 %v531
    %629 = vmatpush.msra.mxu0 %v530
    %630 = vmatpush.msra.mxu0 %v529
    %631 = vmatpush.msra.mxu0 %v528
    %632 = vmatpush.msra.mxu0 %v527
    %633 = vmatpush.msra.mxu0 %v526
    %634 = vmatpush.msra.mxu0 %v525
    %635 = vmatpush.msra.mxu0 %v524
    %636 = vmatmul.f32.gmra.mxu0 %v535
    %v637 = vpop.f32.mrf.mxu0
    %v638 = vadd.f32 %v618, %v637
    %639 = vdwg.mxu0
    %v640 = vmul.f32 %v596, %v638
    %v641 = vadd.f32 %v463, %v640
    %v642 = vtanh.pop %v641
    %v643 = vsub.f32 1.0, %v616
    %v644 = vmul.f32 %v643, %v642
    %v645 = vmul.f32 %v616, 0.0
    %v646 = vadd.f32 %v644, %v645
    %vm647 = vcmask 254976
    %648 = vst.msk [vmem:[#allocation2] sm:$0x3] %vm647, %v646
    %s649 = scalar_lea.vmem [#allocation2], 14
    %vm650 = vcmask 517376
    %651 = vst.msk [vmem:[%s649] sm:$0x3] %vm650, %v646
    %v653 = vsel %vm533, %v646, 0
    %655 = vmatpush.msra.mxu0 0.0
    %656 = vmatpush.msra.mxu0 0.0
    %657 = vmatpush.msra.mxu0 0.0
    %658 = vmatpush.msra.mxu0 0.0
    %659 = vmatpush.msra.mxu0 0.0
    %660 = vmatpush.msra.mxu0 0.0
    %661 = vmatpush.msra.mxu0 0.0
    %662 = vmatpush.msra.mxu0 0.0
    %663 = vmatpush.msra.mxu0 %v513
    %664 = vmatpush.msra.mxu0 %v512
    %665 = vmatpush.msra.mxu0 %v511
    %666 = vmatpush.msra.mxu0 %v510
    %667 = vmatpush.msra.mxu0 %v509
    %668 = vmatpush.msra.mxu0 %v508
    %669 = vmatpush.msra.mxu0 %v507
    %670 = vmatpush.msra.mxu0 %v506
    %671 = vmatmul.f32.gmra.mxu0 %v653
    %v672 = vpop.f32.mrf.mxu0
    %v673 = vadd.f32 0.0, %v672
    %674 = vdwg.mxu0
    %675 = vmatpush.msra.mxu0 0.0
    %676 = vmatpush.msra.mxu0 0.0
    %677 = vmatpush.msra.mxu0 0.0
    %678 = vmatpush.msra.mxu0 0.0
    %679 = vmatpush.msra.mxu0 0.0
    %680 = vmatpush.msra.mxu0 0.0
    %681 = vmatpush.msra.mxu0 0.0
    %682 = vmatpush.msra.mxu0 0.0
    %683 = vmatpush.msra.mxu0 %v522
    %684 = vmatpush.msra.mxu0 %v521
    %685 = vmatpush.msra.mxu0 %v520
    %686 = vmatpush.msra.mxu0 %v519
    %687 = vmatpush.msra.mxu0 %v518
    %688 = vmatpush.msra.mxu0 %v517
    %689 = vmatpush.msra.mxu0 %v516
    %690 = vmatpush.msra.mxu0 %v515
    %691 = vmatmul.f32.gmra.mxu0 %v653
    %v692 = vpop.f32.mrf.mxu0
    %v693 = vadd.f32 0.0, %v692
    %694 = vdwg.mxu0
    %v695 = vadd.f32 %v373, %v673
    %v696 = vxor.u32 %v695, 2147483648
    %v697 = vmul.f32 %v696, 1.442695
    %v698 = vpow.pop %v697
    %v699 = vadd.f32 %v698, 1.0
    %v700 = vrcp.pop %v699
    %v701 = vmul.f32 %v699, %v700
    %v702 = vsub.f32 1.0, %v701
    %v703 = vmul.f32 %v700, %v702
    %v704 = vadd.f32 %v700, %v703
    %vm705 = vweird.f32 %v699
    %vm706 = vweird.f32 %v700
    %vm707 = vmor %vm705, %vm706
    %v708 = vsel %vm707, %v700, %v704
    %v709 = vand.u32 2147483647, %v699
    %vm710 = vcmp.eq.f32.partialorder %v709, 8.507059e+37
    %v711 = vand.u32 %v699, 2147483648
    %v712 = vor.u32 1.1754944e-38, %v711
    %v713 = vsel %vm710, %v712, %v708
    %v714 = vmul.f32 1.0, %v713
    %v715 = vadd.f32 %v421, %v693
    %v716 = vxor.u32 %v715, 2147483648
    %v717 = vmul.f32 %v716, 1.442695
    %v718 = vpow.pop %v717
    %v719 = vadd.f32 %v718, 1.0
    %v720 = vrcp.pop %v719
    %v721 = vmul.f32 %v719, %v720
    %v722 = vsub.f32 1.0, %v721
    %v723 = vmul.f32 %v720, %v722
    %v724 = vadd.f32 %v720, %v723
    %vm725 = vweird.f32 %v719
    %vm726 = vweird.f32 %v720
    %vm727 = vmor %vm725, %vm726
    %v728 = vsel %vm727, %v720, %v724
    %v729 = vand.u32 2147483647, %v719
    %vm730 = vcmp.eq.f32.partialorder %v729, 8.507059e+37
    %v731 = vand.u32 %v719, 2147483648
    %v732 = vor.u32 1.1754944e-38, %v731
    %v733 = vsel %vm730, %v732, %v728
    %v734 = vmul.f32 1.0, %v733
    %735 = vmatpush.msra.mxu0 0.0
    %736 = vmatpush.msra.mxu0 0.0
    %737 = vmatpush.msra.mxu0 0.0
    %738 = vmatpush.msra.mxu0 0.0
    %739 = vmatpush.msra.mxu0 0.0
    %740 = vmatpush.msra.mxu0 0.0
    %741 = vmatpush.msra.mxu0 0.0
    %742 = vmatpush.msra.mxu0 0.0
    %743 = vmatpush.msra.mxu0 %v531
    %744 = vmatpush.msra.mxu0 %v530
    %745 = vmatpush.msra.mxu0 %v529
    %746 = vmatpush.msra.mxu0 %v528
    %747 = vmatpush.msra.mxu0 %v527
    %748 = vmatpush.msra.mxu0 %v526
    %749 = vmatpush.msra.mxu0 %v525
    %750 = vmatpush.msra.mxu0 %v524
    %751 = vmatmul.f32.gmra.mxu0 %v653
    %v752 = vpop.f32.mrf.mxu0
    %v753 = vadd.f32 %v618, %v752
    %754 = vdwg.mxu0
    %v755 = vmul.f32 %v714, %v753
    %v756 = vadd.f32 %v469, %v755
    %v757 = vtanh.pop %v756
    %v758 = vsub.f32 1.0, %v734
    %v759 = vmul.f32 %v758, %v757
    %v760 = vmul.f32 %v734, %v646
    %v761 = vadd.f32 %v759, %v760
    %s762 = scalar_lea.vmem [#allocation2], 2
    %763 = vst.msk [vmem:[%s762] sm:$0x3] %vm647, %v761
    %s764 = scalar_lea.vmem [#allocation2], 12
    %765 = vst.msk [vmem:[%s764] sm:$0x3] %vm650, %v761
    %v767 = vsel %vm533, %v761, 0
    %769 = vmatpush.msra.mxu0 0.0
    %770 = vmatpush.msra.mxu0 0.0
    %771 = vmatpush.msra.mxu0 0.0
    %772 = vmatpush.msra.mxu0 0.0
    %773 = vmatpush.msra.mxu0 0.0
    %774 = vmatpush.msra.mxu0 0.0
    %775 = vmatpush.msra.mxu0 0.0
    %776 = vmatpush.msra.mxu0 0.0
    %777 = vmatpush.msra.mxu0 %v513
    %778 = vmatpush.msra.mxu0 %v512
    %779 = vmatpush.msra.mxu0 %v511
    %780 = vmatpush.msra.mxu0 %v510
    %781 = vmatpush.msra.mxu0 %v509
    %782 = vmatpush.msra.mxu0 %v508
    %783 = vmatpush.msra.mxu0 %v507
    %784 = vmatpush.msra.mxu0 %v506
    %785 = vmatmul.f32.gmra.mxu0 %v767
    %v786 = vpop.f32.mrf.mxu0
    %v787 = vadd.f32 0.0, %v786
    %788 = vdwg.mxu0
    %789 = vmatpush.msra.mxu0 0.0
    %790 = vmatpush.msra.mxu0 0.0
    %791 = vmatpush.msra.mxu0 0.0
    %792 = vmatpush.msra.mxu0 0.0
    %793 = vmatpush.msra.mxu0 0.0
    %794 = vmatpush.msra.mxu0 0.0
    %795 = vmatpush.msra.mxu0 0.0
    %796 = vmatpush.msra.mxu0 0.0
    %797 = vmatpush.msra.mxu0 %v522
    %798 = vmatpush.msra.mxu0 %v521
    %799 = vmatpush.msra.mxu0 %v520
    %800 = vmatpush.msra.mxu0 %v519
    %801 = vmatpush.msra.mxu0 %v518
    %802 = vmatpush.msra.mxu0 %v517
    %803 = vmatpush.msra.mxu0 %v516
    %804 = vmatpush.msra.mxu0 %v515
    %805 = vmatmul.f32.gmra.mxu0 %v767
    %v806 = vpop.f32.mrf.mxu0
    %v807 = vadd.f32 0.0, %v806
    %808 = vdwg.mxu0
    %v809 = vadd.f32 %v379, %v787
    %v810 = vxor.u32 %v809, 2147483648
    %v811 = vmul.f32 %v810, 1.442695
    %v812 = vpow.pop %v811
    %v813 = vadd.f32 %v812, 1.0
    %v814 = vrcp.pop %v813
    %v815 = vmul.f32 %v813, %v814
    %v816 = vsub.f32 1.0, %v815
    %v817 = vmul.f32 %v814, %v816
    %v818 = vadd.f32 %v814, %v817
    %vm819 = vweird.f32 %v813
    %vm820 = vweird.f32 %v814
    %vm821 = vmor %vm819, %vm820
    %v822 = vsel %vm821, %v814, %v818
    %v823 = vand.u32 2147483647, %v813
    %vm824 = vcmp.eq.f32.partialorder %v823, 8.507059e+37
    %v825 = vand.u32 %v813, 2147483648
    %v826 = vor.u32 1.1754944e-38, %v825
    %v827 = vsel %vm824, %v826, %v822
    %v828 = vmul.f32 1.0, %v827
    %v829 = vadd.f32 %v427, %v807
    %v830 = vxor.u32 %v829, 2147483648
    %v831 = vmul.f32 %v830, 1.442695
    %v832 = vpow.pop %v831
    %v833 = vadd.f32 %v832, 1.0
    %v834 = vrcp.pop %v833
    %v835 = vmul.f32 %v833, %v834
    %v836 = vsub.f32 1.0, %v835
    %v837 = vmul.f32 %v834, %v836
    %v838 = vadd.f32 %v834, %v837
    %vm839 = vweird.f32 %v833
    %vm840 = vweird.f32 %v834
    %vm841 = vmor %vm839, %vm840
    %v842 = vsel %vm841, %v834, %v838
    %v843 = vand.u32 2147483647, %v833
    %vm844 = vcmp.eq.f32.partialorder %v843, 8.507059e+37
    %v845 = vand.u32 %v833, 2147483648
    %v846 = vor.u32 1.1754944e-38, %v845
    %v847 = vsel %vm844, %v846, %v842
    %v848 = vmul.f32 1.0, %v847
    %849 = vmatpush.msra.mxu0 0.0
    %850 = vmatpush.msra.mxu0 0.0
    %851 = vmatpush.msra.mxu0 0.0
    %852 = vmatpush.msra.mxu0 0.0
    %853 = vmatpush.msra.mxu0 0.0
    %854 = vmatpush.msra.mxu0 0.0
    %855 = vmatpush.msra.mxu0 0.0
    %856 = vmatpush.msra.mxu0 0.0
    %857 = vmatpush.msra.mxu0 %v531
    %858 = vmatpush.msra.mxu0 %v530
    %859 = vmatpush.msra.mxu0 %v529
    %860 = vmatpush.msra.mxu0 %v528
    %861 = vmatpush.msra.mxu0 %v527
    %862 = vmatpush.msra.mxu0 %v526
    %863 = vmatpush.msra.mxu0 %v525
    %864 = vmatpush.msra.mxu0 %v524
    %865 = vmatmul.f32.gmra.mxu0 %v767
    %v866 = vpop.f32.mrf.mxu0
    %v867 = vadd.f32 %v618, %v866
    %868 = vdwg.mxu0
    %v869 = vmul.f32 %v828, %v867
    %v870 = vadd.f32 %v475, %v869
    %v871 = vtanh.pop %v870
    %v872 = vsub.f32 1.0, %v848
    %v873 = vmul.f32 %v872, %v871
    %v874 = vmul.f32 %v848, %v761
    %v875 = vadd.f32 %v873, %v874
    %s876 = scalar_lea.vmem [#allocation2], 4
    %877 = vst.msk [vmem:[%s876] sm:$0x3] %vm647, %v875
    %s878 = scalar_lea.vmem [#allocation2], 10
    %879 = vst.msk [vmem:[%s878] sm:$0x3] %vm650, %v875
    %v881 = vsel %vm533, %v875, 0
    %883 = vmatpush.msra.mxu0 0.0
    %884 = vmatpush.msra.mxu0 0.0
    %885 = vmatpush.msra.mxu0 0.0
    %886 = vmatpush.msra.mxu0 0.0
    %887 = vmatpush.msra.mxu0 0.0
    %888 = vmatpush.msra.mxu0 0.0
    %889 = vmatpush.msra.mxu0 0.0
    %890 = vmatpush.msra.mxu0 0.0
    %891 = vmatpush.msra.mxu0 %v513
    %892 = vmatpush.msra.mxu0 %v512
    %893 = vmatpush.msra.mxu0 %v511
    %894 = vmatpush.msra.mxu0 %v510
    %895 = vmatpush.msra.mxu0 %v509
    %896 = vmatpush.msra.mxu0 %v508
    %897 = vmatpush.msra.mxu0 %v507
    %898 = vmatpush.msra.mxu0 %v506
    %899 = vmatmul.f32.gmra.mxu0 %v881
    %v900 = vpop.f32.mrf.mxu0
    %v901 = vadd.f32 0.0, %v900
    %902 = vdwg.mxu0
    %903 = vmatpush.msra.mxu0 0.0
    %904 = vmatpush.msra.mxu0 0.0
    %905 = vmatpush.msra.mxu0 0.0
    %906 = vmatpush.msra.mxu0 0.0
    %907 = vmatpush.msra.mxu0 0.0
    %908 = vmatpush.msra.mxu0 0.0
    %909 = vmatpush.msra.mxu0 0.0
    %910 = vmatpush.msra.mxu0 0.0
    %911 = vmatpush.msra.mxu0 %v522
    %912 = vmatpush.msra.mxu0 %v521
    %913 = vmatpush.msra.mxu0 %v520
    %914 = vmatpush.msra.mxu0 %v519
    %915 = vmatpush.msra.mxu0 %v518
    %916 = vmatpush.msra.mxu0 %v517
    %917 = vmatpush.msra.mxu0 %v516
    %918 = vmatpush.msra.mxu0 %v515
    %919 = vmatmul.f32.gmra.mxu0 %v881
    %v920 = vpop.f32.mrf.mxu0
    %v921 = vadd.f32 0.0, %v920
    %922 = vdwg.mxu0
    %v923 = vadd.f32 %v385, %v901
    %v924 = vxor.u32 %v923, 2147483648
    %v925 = vmul.f32 %v924, 1.442695
    %v926 = vpow.pop %v925
    %v927 = vadd.f32 %v926, 1.0
    %v928 = vrcp.pop %v927
    %v929 = vmul.f32 %v927, %v928
    %v930 = vsub.f32 1.0, %v929
    %v931 = vmul.f32 %v928, %v930
    %v932 = vadd.f32 %v928, %v931
    %vm933 = vweird.f32 %v927
    %vm934 = vweird.f32 %v928
    %vm935 = vmor %vm933, %vm934
    %v936 = vsel %vm935, %v928, %v932
    %v937 = vand.u32 2147483647, %v927
    %vm938 = vcmp.eq.f32.partialorder %v937, 8.507059e+37
    %v939 = vand.u32 %v927, 2147483648
    %v940 = vor.u32 1.1754944e-38, %v939
    %v941 = vsel %vm938, %v940, %v936
    %v942 = vmul.f32 1.0, %v941
    %v943 = vadd.f32 %v433, %v921
    %v944 = vxor.u32 %v943, 2147483648
    %v945 = vmul.f32 %v944, 1.442695
    %v946 = vpow.pop %v945
    %v947 = vadd.f32 %v946, 1.0
    %v948 = vrcp.pop %v947
    %v949 = vmul.f32 %v947, %v948
    %v950 = vsub.f32 1.0, %v949
    %v951 = vmul.f32 %v948, %v950
    %v952 = vadd.f32 %v948, %v951
    %vm953 = vweird.f32 %v947
    %vm954 = vweird.f32 %v948
    %vm955 = vmor %vm953, %vm954
    %v956 = vsel %vm955, %v948, %v952
    %v957 = vand.u32 2147483647, %v947
    %vm958 = vcmp.eq.f32.partialorder %v957, 8.507059e+37
    %v959 = vand.u32 %v947, 2147483648
    %v960 = vor.u32 1.1754944e-38, %v959
    %v961 = vsel %vm958, %v960, %v956
    %v962 = vmul.f32 1.0, %v961
    %963 = vmatpush.msra.mxu0 0.0
    %964 = vmatpush.msra.mxu0 0.0
    %965 = vmatpush.msra.mxu0 0.0
    %966 = vmatpush.msra.mxu0 0.0
    %967 = vmatpush.msra.mxu0 0.0
    %968 = vmatpush.msra.mxu0 0.0
    %969 = vmatpush.msra.mxu0 0.0
    %970 = vmatpush.msra.mxu0 0.0
    %971 = vmatpush.msra.mxu0 %v531
    %972 = vmatpush.msra.mxu0 %v530
    %973 = vmatpush.msra.mxu0 %v529
    %974 = vmatpush.msra.mxu0 %v528
    %975 = vmatpush.msra.mxu0 %v527
    %976 = vmatpush.msra.mxu0 %v526
    %977 = vmatpush.msra.mxu0 %v525
    %978 = vmatpush.msra.mxu0 %v524
    %979 = vmatmul.f32.gmra.mxu0 %v881
    %v980 = vpop.f32.mrf.mxu0
    %v981 = vadd.f32 %v618, %v980
    %982 = vdwg.mxu0
    %v983 = vmul.f32 %v942, %v981
    %v984 = vadd.f32 %v481, %v983
    %v985 = vtanh.pop %v984
    %v986 = vsub.f32 1.0, %v962
    %v987 = vmul.f32 %v986, %v985
    %v988 = vmul.f32 %v962, %v875
    %v989 = vadd.f32 %v987, %v988
    %s990 = scalar_lea.vmem [#allocation2], 6
    %991 = vst.msk [vmem:[%s990] sm:$0x3] %vm647, %v989
    %s992 = scalar_lea.vmem [#allocation2], 8
    %993 = vst.msk [vmem:[%s992] sm:$0x3] %vm650, %v989
    %v995 = vsel %vm533, %v989, 0
    %997 = vmatpush.msra.mxu0 0.0
    %998 = vmatpush.msra.mxu0 0.0
    %999 = vmatpush.msra.mxu0 0.0
    %1000 = vmatpush.msra.mxu0 0.0
    %1001 = vmatpush.msra.mxu0 0.0
    %1002 = vmatpush.msra.mxu0 0.0
    %1003 = vmatpush.msra.mxu0 0.0
    %1004 = vmatpush.msra.mxu0 0.0
    %1005 = vmatpush.msra.mxu0 %v513
    %1006 = vmatpush.msra.mxu0 %v512
    %1007 = vmatpush.msra.mxu0 %v511
    %1008 = vmatpush.msra.mxu0 %v510
    %1009 = vmatpush.msra.mxu0 %v509
    %1010 = vmatpush.msra.mxu0 %v508
    %1011 = vmatpush.msra.mxu0 %v507
    %1012 = vmatpush.msra.mxu0 %v506
    %1013 = vmatmul.f32.gmra.mxu0 %v995
    %v1014 = vpop.f32.mrf.mxu0
    %v1015 = vadd.f32 0.0, %v1014
    %1016 = vdwg.mxu0
    %1017 = vmatpush.msra.mxu0 0.0
    %1018 = vmatpush.msra.mxu0 0.0
    %1019 = vmatpush.msra.mxu0 0.0
    %1020 = vmatpush.msra.mxu0 0.0
    %1021 = vmatpush.msra.mxu0 0.0
    %1022 = vmatpush.msra.mxu0 0.0
    %1023 = vmatpush.msra.mxu0 0.0
    %1024 = vmatpush.msra.mxu0 0.0
    %1025 = vmatpush.msra.mxu0 %v522
    %1026 = vmatpush.msra.mxu0 %v521
    %1027 = vmatpush.msra.mxu0 %v520
    %1028 = vmatpush.msra.mxu0 %v519
    %1029 = vmatpush.msra.mxu0 %v518
    %1030 = vmatpush.msra.mxu0 %v517
    %1031 = vmatpush.msra.mxu0 %v516
    %1032 = vmatpush.msra.mxu0 %v515
    %1033 = vmatmul.f32.gmra.mxu0 %v995
    %v1034 = vpop.f32.mrf.mxu0
    %v1035 = vadd.f32 0.0, %v1034
    %1036 = vdwg.mxu0
    %v1037 = vadd.f32 %v391, %v1015
    %v1038 = vxor.u32 %v1037, 2147483648
    %v1039 = vmul.f32 %v1038, 1.442695
    %v1040 = vpow.pop %v1039
    %v1041 = vadd.f32 %v1040, 1.0
    %v1042 = vrcp.pop %v1041
    %v1043 = vmul.f32 %v1041, %v1042
    %v1044 = vsub.f32 1.0, %v1043
    %v1045 = vmul.f32 %v1042, %v1044
    %v1046 = vadd.f32 %v1042, %v1045
    %vm1047 = vweird.f32 %v1041
    %vm1048 = vweird.f32 %v1042
    %vm1049 = vmor %vm1047, %vm1048
    %v1050 = vsel %vm1049, %v1042, %v1046
    %v1051 = vand.u32 2147483647, %v1041
    %vm1052 = vcmp.eq.f32.partialorder %v1051, 8.507059e+37
    %v1053 = vand.u32 %v1041, 2147483648
    %v1054 = vor.u32 1.1754944e-38, %v1053
    %v1055 = vsel %vm1052, %v1054, %v1050
    %v1056 = vmul.f32 1.0, %v1055
    %v1057 = vadd.f32 %v439, %v1035
    %v1058 = vxor.u32 %v1057, 2147483648
    %v1059 = vmul.f32 %v1058, 1.442695
    %v1060 = vpow.pop %v1059
    %v1061 = vadd.f32 %v1060, 1.0
    %v1062 = vrcp.pop %v1061
    %v1063 = vmul.f32 %v1061, %v1062
    %v1064 = vsub.f32 1.0, %v1063
    %v1065 = vmul.f32 %v1062, %v1064
    %v1066 = vadd.f32 %v1062, %v1065
    %vm1067 = vweird.f32 %v1061
    %vm1068 = vweird.f32 %v1062
    %vm1069 = vmor %vm1067, %vm1068
    %v1070 = vsel %vm1069, %v1062, %v1066
    %v1071 = vand.u32 2147483647, %v1061
    %vm1072 = vcmp.eq.f32.partialorder %v1071, 8.507059e+37
    %v1073 = vand.u32 %v1061, 2147483648
    %v1074 = vor.u32 1.1754944e-38, %v1073
    %v1075 = vsel %vm1072, %v1074, %v1070
    %v1076 = vmul.f32 1.0, %v1075
    %1077 = vmatpush.msra.mxu0 0.0
    %1078 = vmatpush.msra.mxu0 0.0
    %1079 = vmatpush.msra.mxu0 0.0
    %1080 = vmatpush.msra.mxu0 0.0
    %1081 = vmatpush.msra.mxu0 0.0
    %1082 = vmatpush.msra.mxu0 0.0
    %1083 = vmatpush.msra.mxu0 0.0
    %1084 = vmatpush.msra.mxu0 0.0
    %1085 = vmatpush.msra.mxu0 %v531
    %1086 = vmatpush.msra.mxu0 %v530
    %1087 = vmatpush.msra.mxu0 %v529
    %1088 = vmatpush.msra.mxu0 %v528
    %1089 = vmatpush.msra.mxu0 %v527
    %1090 = vmatpush.msra.mxu0 %v526
    %1091 = vmatpush.msra.mxu0 %v525
    %1092 = vmatpush.msra.mxu0 %v524
    %1093 = vmatmul.f32.gmra.mxu0 %v995
    %v1094 = vpop.f32.mrf.mxu0
    %v1095 = vadd.f32 %v618, %v1094
    %1096 = vdwg.mxu0
    %v1097 = vmul.f32 %v1056, %v1095
    %v1098 = vadd.f32 %v487, %v1097
    %v1099 = vtanh.pop %v1098
    %v1100 = vsub.f32 1.0, %v1076
    %v1101 = vmul.f32 %v1100, %v1099
    %v1102 = vmul.f32 %v1076, %v989
    %v1103 = vadd.f32 %v1101, %v1102
    %1104 = vst.msk [vmem:[%s992] sm:$0x3] %vm647, %v1103
    %1105 = vst.msk [vmem:[%s990] sm:$0x3] %vm650, %v1103
    %v1107 = vsel %vm533, %v1103, 0
    %1109 = vmatpush.msra.mxu0 0.0
    %1110 = vmatpush.msra.mxu0 0.0
    %1111 = vmatpush.msra.mxu0 0.0
    %1112 = vmatpush.msra.mxu0 0.0
    %1113 = vmatpush.msra.mxu0 0.0
    %1114 = vmatpush.msra.mxu0 0.0
    %1115 = vmatpush.msra.mxu0 0.0
    %1116 = vmatpush.msra.mxu0 0.0
    %1117 = vmatpush.msra.mxu0 %v513
    %1118 = vmatpush.msra.mxu0 %v512
    %1119 = vmatpush.msra.mxu0 %v511
    %1120 = vmatpush.msra.mxu0 %v510
    %1121 = vmatpush.msra.mxu0 %v509
    %1122 = vmatpush.msra.mxu0 %v508
    %1123 = vmatpush.msra.mxu0 %v507
    %1124 = vmatpush.msra.mxu0 %v506
    %1125 = vmatmul.f32.gmra.mxu0 %v1107
    %v1126 = vpop.f32.mrf.mxu0
    %v1127 = vadd.f32 0.0, %v1126
    %1128 = vdwg.mxu0
    %1129 = vmatpush.msra.mxu0 0.0
    %1130 = vmatpush.msra.mxu0 0.0
    %1131 = vmatpush.msra.mxu0 0.0
    %1132 = vmatpush.msra.mxu0 0.0
    %1133 = vmatpush.msra.mxu0 0.0
    %1134 = vmatpush.msra.mxu0 0.0
    %1135 = vmatpush.msra.mxu0 0.0
    %1136 = vmatpush.msra.mxu0 0.0
    %1137 = vmatpush.msra.mxu0 %v522
    %1138 = vmatpush.msra.mxu0 %v521
    %1139 = vmatpush.msra.mxu0 %v520
    %1140 = vmatpush.msra.mxu0 %v519
    %1141 = vmatpush.msra.mxu0 %v518
    %1142 = vmatpush.msra.mxu0 %v517
    %1143 = vmatpush.msra.mxu0 %v516
    %1144 = vmatpush.msra.mxu0 %v515
    %1145 = vmatmul.f32.gmra.mxu0 %v1107
    %v1146 = vpop.f32.mrf.mxu0
    %v1147 = vadd.f32 0.0, %v1146
    %1148 = vdwg.mxu0
    %v1149 = vadd.f32 %v397, %v1127
    %v1150 = vxor.u32 %v1149, 2147483648
    %v1151 = vmul.f32 %v1150, 1.442695
    %v1152 = vpow.pop %v1151
    %v1153 = vadd.f32 %v1152, 1.0
    %v1154 = vrcp.pop %v1153
    %v1155 = vmul.f32 %v1153, %v1154
    %v1156 = vsub.f32 1.0, %v1155
    %v1157 = vmul.f32 %v1154, %v1156
    %v1158 = vadd.f32 %v1154, %v1157
    %vm1159 = vweird.f32 %v1153
    %vm1160 = vweird.f32 %v1154
    %vm1161 = vmor %vm1159, %vm1160
    %v1162 = vsel %vm1161, %v1154, %v1158
    %v1163 = vand.u32 2147483647, %v1153
    %vm1164 = vcmp.eq.f32.partialorder %v1163, 8.507059e+37
    %v1165 = vand.u32 %v1153, 2147483648
    %v1166 = vor.u32 1.1754944e-38, %v1165
    %v1167 = vsel %vm1164, %v1166, %v1162
    %v1168 = vmul.f32 1.0, %v1167
    %v1169 = vadd.f32 %v445, %v1147
    %v1170 = vxor.u32 %v1169, 2147483648
    %v1171 = vmul.f32 %v1170, 1.442695
    %v1172 = vpow.pop %v1171
    %v1173 = vadd.f32 %v1172, 1.0
    %v1174 = vrcp.pop %v1173
    %v1175 = vmul.f32 %v1173, %v1174
    %v1176 = vsub.f32 1.0, %v1175
    %v1177 = vmul.f32 %v1174, %v1176
    %v1178 = vadd.f32 %v1174, %v1177
    %vm1179 = vweird.f32 %v1173
    %vm1180 = vweird.f32 %v1174
    %vm1181 = vmor %vm1179, %vm1180
    %v1182 = vsel %vm1181, %v1174, %v1178
    %v1183 = vand.u32 2147483647, %v1173
    %vm1184 = vcmp.eq.f32.partialorder %v1183, 8.507059e+37
    %v1185 = vand.u32 %v1173, 2147483648
    %v1186 = vor.u32 1.1754944e-38, %v1185
    %v1187 = vsel %vm1184, %v1186, %v1182
    %v1188 = vmul.f32 1.0, %v1187
    %1189 = vmatpush.msra.mxu0 0.0
    %1190 = vmatpush.msra.mxu0 0.0
    %1191 = vmatpush.msra.mxu0 0.0
    %1192 = vmatpush.msra.mxu0 0.0
    %1193 = vmatpush.msra.mxu0 0.0
    %1194 = vmatpush.msra.mxu0 0.0
    %1195 = vmatpush.msra.mxu0 0.0
    %1196 = vmatpush.msra.mxu0 0.0
    %1197 = vmatpush.msra.mxu0 %v531
    %1198 = vmatpush.msra.mxu0 %v530
    %1199 = vmatpush.msra.mxu0 %v529
    %1200 = vmatpush.msra.mxu0 %v528
    %1201 = vmatpush.msra.mxu0 %v527
    %1202 = vmatpush.msra.mxu0 %v526
    %1203 = vmatpush.msra.mxu0 %v525
    %1204 = vmatpush.msra.mxu0 %v524
    %1205 = vmatmul.f32.gmra.mxu0 %v1107
    %v1206 = vpop.f32.mrf.mxu0
    %v1207 = vadd.f32 %v618, %v1206
    %1208 = vdwg.mxu0
    %v1209 = vmul.f32 %v1168, %v1207
    %v1210 = vadd.f32 %v493, %v1209
    %v1211 = vtanh.pop %v1210
    %v1212 = vsub.f32 1.0, %v1188
    %v1213 = vmul.f32 %v1212, %v1211
    %v1214 = vmul.f32 %v1188, %v1103
    %v1215 = vadd.f32 %v1213, %v1214
    %1216 = vst.msk [vmem:[%s878] sm:$0x3] %vm647, %v1215
    %1217 = vst.msk [vmem:[%s876] sm:$0x3] %vm650, %v1215
    %v1219 = vsel %vm533, %v1215, 0
    %1221 = vmatpush.msra.mxu0 0.0
    %1222 = vmatpush.msra.mxu0 0.0
    %1223 = vmatpush.msra.mxu0 0.0
    %1224 = vmatpush.msra.mxu0 0.0
    %1225 = vmatpush.msra.mxu0 0.0
    %1226 = vmatpush.msra.mxu0 0.0
    %1227 = vmatpush.msra.mxu0 0.0
    %1228 = vmatpush.msra.mxu0 0.0
    %1229 = vmatpush.msra.mxu0 %v513
    %1230 = vmatpush.msra.mxu0 %v512
    %1231 = vmatpush.msra.mxu0 %v511
    %1232 = vmatpush.msra.mxu0 %v510
    %1233 = vmatpush.msra.mxu0 %v509
    %1234 = vmatpush.msra.mxu0 %v508
    %1235 = vmatpush.msra.mxu0 %v507
    %1236 = vmatpush.msra.mxu0 %v506
    %1237 = vmatmul.f32.gmra.mxu0 %v1219
    %v1238 = vpop.f32.mrf.mxu0
    %v1239 = vadd.f32 0.0, %v1238
    %1240 = vdwg.mxu0
    %1241 = vmatpush.msra.mxu0 0.0
    %1242 = vmatpush.msra.mxu0 0.0
    %1243 = vmatpush.msra.mxu0 0.0
    %1244 = vmatpush.msra.mxu0 0.0
    %1245 = vmatpush.msra.mxu0 0.0
    %1246 = vmatpush.msra.mxu0 0.0
    %1247 = vmatpush.msra.mxu0 0.0
    %1248 = vmatpush.msra.mxu0 0.0
    %1249 = vmatpush.msra.mxu0 %v522
    %1250 = vmatpush.msra.mxu0 %v521
    %1251 = vmatpush.msra.mxu0 %v520
    %1252 = vmatpush.msra.mxu0 %v519
    %1253 = vmatpush.msra.mxu0 %v518
    %1254 = vmatpush.msra.mxu0 %v517
    %1255 = vmatpush.msra.mxu0 %v516
    %1256 = vmatpush.msra.mxu0 %v515
    %1257 = vmatmul.f32.gmra.mxu0 %v1219
    %v1258 = vpop.f32.mrf.mxu0
    %v1259 = vadd.f32 0.0, %v1258
    %1260 = vdwg.mxu0
    %v1261 = vadd.f32 %v403, %v1239
    %v1262 = vxor.u32 %v1261, 2147483648
    %v1263 = vmul.f32 %v1262, 1.442695
    %v1264 = vpow.pop %v1263
    %v1265 = vadd.f32 %v1264, 1.0
    %v1266 = vrcp.pop %v1265
    %v1267 = vmul.f32 %v1265, %v1266
    %v1268 = vsub.f32 1.0, %v1267
    %v1269 = vmul.f32 %v1266, %v1268
    %v1270 = vadd.f32 %v1266, %v1269
    %vm1271 = vweird.f32 %v1265
    %vm1272 = vweird.f32 %v1266
    %vm1273 = vmor %vm1271, %vm1272
    %v1274 = vsel %vm1273, %v1266, %v1270
    %v1275 = vand.u32 2147483647, %v1265
    %vm1276 = vcmp.eq.f32.partialorder %v1275, 8.507059e+37
    %v1277 = vand.u32 %v1265, 2147483648
    %v1278 = vor.u32 1.1754944e-38, %v1277
    %v1279 = vsel %vm1276, %v1278, %v1274
    %v1280 = vmul.f32 1.0, %v1279
    %v1281 = vadd.f32 %v451, %v1259
    %v1282 = vxor.u32 %v1281, 2147483648
    %v1283 = vmul.f32 %v1282, 1.442695
    %v1284 = vpow.pop %v1283
    %v1285 = vadd.f32 %v1284, 1.0
    %v1286 = vrcp.pop %v1285
    %v1287 = vmul.f32 %v1285, %v1286
    %v1288 = vsub.f32 1.0, %v1287
    %v1289 = vmul.f32 %v1286, %v1288
    %v1290 = vadd.f32 %v1286, %v1289
    %vm1291 = vweird.f32 %v1285
    %vm1292 = vweird.f32 %v1286
    %vm1293 = vmor %vm1291, %vm1292
    %v1294 = vsel %vm1293, %v1286, %v1290
    %v1295 = vand.u32 2147483647, %v1285
    %vm1296 = vcmp.eq.f32.partialorder %v1295, 8.507059e+37
    %v1297 = vand.u32 %v1285, 2147483648
    %v1298 = vor.u32 1.1754944e-38, %v1297
    %v1299 = vsel %vm1296, %v1298, %v1294
    %v1300 = vmul.f32 1.0, %v1299
    %1301 = vmatpush.msra.mxu0 0.0
    %1302 = vmatpush.msra.mxu0 0.0
    %1303 = vmatpush.msra.mxu0 0.0
    %1304 = vmatpush.msra.mxu0 0.0
    %1305 = vmatpush.msra.mxu0 0.0
    %1306 = vmatpush.msra.mxu0 0.0
    %1307 = vmatpush.msra.mxu0 0.0
    %1308 = vmatpush.msra.mxu0 0.0
    %1309 = vmatpush.msra.mxu0 %v531
    %1310 = vmatpush.msra.mxu0 %v530
    %1311 = vmatpush.msra.mxu0 %v529
    %1312 = vmatpush.msra.mxu0 %v528
    %1313 = vmatpush.msra.mxu0 %v527
    %1314 = vmatpush.msra.mxu0 %v526
    %1315 = vmatpush.msra.mxu0 %v525
    %1316 = vmatpush.msra.mxu0 %v524
    %1317 = vmatmul.f32.gmra.mxu0 %v1219
    %v1318 = vpop.f32.mrf.mxu0
    %v1319 = vadd.f32 %v618, %v1318
    %1320 = vdwg.mxu0
    %v1321 = vmul.f32 %v1280, %v1319
    %v1322 = vadd.f32 %v499, %v1321
    %v1323 = vtanh.pop %v1322
    %v1324 = vsub.f32 1.0, %v1300
    %v1325 = vmul.f32 %v1324, %v1323
    %v1326 = vmul.f32 %v1300, %v1215
    %v1327 = vadd.f32 %v1325, %v1326
    %1328 = vst.msk [vmem:[%s764] sm:$0x3] %vm647, %v1327
    %1329 = vst.msk [vmem:[%s762] sm:$0x3] %vm650, %v1327
    %v1331 = vsel %vm533, %v1327, 0
    %1333 = vmatpush.msra.mxu0 0.0
    %1334 = vmatpush.msra.mxu0 0.0
    %1335 = vmatpush.msra.mxu0 0.0
    %1336 = vmatpush.msra.mxu0 0.0
    %1337 = vmatpush.msra.mxu0 0.0
    %1338 = vmatpush.msra.mxu0 0.0
    %1339 = vmatpush.msra.mxu0 0.0
    %1340 = vmatpush.msra.mxu0 0.0
    %1341 = vmatpush.msra.mxu0 %v513
    %1342 = vmatpush.msra.mxu0 %v512
    %1343 = vmatpush.msra.mxu0 %v511
    %1344 = vmatpush.msra.mxu0 %v510
    %1345 = vmatpush.msra.mxu0 %v509
    %1346 = vmatpush.msra.mxu0 %v508
    %1347 = vmatpush.msra.mxu0 %v507
    %1348 = vmatpush.msra.mxu0 %v506
    %1349 = vmatmul.f32.gmra.mxu0 %v1331
    %v1350 = vpop.f32.mrf.mxu0
    %v1351 = vadd.f32 0.0, %v1350
    %1352 = vdwg.mxu0
    %1353 = vmatpush.msra.mxu0 0.0
    %1354 = vmatpush.msra.mxu0 0.0
    %1355 = vmatpush.msra.mxu0 0.0
    %1356 = vmatpush.msra.mxu0 0.0
    %1357 = vmatpush.msra.mxu0 0.0
    %1358 = vmatpush.msra.mxu0 0.0
    %1359 = vmatpush.msra.mxu0 0.0
    %1360 = vmatpush.msra.mxu0 0.0
    %1361 = vmatpush.msra.mxu0 %v522
    %1362 = vmatpush.msra.mxu0 %v521
    %1363 = vmatpush.msra.mxu0 %v520
    %1364 = vmatpush.msra.mxu0 %v519
    %1365 = vmatpush.msra.mxu0 %v518
    %1366 = vmatpush.msra.mxu0 %v517
    %1367 = vmatpush.msra.mxu0 %v516
    %1368 = vmatpush.msra.mxu0 %v515
    %1369 = vmatmul.f32.gmra.mxu0 %v1331
    %v1370 = vpop.f32.mrf.mxu0
    %v1371 = vadd.f32 0.0, %v1370
    %1372 = vdwg.mxu0
    %v1373 = vadd.f32 %v409, %v1351
    %v1374 = vxor.u32 %v1373, 2147483648
    %v1375 = vmul.f32 %v1374, 1.442695
    %v1376 = vpow.pop %v1375
    %v1377 = vadd.f32 %v1376, 1.0
    %v1378 = vrcp.pop %v1377
    %v1379 = vmul.f32 %v1377, %v1378
    %v1380 = vsub.f32 1.0, %v1379
    %v1381 = vmul.f32 %v1378, %v1380
    %v1382 = vadd.f32 %v1378, %v1381
    %vm1383 = vweird.f32 %v1377
    %vm1384 = vweird.f32 %v1378
    %vm1385 = vmor %vm1383, %vm1384
    %v1386 = vsel %vm1385, %v1378, %v1382
    %v1387 = vand.u32 2147483647, %v1377
    %vm1388 = vcmp.eq.f32.partialorder %v1387, 8.507059e+37
    %v1389 = vand.u32 %v1377, 2147483648
    %v1390 = vor.u32 1.1754944e-38, %v1389
    %v1391 = vsel %vm1388, %v1390, %v1386
    %v1392 = vmul.f32 1.0, %v1391
    %v1393 = vadd.f32 %v457, %v1371
    %v1394 = vxor.u32 %v1393, 2147483648
    %v1395 = vmul.f32 %v1394, 1.442695
    %v1396 = vpow.pop %v1395
    %v1397 = vadd.f32 %v1396, 1.0
    %v1398 = vrcp.pop %v1397
    %v1399 = vmul.f32 %v1397, %v1398
    %v1400 = vsub.f32 1.0, %v1399
    %v1401 = vmul.f32 %v1398, %v1400
    %v1402 = vadd.f32 %v1398, %v1401
    %vm1403 = vweird.f32 %v1397
    %vm1404 = vweird.f32 %v1398
    %vm1405 = vmor %vm1403, %vm1404
    %v1406 = vsel %vm1405, %v1398, %v1402
    %v1407 = vand.u32 2147483647, %v1397
    %vm1408 = vcmp.eq.f32.partialorder %v1407, 8.507059e+37
    %v1409 = vand.u32 %v1397, 2147483648
    %v1410 = vor.u32 1.1754944e-38, %v1409
    %v1411 = vsel %vm1408, %v1410, %v1406
    %v1412 = vmul.f32 1.0, %v1411
    %1413 = vmatpush.msra.mxu0 0.0
    %1414 = vmatpush.msra.mxu0 0.0
    %1415 = vmatpush.msra.mxu0 0.0
    %1416 = vmatpush.msra.mxu0 0.0
    %1417 = vmatpush.msra.mxu0 0.0
    %1418 = vmatpush.msra.mxu0 0.0
    %1419 = vmatpush.msra.mxu0 0.0
    %1420 = vmatpush.msra.mxu0 0.0
    %1421 = vmatpush.msra.mxu0 %v531
    %1422 = vmatpush.msra.mxu0 %v530
    %1423 = vmatpush.msra.mxu0 %v529
    %1424 = vmatpush.msra.mxu0 %v528
    %1425 = vmatpush.msra.mxu0 %v527
    %1426 = vmatpush.msra.mxu0 %v526
    %1427 = vmatpush.msra.mxu0 %v525
    %1428 = vmatpush.msra.mxu0 %v524
    %1429 = vmatmul.f32.gmra.mxu0 %v1331
    %v1430 = vpop.f32.mrf.mxu0
    %v1431 = vadd.f32 %v618, %v1430
    %1432 = vdwg.mxu0
    %v1433 = vmul.f32 %v1392, %v1431
    %v1434 = vadd.f32 %v505, %v1433
    %v1435 = vtanh.pop %v1434
    %v1436 = vsub.f32 1.0, %v1412
    %v1437 = vmul.f32 %v1436, %v1435
    %v1438 = vmul.f32 %v1412, %v1327
    %v1439 = vadd.f32 %v1437, %v1438
    %1440 = vst.msk [vmem:[%s649] sm:$0x3] %vm647, %v1439
    %1441 = vst.msk [vmem:[#allocation2] sm:$0x3] %vm650, %v1439
    %v1442 = vld [vmem:[#allocation2] sm:$0x3]
    %v1443 = vld [vmem:[#allocation2 + $0x2] sm:$0x3]
    %v1444 = vld [vmem:[#allocation2 + $0x4] sm:$0x3]
    %v1445 = vld [vmem:[#allocation2 + $0x6] sm:$0x3]
    %v1446 = vld [vmem:[#allocation2 + $0x8] sm:$0x3]
    %v1447 = vld [vmem:[#allocation2 + $0xa] sm:$0x3]
    %v1448 = vld [vmem:[#allocation2 + $0xc] sm:$0x3]
    %v1449 = vld [vmem:[#allocation2 + $0xe] sm:$0x3]
    %v1450 = vld [vmem:[%s5] sm:$0xff]
    %v1451 = vld [vmem:[%s5 + $0x8] sm:$0xff]
    %v1452 = vld [vmem:[%s5 + $0x10] sm:$0xff]
    %v1453 = vld [vmem:[%s5 + $0x18] sm:$0xff]
    %v1454 = vld [vmem:[%s5 + $0x20] sm:$0xff]
    %v1455 = vld [vmem:[%s5 + $0x28] sm:$0xff]
    %v1456 = vld [vmem:[%s5 + $0x30] sm:$0xff]
    %v1457 = vld [vmem:[%s5 + $0x38] sm:$0xff]
    %v1458 = vld [vmem:[#allocation6] sm:$0x1]
    %v1460 = vperm.slane %v1458, 0
    %1470 = vst [vmem:[#allocation1] ss:$4 sm:$0xff] %v1442
    %s1471 = scalar_lea.vmem [#allocation1], 1
    %1472 = vst [vmem:[%s1471] ss:$4 sm:$0xff] %v1443
    %s1473 = scalar_lea.vmem [#allocation1], 2
    %1474 = vst [vmem:[%s1473] ss:$4 sm:$0xff] %v1444
    %s1475 = scalar_lea.vmem [#allocation1], 3
    %1476 = vst [vmem:[%s1475] ss:$4 sm:$0xff] %v1445
    %s1477 = scalar_lea.vmem [#allocation1], 32
    %1478 = vst [vmem:[%s1477] ss:$4 sm:$0xff] %v1446
    %s1479 = scalar_lea.vmem [#allocation1], 33
    %1480 = vst [vmem:[%s1479] ss:$4 sm:$0xff] %v1447
    %s1481 = scalar_lea.vmem [#allocation1], 34
    %1482 = vst [vmem:[%s1481] ss:$4 sm:$0xff] %v1448
    %s1483 = scalar_lea.vmem [#allocation1], 35
    %1484 = vst [vmem:[%s1483] ss:$4 sm:$0xff] %v1449
    %v1485 = vld.sshfl [vmem:[#allocation1] sm:$0xff pattern:$0x73625140]
    %v1486 = vld.sshfl [vmem:[#allocation1 + $0x20] sm:$0xff pattern:$0x73625140]
    %v1487 = vsel %vm533, %v1485, 0
    %v1489 = vsel %vm533, %v1486, 0
    %1491 = vmatpush.msra.mxu0 0.0
    %1492 = vmatpush.msra.mxu0 0.0
    %1493 = vmatpush.msra.mxu0 0.0
    %1494 = vmatpush.msra.mxu0 0.0
    %1495 = vmatpush.msra.mxu0 0.0
    %1496 = vmatpush.msra.mxu0 0.0
    %1497 = vmatpush.msra.mxu0 0.0
    %1498 = vmatpush.msra.mxu0 0.0
    %1499 = vmatpush.msra.mxu0 %v1457
    %1500 = vmatpush.msra.mxu0 %v1456
    %1501 = vmatpush.msra.mxu0 %v1455
    %1502 = vmatpush.msra.mxu0 %v1454
    %1503 = vmatpush.msra.mxu0 %v1453
    %1504 = vmatpush.msra.mxu0 %v1452
    %1505 = vmatpush.msra.mxu0 %v1451
    %1506 = vmatpush.msra.mxu0 %v1450
    %1507 = vmatmul.f32.gmra.mxu0 %v1487
    %v1508 = vpop.f32.mrf.mxu0
    %v1509 = vadd.f32 %v1460, %v1508
    %1510 = vmatmul.f32.gmra.mxu0 %v1489
    %v1511 = vpop.f32.mrf.mxu0
    %v1512 = vadd.f32 %v1460, %v1511
    %1513 = vdwg.mxu0
    %v1516 = vrot.slane %v1509, 2
    %v1517 = vrot.slane %v1509, 4
    %v1518 = vrot.slane %v1509, 6
    %v1519 = vrot.slane %v1512, 2
    %v1520 = vrot.slane %v1512, 4
    %v1521 = vrot.slane %v1512, 6
    %s1528 = scalar_lea.vmem %s5, 64
    %v1529 = vld [vmem:[%s1528] sm:$0xff]
    %v1530 = vld [vmem:[%s1528 + $0x8] sm:$0xff]
    %v1531 = vld [vmem:[%s1528 + $0x10] sm:$0xff]
    %v1532 = vld [vmem:[%s1528 + $0x18] sm:$0xff]
    %v1533 = vld [vmem:[%s1528 + $0x20] sm:$0xff]
    %v1534 = vld [vmem:[%s1528 + $0x28] sm:$0xff]
    %v1535 = vld [vmem:[%s1528 + $0x30] sm:$0xff]
    %v1536 = vld [vmem:[%s1528 + $0x38] sm:$0xff]
    %s1537 = scalar_lea.vmem [#allocation6], 1
    %v1538 = vld [vmem:[%s1537] sm:$0x1]
    %v1540 = vperm.slane %v1538, 0
    %1542 = vst [vmem:[#allocation1] ss:$4 sm:$0xff] %v1442
    %s1543 = scalar_lea.vmem [#allocation1], 1
    %1544 = vst [vmem:[%s1543] ss:$4 sm:$0xff] %v1443
    %s1545 = scalar_lea.vmem [#allocation1], 2
    %1546 = vst [vmem:[%s1545] ss:$4 sm:$0xff] %v1444
    %s1547 = scalar_lea.vmem [#allocation1], 3
    %1548 = vst [vmem:[%s1547] ss:$4 sm:$0xff] %v1445
    %s1549 = scalar_lea.vmem [#allocation1], 32
    %1550 = vst [vmem:[%s1549] ss:$4 sm:$0xff] %v1446
    %s1551 = scalar_lea.vmem [#allocation1], 33
    %1552 = vst [vmem:[%s1551] ss:$4 sm:$0xff] %v1447
    %s1553 = scalar_lea.vmem [#allocation1], 34
    %1554 = vst [vmem:[%s1553] ss:$4 sm:$0xff] %v1448
    %s1555 = scalar_lea.vmem [#allocation1], 35
    %1556 = vst [vmem:[%s1555] ss:$4 sm:$0xff] %v1449
    %v1557 = vld.sshfl [vmem:[#allocation1] sm:$0xff pattern:$0x73625140]
    %v1558 = vld.sshfl [vmem:[#allocation1 + $0x20] sm:$0xff pattern:$0x73625140]
    %v1559 = vsel %vm533, %v1557, 0
    %v1561 = vsel %vm533, %v1558, 0
    %1563 = vmatpush.msra.mxu0 0.0
    %1564 = vmatpush.msra.mxu0 0.0
    %1565 = vmatpush.msra.mxu0 0.0
    %1566 = vmatpush.msra.mxu0 0.0
    %1567 = vmatpush.msra.mxu0 0.0
    %1568 = vmatpush.msra.mxu0 0.0
    %1569 = vmatpush.msra.mxu0 0.0
    %1570 = vmatpush.msra.mxu0 0.0
    %1571 = vmatpush.msra.mxu0 %v1536
    %1572 = vmatpush.msra.mxu0 %v1535
    %1573 = vmatpush.msra.mxu0 %v1534
    %1574 = vmatpush.msra.mxu0 %v1533
    %1575 = vmatpush.msra.mxu0 %v1532
    %1576 = vmatpush.msra.mxu0 %v1531
    %1577 = vmatpush.msra.mxu0 %v1530
    %1578 = vmatpush.msra.mxu0 %v1529
    %1579 = vmatmul.f32.gmra.mxu0 %v1559
    %v1580 = vpop.f32.mrf.mxu0
    %v1581 = vadd.f32 %v1540, %v1580
    %1582 = vmatmul.f32.gmra.mxu0 %v1561
    %v1583 = vpop.f32.mrf.mxu0
    %v1584 = vadd.f32 %v1540, %v1583
    %1585 = vdwg.mxu0
    %v1588 = vrot.slane %v1581, 2
    %v1589 = vrot.slane %v1581, 4
    %v1590 = vrot.slane %v1581, 6
    %v1591 = vrot.slane %v1584, 2
    %v1592 = vrot.slane %v1584, 4
    %v1593 = vrot.slane %v1584, 6
    %s1600 = scalar_lea.vmem %s5, 128
    %v1601 = vld [vmem:[%s1600] sm:$0xff]
    %v1602 = vld [vmem:[%s1600 + $0x8] sm:$0xff]
    %v1603 = vld [vmem:[%s1600 + $0x10] sm:$0xff]
    %v1604 = vld [vmem:[%s1600 + $0x18] sm:$0xff]
    %v1605 = vld [vmem:[%s1600 + $0x20] sm:$0xff]
    %v1606 = vld [vmem:[%s1600 + $0x28] sm:$0xff]
    %v1607 = vld [vmem:[%s1600 + $0x30] sm:$0xff]
    %v1608 = vld [vmem:[%s1600 + $0x38] sm:$0xff]
    %s1609 = scalar_lea.vmem [#allocation6], 2
    %v1610 = vld [vmem:[%s1609] sm:$0x1]
    %v1612 = vperm.slane %v1610, 0
    %1614 = vst [vmem:[#allocation1] ss:$4 sm:$0xff] %v1442
    %s1615 = scalar_lea.vmem [#allocation1], 1
    %1616 = vst [vmem:[%s1615] ss:$4 sm:$0xff] %v1443
    %s1617 = scalar_lea.vmem [#allocation1], 2
    %1618 = vst [vmem:[%s1617] ss:$4 sm:$0xff] %v1444
    %s1619 = scalar_lea.vmem [#allocation1], 3
    %1620 = vst [vmem:[%s1619] ss:$4 sm:$0xff] %v1445
    %s1621 = scalar_lea.vmem [#allocation1], 32
    %1622 = vst [vmem:[%s1621] ss:$4 sm:$0xff] %v1446
    %s1623 = scalar_lea.vmem [#allocation1], 33
    %1624 = vst [vmem:[%s1623] ss:$4 sm:$0xff] %v1447
    %s1625 = scalar_lea.vmem [#allocation1], 34
    %1626 = vst [vmem:[%s1625] ss:$4 sm:$0xff] %v1448
    %s1627 = scalar_lea.vmem [#allocation1], 35
    %1628 = vst [vmem:[%s1627] ss:$4 sm:$0xff] %v1449
    %v1629 = vld.sshfl [vmem:[#allocation1] sm:$0xff pattern:$0x73625140]
    %v1630 = vld.sshfl [vmem:[#allocation1 + $0x20] sm:$0xff pattern:$0x73625140]
    %v1631 = vsel %vm533, %v1629, 0
    %v1633 = vsel %vm533, %v1630, 0
    %1635 = vmatpush.msra.mxu0 0.0
    %1636 = vmatpush.msra.mxu0 0.0
    %1637 = vmatpush.msra.mxu0 0.0
    %1638 = vmatpush.msra.mxu0 0.0
    %1639 = vmatpush.msra.mxu0 0.0
    %1640 = vmatpush.msra.mxu0 0.0
    %1641 = vmatpush.msra.mxu0 0.0
    %1642 = vmatpush.msra.mxu0 0.0
    %1643 = vmatpush.msra.mxu0 %v1608
    %1644 = vmatpush.msra.mxu0 %v1607
    %1645 = vmatpush.msra.mxu0 %v1606
    %1646 = vmatpush.msra.mxu0 %v1605
    %1647 = vmatpush.msra.mxu0 %v1604
    %1648 = vmatpush.msra.mxu0 %v1603
    %1649 = vmatpush.msra.mxu0 %v1602
    %1650 = vmatpush.msra.mxu0 %v1601
    %1651 = vmatmul.f32.gmra.mxu0 %v1631
    %v1652 = vpop.f32.mrf.mxu0
    %v1653 = vadd.f32 %v1612, %v1652
    %1654 = vmatmul.f32.gmra.mxu0 %v1633
    %v1655 = vpop.f32.mrf.mxu0
    %v1656 = vadd.f32 %v1612, %v1655
    %1657 = vdwg.mxu0
    %v1660 = vrot.slane %v1653, 2
    %v1661 = vrot.slane %v1653, 4
    %v1662 = vrot.slane %v1653, 6
    %v1663 = vrot.slane %v1656, 2
    %v1664 = vrot.slane %v1656, 4
    %v1665 = vrot.slane %v1656, 6
    %s1672 = scalar_lea.vmem %s5, 192
    %v1673 = vld [vmem:[%s1672] sm:$0xff]
    %v1674 = vld [vmem:[%s1672 + $0x8] sm:$0xff]
    %v1675 = vld [vmem:[%s1672 + $0x10] sm:$0xff]
    %v1676 = vld [vmem:[%s1672 + $0x18] sm:$0xff]
    %v1677 = vld [vmem:[%s1672 + $0x20] sm:$0xff]
    %v1678 = vld [vmem:[%s1672 + $0x28] sm:$0xff]
    %v1679 = vld [vmem:[%s1672 + $0x30] sm:$0xff]
    %v1680 = vld [vmem:[%s1672 + $0x38] sm:$0xff]
    %s1681 = scalar_lea.vmem [#allocation6], 3
    %v1682 = vld [vmem:[%s1681] sm:$0x1]
    %v1684 = vperm.slane %v1682, 0
    %1686 = vst [vmem:[#allocation1] ss:$4 sm:$0xff] %v1442
    %s1687 = scalar_lea.vmem [#allocation1], 1
    %1688 = vst [vmem:[%s1687] ss:$4 sm:$0xff] %v1443
    %s1689 = scalar_lea.vmem [#allocation1], 2
    %1690 = vst [vmem:[%s1689] ss:$4 sm:$0xff] %v1444
    %s1691 = scalar_lea.vmem [#allocation1], 3
    %1692 = vst [vmem:[%s1691] ss:$4 sm:$0xff] %v1445
    %s1693 = scalar_lea.vmem [#allocation1], 32
    %1694 = vst [vmem:[%s1693] ss:$4 sm:$0xff] %v1446
    %s1695 = scalar_lea.vmem [#allocation1], 33
    %1696 = vst [vmem:[%s1695] ss:$4 sm:$0xff] %v1447
    %s1697 = scalar_lea.vmem [#allocation1], 34
    %1698 = vst [vmem:[%s1697] ss:$4 sm:$0xff] %v1448
    %s1699 = scalar_lea.vmem [#allocation1], 35
    %1700 = vst [vmem:[%s1699] ss:$4 sm:$0xff] %v1449
    %v1701 = vld.sshfl [vmem:[#allocation1] sm:$0xff pattern:$0x73625140]
    %v1702 = vld.sshfl [vmem:[#allocation1 + $0x20] sm:$0xff pattern:$0x73625140]
    %v1703 = vsel %vm533, %v1701, 0
    %v1705 = vsel %vm533, %v1702, 0
    %1707 = vmatpush.msra.mxu0 0.0
    %1708 = vmatpush.msra.mxu0 0.0
    %1709 = vmatpush.msra.mxu0 0.0
    %1710 = vmatpush.msra.mxu0 0.0
    %1711 = vmatpush.msra.mxu0 0.0
    %1712 = vmatpush.msra.mxu0 0.0
    %1713 = vmatpush.msra.mxu0 0.0
    %1714 = vmatpush.msra.mxu0 0.0
    %1715 = vmatpush.msra.mxu0 %v1680
    %1716 = vmatpush.msra.mxu0 %v1679
    %1717 = vmatpush.msra.mxu0 %v1678
    %1718 = vmatpush.msra.mxu0 %v1677
    %1719 = vmatpush.msra.mxu0 %v1676
    %1720 = vmatpush.msra.mxu0 %v1675
    %1721 = vmatpush.msra.mxu0 %v1674
    %1722 = vmatpush.msra.mxu0 %v1673
    %1723 = vmatmul.f32.gmra.mxu0 %v1703
    %v1724 = vpop.f32.mrf.mxu0
    %v1725 = vadd.f32 %v1684, %v1724
    %1726 = vmatmul.f32.gmra.mxu0 %v1705
    %v1727 = vpop.f32.mrf.mxu0
    %v1728 = vadd.f32 %v1684, %v1727
    %1729 = vdwg.mxu0
    %v1732 = vrot.slane %v1725, 2
    %v1733 = vrot.slane %v1725, 4
    %v1734 = vrot.slane %v1725, 6
    %v1735 = vrot.slane %v1728, 2
    %v1736 = vrot.slane %v1728, 4
    %v1737 = vrot.slane %v1728, 6
    %s1738 = scalar_lea.vmem %s5, 256
    %v1739 = vld [vmem:[%s1738] sm:$0xff]
    %v1740 = vld [vmem:[%s1738 + $0x8] sm:$0xff]
    %v1741 = vld [vmem:[%s1738 + $0x10] sm:$0xff]
    %v1742 = vld [vmem:[%s1738 + $0x18] sm:$0xff]
    %v1743 = vld [vmem:[%s1738 + $0x20] sm:$0xff]
    %v1744 = vld [vmem:[%s1738 + $0x28] sm:$0xff]
    %v1745 = vld [vmem:[%s1738 + $0x30] sm:$0xff]
    %v1746 = vld [vmem:[%s1738 + $0x38] sm:$0xff]
    %s1747 = scalar_lea.vmem [#allocation6], 4
    %v1748 = vld [vmem:[%s1747] sm:$0x1]
    %v1750 = vperm.slane %v1748, 0
    %1752 = vst [vmem:[#allocation1] ss:$4 sm:$0xff] %v1442
    %s1753 = scalar_lea.vmem [#allocation1], 1
    %1754 = vst [vmem:[%s1753] ss:$4 sm:$0xff] %v1443
    %s1755 = scalar_lea.vmem [#allocation1], 2
    %1756 = vst [vmem:[%s1755] ss:$4 sm:$0xff] %v1444
    %s1757 = scalar_lea.vmem [#allocation1], 3
    %1758 = vst [vmem:[%s1757] ss:$4 sm:$0xff] %v1445
    %s1759 = scalar_lea.vmem [#allocation1], 32
    %1760 = vst [vmem:[%s1759] ss:$4 sm:$0xff] %v1446
    %s1761 = scalar_lea.vmem [#allocation1], 33
    %1762 = vst [vmem:[%s1761] ss:$4 sm:$0xff] %v1447
    %s1763 = scalar_lea.vmem [#allocation1], 34
    %1764 = vst [vmem:[%s1763] ss:$4 sm:$0xff] %v1448
    %s1765 = scalar_lea.vmem [#allocation1], 35
    %1766 = vst [vmem:[%s1765] ss:$4 sm:$0xff] %v1449
    %v1767 = vld.sshfl [vmem:[#allocation1] sm:$0xff pattern:$0x73625140]
    %v1768 = vld.sshfl [vmem:[#allocation1 + $0x20] sm:$0xff pattern:$0x73625140]
    %v1769 = vsel %vm533, %v1767, 0
    %v1771 = vsel %vm533, %v1768, 0
    %1773 = vmatpush.msra.mxu0 0.0
    %1774 = vmatpush.msra.mxu0 0.0
    %1775 = vmatpush.msra.mxu0 0.0
    %1776 = vmatpush.msra.mxu0 0.0
    %1777 = vmatpush.msra.mxu0 0.0
    %1778 = vmatpush.msra.mxu0 0.0
    %1779 = vmatpush.msra.mxu0 0.0
    %1780 = vmatpush.msra.mxu0 0.0
    %1781 = vmatpush.msra.mxu0 %v1746
    %1782 = vmatpush.msra.mxu0 %v1745
    %1783 = vmatpush.msra.mxu0 %v1744
    %1784 = vmatpush.msra.mxu0 %v1743
    %1785 = vmatpush.msra.mxu0 %v1742
    %1786 = vmatpush.msra.mxu0 %v1741
    %1787 = vmatpush.msra.mxu0 %v1740
    %1788 = vmatpush.msra.mxu0 %v1739
    %1789 = vmatmul.f32.gmra.mxu0 %v1769
    %v1790 = vpop.f32.mrf.mxu0
    %v1791 = vadd.f32 %v1750, %v1790
    %1792 = vmatmul.f32.gmra.mxu0 %v1771
    %v1793 = vpop.f32.mrf.mxu0
    %v1794 = vadd.f32 %v1750, %v1793
    %1795 = vdwg.mxu0
    %v1798 = vrot.slane %v1791, 2
    %v1799 = vrot.slane %v1791, 4
    %v1800 = vrot.slane %v1791, 6
    %v1801 = vrot.slane %v1794, 2
    %v1802 = vrot.slane %v1794, 4
    %v1803 = vrot.slane %v1794, 6
    %s1804 = scalar_lea.vmem %s5, 320
    %v1805 = vld [vmem:[%s1804] sm:$0xff]
    %v1806 = vld [vmem:[%s1804 + $0x8] sm:$0xff]
    %v1807 = vld [vmem:[%s1804 + $0x10] sm:$0xff]
    %v1808 = vld [vmem:[%s1804 + $0x18] sm:$0xff]
    %v1809 = vld [vmem:[%s1804 + $0x20] sm:$0xff]
    %v1810 = vld [vmem:[%s1804 + $0x28] sm:$0xff]
    %v1811 = vld [vmem:[%s1804 + $0x30] sm:$0xff]
    %v1812 = vld [vmem:[%s1804 + $0x38] sm:$0xff]
    %s1813 = scalar_lea.vmem [#allocation6], 5
    %v1814 = vld [vmem:[%s1813] sm:$0x1]
    %v1816 = vperm.slane %v1814, 0
    %1818 = vst [vmem:[#allocation1] ss:$4 sm:$0xff] %v1442
    %s1819 = scalar_lea.vmem [#allocation1], 1
    %1820 = vst [vmem:[%s1819] ss:$4 sm:$0xff] %v1443
    %s1821 = scalar_lea.vmem [#allocation1], 2
    %1822 = vst [vmem:[%s1821] ss:$4 sm:$0xff] %v1444
    %s1823 = scalar_lea.vmem [#allocation1], 3
    %1824 = vst [vmem:[%s1823] ss:$4 sm:$0xff] %v1445
    %s1825 = scalar_lea.vmem [#allocation1], 32
    %1826 = vst [vmem:[%s1825] ss:$4 sm:$0xff] %v1446
    %s1827 = scalar_lea.vmem [#allocation1], 33
    %1828 = vst [vmem:[%s1827] ss:$4 sm:$0xff] %v1447
    %s1829 = scalar_lea.vmem [#allocation1], 34
    %1830 = vst [vmem:[%s1829] ss:$4 sm:$0xff] %v1448
    %s1831 = scalar_lea.vmem [#allocation1], 35
    %1832 = vst [vmem:[%s1831] ss:$4 sm:$0xff] %v1449
    %v1833 = vld.sshfl [vmem:[#allocation1] sm:$0xff pattern:$0x73625140]
    %v1834 = vld.sshfl [vmem:[#allocation1 + $0x20] sm:$0xff pattern:$0x73625140]
    %v1835 = vsel %vm533, %v1833, 0
    %v1837 = vsel %vm533, %v1834, 0
    %1839 = vmatpush.msra.mxu0 0.0
    %1840 = vmatpush.msra.mxu0 0.0
    %1841 = vmatpush.msra.mxu0 0.0
    %1842 = vmatpush.msra.mxu0 0.0
    %1843 = vmatpush.msra.mxu0 0.0
    %1844 = vmatpush.msra.mxu0 0.0
    %1845 = vmatpush.msra.mxu0 0.0
    %1846 = vmatpush.msra.mxu0 0.0
    %1847 = vmatpush.msra.mxu0 %v1812
    %1848 = vmatpush.msra.mxu0 %v1811
    %1849 = vmatpush.msra.mxu0 %v1810
    %1850 = vmatpush.msra.mxu0 %v1809
    %1851 = vmatpush.msra.mxu0 %v1808
    %1852 = vmatpush.msra.mxu0 %v1807
    %1853 = vmatpush.msra.mxu0 %v1806
    %1854 = vmatpush.msra.mxu0 %v1805
    %1855 = vmatmul.f32.gmra.mxu0 %v1835
    %v1856 = vpop.f32.mrf.mxu0
    %v1857 = vadd.f32 %v1816, %v1856
    %1858 = vmatmul.f32.gmra.mxu0 %v1837
    %v1859 = vpop.f32.mrf.mxu0
    %v1860 = vadd.f32 %v1816, %v1859
    %1861 = vdwg.mxu0
    %v1864 = vrot.slane %v1857, 2
    %v1865 = vrot.slane %v1857, 4
    %v1866 = vrot.slane %v1857, 6
    %v1867 = vrot.slane %v1860, 2
    %v1868 = vrot.slane %v1860, 4
    %v1869 = vrot.slane %v1860, 6
    %1870 = vst [vmem:[#allocation1] ss:$4 sm:$0xff] %v1737
    %v1871 = vld.sshfl [vmem:[#allocation1] sm:$0xff pattern:$0x73625140]
    %1872 = vrot.lane.b32.xlu0 %v1871, 32
    %v1873 = vpop.permute.xlu0 %1872
    %v1875 = vsel %vm101, %v1509, %v1873
    %1876 = vst [vmem:[#allocation1] ss:$4 sm:$0xff] %v1736
    %v1877 = vld.sshfl [vmem:[#allocation1] sm:$0xff pattern:$0x73625140]
    %1878 = vrot.lane.b32.xlu0 %v1877, 32
    %v1879 = vpop.permute.xlu0 %1878
    %v1881 = vsel %vm101, %v1516, %v1879
    %1882 = vst [vmem:[#allocation1] ss:$4 sm:$0xff] %v1735
    %v1883 = vld.sshfl [vmem:[#allocation1] sm:$0xff pattern:$0x73625140]
    %1884 = vrot.lane.b32.xlu0 %v1883, 32
    %v1885 = vpop.permute.xlu0 %1884
    %v1887 = vsel %vm101, %v1517, %v1885
    %1888 = vst [vmem:[#allocation1] ss:$4 sm:$0xff] %v1728
    %v1889 = vld.sshfl [vmem:[#allocation1] sm:$0xff pattern:$0x73625140]
    %1890 = vrot.lane.b32.xlu0 %v1889, 32
    %v1891 = vpop.permute.xlu0 %1890
    %v1893 = vsel %vm101, %v1518, %v1891
    %1894 = vst [vmem:[#allocation1] ss:$4 sm:$0xff] %v1734
    %v1895 = vld.sshfl [vmem:[#allocation1] sm:$0xff pattern:$0x73625140]
    %1896 = vrot.lane.b32.xlu0 %v1895, 32
    %v1897 = vpop.permute.xlu0 %1896
    %v1899 = vsel %vm101, %v1512, %v1897
    %1900 = vst [vmem:[#allocation1] ss:$4 sm:$0xff] %v1733
    %v1901 = vld.sshfl [vmem:[#allocation1] sm:$0xff pattern:$0x73625140]
    %1902 = vrot.lane.b32.xlu0 %v1901, 32
    %v1903 = vpop.permute.xlu0 %1902
    %v1905 = vsel %vm101, %v1519, %v1903
    %1906 = vst [vmem:[#allocation1] ss:$4 sm:$0xff] %v1732
    %v1907 = vld.sshfl [vmem:[#allocation1] sm:$0xff pattern:$0x73625140]
    %1908 = vrot.lane.b32.xlu0 %v1907, 32
    %v1909 = vpop.permute.xlu0 %1908
    %v1911 = vsel %vm101, %v1520, %v1909
    %1912 = vst [vmem:[#allocation1] ss:$4 sm:$0xff] %v1725
    %v1913 = vld.sshfl [vmem:[#allocation1] sm:$0xff pattern:$0x73625140]
    %1914 = vrot.lane.b32.xlu0 %v1913, 32
    %v1915 = vpop.permute.xlu0 %1914
    %v1917 = vsel %vm101, %v1521, %v1915
    %1918 = vst [vmem:[#allocation1] ss:$4 sm:$0xff] %v1803
    %v1919 = vld.sshfl [vmem:[#allocation1] sm:$0xff pattern:$0x73625140]
    %1920 = vrot.lane.b32.xlu0 %v1919, 32
    %v1921 = vpop.permute.xlu0 %1920
    %v1923 = vsel %vm101, %v1581, %v1921
    %1924 = vst [vmem:[#allocation1] ss:$4 sm:$0xff] %v1802
    %v1925 = vld.sshfl [vmem:[#allocation1] sm:$0xff pattern:$0x73625140]
    %1926 = vrot.lane.b32.xlu0 %v1925, 32
    %v1927 = vpop.permute.xlu0 %1926
    %v1929 = vsel %vm101, %v1588, %v1927
    %1930 = vst [vmem:[#allocation1] ss:$4 sm:$0xff] %v1801
    %v1931 = vld.sshfl [vmem:[#allocation1] sm:$0xff pattern:$0x73625140]
    %1932 = vrot.lane.b32.xlu0 %v1931, 32
    %v1933 = vpop.permute.xlu0 %1932
    %v1935 = vsel %vm101, %v1589, %v1933
    %1936 = vst [vmem:[#allocation1] ss:$4 sm:$0xff] %v1794
    %v1937 = vld.sshfl [vmem:[#allocation1] sm:$0xff pattern:$0x73625140]
    %1938 = vrot.lane.b32.xlu0 %v1937, 32
    %v1939 = vpop.permute.xlu0 %1938
    %v1941 = vsel %vm101, %v1590, %v1939
    %1942 = vst [vmem:[#allocation1] ss:$4 sm:$0xff] %v1800
    %v1943 = vld.sshfl [vmem:[#allocation1] sm:$0xff pattern:$0x73625140]
    %1944 = vrot.lane.b32.xlu0 %v1943, 32
    %v1945 = vpop.permute.xlu0 %1944
    %v1947 = vsel %vm101, %v1584, %v1945
    %1948 = vst [vmem:[#allocation1] ss:$4 sm:$0xff] %v1799
    %v1949 = vld.sshfl [vmem:[#allocation1] sm:$0xff pattern:$0x73625140]
    %1950 = vrot.lane.b32.xlu0 %v1949, 32
    %v1951 = vpop.permute.xlu0 %1950
    %v1953 = vsel %vm101, %v1591, %v1951
    %1954 = vst [vmem:[#allocation1] ss:$4 sm:$0xff] %v1798
    %v1955 = vld.sshfl [vmem:[#allocation1] sm:$0xff pattern:$0x73625140]
    %1956 = vrot.lane.b32.xlu0 %v1955, 32
    %v1957 = vpop.permute.xlu0 %1956
    %v1959 = vsel %vm101, %v1592, %v1957
    %1960 = vst [vmem:[#allocation1] ss:$4 sm:$0xff] %v1791
    %v1961 = vld.sshfl [vmem:[#allocation1] sm:$0xff pattern:$0x73625140]
    %1962 = vrot.lane.b32.xlu0 %v1961, 32
    %v1963 = vpop.permute.xlu0 %1962
    %v1965 = vsel %vm101, %v1593, %v1963
    %1966 = vst [vmem:[#allocation1] ss:$4 sm:$0xff] %v1869
    %v1967 = vld.sshfl [vmem:[#allocation1] sm:$0xff pattern:$0x73625140]
    %1968 = vrot.lane.b32.xlu0 %v1967, 32
    %v1969 = vpop.permute.xlu0 %1968
    %v1971 = vsel %vm101, %v1653, %v1969
    %1972 = vst [vmem:[#allocation1] ss:$4 sm:$0xff] %v1868
    %v1973 = vld.sshfl [vmem:[#allocation1] sm:$0xff pattern:$0x73625140]
    %1974 = vrot.lane.b32.xlu0 %v1973, 32
    %v1975 = vpop.permute.xlu0 %1974
    %v1977 = vsel %vm101, %v1660, %v1975
    %1978 = vst [vmem:[#allocation1] ss:$4 sm:$0xff] %v1867
    %v1979 = vld.sshfl [vmem:[#allocation1] sm:$0xff pattern:$0x73625140]
    %1980 = vrot.lane.b32.xlu0 %v1979, 32
    %v1981 = vpop.permute.xlu0 %1980
    %v1983 = vsel %vm101, %v1661, %v1981
    %1984 = vst [vmem:[#allocation1] ss:$4 sm:$0xff] %v1860
    %v1985 = vld.sshfl [vmem:[#allocation1] sm:$0xff pattern:$0x73625140]
    %1986 = vrot.lane.b32.xlu0 %v1985, 32
    %v1987 = vpop.permute.xlu0 %1986
    %v1989 = vsel %vm101, %v1662, %v1987
    %1990 = vst [vmem:[#allocation1] ss:$4 sm:$0xff] %v1866
    %v1991 = vld.sshfl [vmem:[#allocation1] sm:$0xff pattern:$0x73625140]
    %1992 = vrot.lane.b32.xlu0 %v1991, 32
    %v1993 = vpop.permute.xlu0 %1992
    %v1995 = vsel %vm101, %v1656, %v1993
    %1996 = vst [vmem:[#allocation1] ss:$4 sm:$0xff] %v1865
    %v1997 = vld.sshfl [vmem:[#allocation1] sm:$0xff pattern:$0x73625140]
    %1998 = vrot.lane.b32.xlu0 %v1997, 32
    %v1999 = vpop.permute.xlu0 %1998
    %v2001 = vsel %vm101, %v1663, %v1999
    %2002 = vst [vmem:[#allocation1] ss:$4 sm:$0xff] %v1864
    %v2003 = vld.sshfl [vmem:[#allocation1] sm:$0xff pattern:$0x73625140]
    %2004 = vrot.lane.b32.xlu0 %v2003, 32
    %v2005 = vpop.permute.xlu0 %2004
    %v2007 = vsel %vm101, %v1664, %v2005
    %2008 = vst [vmem:[#allocation1] ss:$4 sm:$0xff] %v1857
    %v2009 = vld.sshfl [vmem:[#allocation1] sm:$0xff pattern:$0x73625140]
    %2010 = vrot.lane.b32.xlu0 %v2009, 32
    %v2011 = vpop.permute.xlu0 %2010
    %v2013 = vsel %vm101, %v1665, %v2011
    %v2014 = vld [vmem:[%s7] sm:$0xff]
    %v2015 = vld [vmem:[%s7 + $0x8] sm:$0xff]
    %v2016 = vld [vmem:[%s7 + $0x10] sm:$0xff]
    %v2017 = vld [vmem:[%s7 + $0x18] sm:$0xff]
    %v2018 = vld [vmem:[%s7 + $0x20] sm:$0xff]
    %v2019 = vld [vmem:[%s7 + $0x28] sm:$0xff]
    %v2020 = vld [vmem:[%s7 + $0x30] sm:$0xff]
    %v2021 = vld [vmem:[%s7 + $0x38] sm:$0xff]
    %s2022 = scalar_lea.vmem %s7, 64
    %v2023 = vld [vmem:[%s2022] sm:$0xff]
    %v2024 = vld [vmem:[%s2022 + $0x8] sm:$0xff]
    %v2025 = vld [vmem:[%s2022 + $0x10] sm:$0xff]
    %v2026 = vld [vmem:[%s2022 + $0x18] sm:$0xff]
    %v2027 = vld [vmem:[%s2022 + $0x20] sm:$0xff]
    %v2028 = vld [vmem:[%s2022 + $0x28] sm:$0xff]
    %v2029 = vld [vmem:[%s2022 + $0x30] sm:$0xff]
    %v2030 = vld [vmem:[%s2022 + $0x38] sm:$0xff]
    %s2031 = scalar_lea.vmem %s7, 128
    %v2032 = vld [vmem:[%s2031] sm:$0xff]
    %v2033 = vld [vmem:[%s2031 + $0x8] sm:$0xff]
    %v2034 = vld [vmem:[%s2031 + $0x10] sm:$0xff]
    %v2035 = vld [vmem:[%s2031 + $0x18] sm:$0xff]
    %v2036 = vld [vmem:[%s2031 + $0x20] sm:$0xff]
    %v2037 = vld [vmem:[%s2031 + $0x28] sm:$0xff]
    %v2038 = vld [vmem:[%s2031 + $0x30] sm:$0xff]
    %v2039 = vld [vmem:[%s2031 + $0x38] sm:$0xff]
    %v2040 = vld [vmem:[%s8] sm:$0x1]
    %2041 = vmatpush.msra.mxu0 0.0
    %2042 = vmatpush.msra.mxu0 0.0
    %2043 = vmatpush.msra.mxu0 0.0
    %2044 = vmatpush.msra.mxu0 0.0
    %2045 = vmatpush.msra.mxu0 0.0
    %2046 = vmatpush.msra.mxu0 0.0
    %2047 = vmatpush.msra.mxu0 0.0
    %2048 = vmatpush.msra.mxu0 0.0
    %2049 = vmatpush.msra.mxu0 %v2021
    %2050 = vmatpush.msra.mxu0 %v2020
    %2051 = vmatpush.msra.mxu0 %v2019
    %2052 = vmatpush.msra.mxu0 %v2018
    %2053 = vmatpush.msra.mxu0 %v2017
    %2054 = vmatpush.msra.mxu0 %v2016
    %2055 = vmatpush.msra.mxu0 %v2015
    %2056 = vmatpush.msra.mxu0 %v2014
    %2057 = vmatmul.f32.gmra.mxu0 %v535
    %v2058 = vpop.f32.mrf.mxu0
    %v2059 = vadd.f32 0.0, %v2058
    %2060 = vdwg.mxu0
    %2061 = vmatpush.msra.mxu0 0.0
    %2062 = vmatpush.msra.mxu0 0.0
    %2063 = vmatpush.msra.mxu0 0.0
    %2064 = vmatpush.msra.mxu0 0.0
    %2065 = vmatpush.msra.mxu0 0.0
    %2066 = vmatpush.msra.mxu0 0.0
    %2067 = vmatpush.msra.mxu0 0.0
    %2068 = vmatpush.msra.mxu0 0.0
    %2069 = vmatpush.msra.mxu0 %v2030
    %2070 = vmatpush.msra.mxu0 %v2029
    %2071 = vmatpush.msra.mxu0 %v2028
    %2072 = vmatpush.msra.mxu0 %v2027
    %2073 = vmatpush.msra.mxu0 %v2026
    %2074 = vmatpush.msra.mxu0 %v2025
    %2075 = vmatpush.msra.mxu0 %v2024
    %2076 = vmatpush.msra.mxu0 %v2023
    %2077 = vmatmul.f32.gmra.mxu0 %v535
    %v2078 = vpop.f32.mrf.mxu0
    %v2079 = vadd.f32 0.0, %v2078
    %2080 = vdwg.mxu0
    %v2081 = vadd.f32 %v1875, %v2059
    %v2082 = vxor.u32 %v2081, 2147483648
    %v2083 = vmul.f32 %v2082, 1.442695
    %v2084 = vpow.pop %v2083
    %v2085 = vadd.f32 %v2084, 1.0
    %v2086 = vrcp.pop %v2085
    %v2087 = vmul.f32 %v2085, %v2086
    %v2088 = vsub.f32 1.0, %v2087
    %v2089 = vmul.f32 %v2086, %v2088
    %v2090 = vadd.f32 %v2086, %v2089
    %vm2091 = vweird.f32 %v2085
    %vm2092 = vweird.f32 %v2086
    %vm2093 = vmor %vm2091, %vm2092
    %v2094 = vsel %vm2093, %v2086, %v2090
    %v2095 = vand.u32 2147483647, %v2085
    %vm2096 = vcmp.eq.f32.partialorder %v2095, 8.507059e+37
    %v2097 = vand.u32 %v2085, 2147483648
    %v2098 = vor.u32 1.1754944e-38, %v2097
    %v2099 = vsel %vm2096, %v2098, %v2094
    %v2100 = vmul.f32 1.0, %v2099
    %v2101 = vadd.f32 %v1923, %v2079
    %v2102 = vxor.u32 %v2101, 2147483648
    %v2103 = vmul.f32 %v2102, 1.442695
    %v2104 = vpow.pop %v2103
    %v2105 = vadd.f32 %v2104, 1.0
    %v2106 = vrcp.pop %v2105
    %v2107 = vmul.f32 %v2105, %v2106
    %v2108 = vsub.f32 1.0, %v2107
    %v2109 = vmul.f32 %v2106, %v2108
    %v2110 = vadd.f32 %v2106, %v2109
    %vm2111 = vweird.f32 %v2105
    %vm2112 = vweird.f32 %v2106
    %vm2113 = vmor %vm2111, %vm2112
    %v2114 = vsel %vm2113, %v2106, %v2110
    %v2115 = vand.u32 2147483647, %v2105
    %vm2116 = vcmp.eq.f32.partialorder %v2115, 8.507059e+37
    %v2117 = vand.u32 %v2105, 2147483648
    %v2118 = vor.u32 1.1754944e-38, %v2117
    %v2119 = vsel %vm2116, %v2118, %v2114
    %v2120 = vmul.f32 1.0, %v2119
    %v2122 = vperm.slane %v2040, 0
    %2124 = vmatpush.msra.mxu0 0.0
    %2125 = vmatpush.msra.mxu0 0.0
    %2126 = vmatpush.msra.mxu0 0.0
    %2127 = vmatpush.msra.mxu0 0.0
    %2128 = vmatpush.msra.mxu0 0.0
    %2129 = vmatpush.msra.mxu0 0.0
    %2130 = vmatpush.msra.mxu0 0.0
    %2131 = vmatpush.msra.mxu0 0.0
    %2132 = vmatpush.msra.mxu0 %v2039
    %2133 = vmatpush.msra.mxu0 %v2038
    %2134 = vmatpush.msra.mxu0 %v2037
    %2135 = vmatpush.msra.mxu0 %v2036
    %2136 = vmatpush.msra.mxu0 %v2035
    %2137 = vmatpush.msra.mxu0 %v2034
    %2138 = vmatpush.msra.mxu0 %v2033
    %2139 = vmatpush.msra.mxu0 %v2032
    %2140 = vmatmul.f32.gmra.mxu0 %v535
    %v2141 = vpop.f32.mrf.mxu0
    %v2142 = vadd.f32 %v2122, %v2141
    %2143 = vdwg.mxu0
    %v2144 = vmul.f32 %v2100, %v2142
    %v2145 = vadd.f32 %v1971, %v2144
    %v2146 = vtanh.pop %v2145
    %v2147 = vsub.f32 1.0, %v2120
    %v2148 = vmul.f32 %v2147, %v2146
    %v2149 = vmul.f32 %v2120, 0.0
    %v2150 = vadd.f32 %v2148, %v2149
    %v2152 = vsel %vm533, %v2150, 0
    %2154 = vmatpush.msra.mxu0 0.0
    %2155 = vmatpush.msra.mxu0 0.0
    %2156 = vmatpush.msra.mxu0 0.0
    %2157 = vmatpush.msra.mxu0 0.0
    %2158 = vmatpush.msra.mxu0 0.0
    %2159 = vmatpush.msra.mxu0 0.0
    %2160 = vmatpush.msra.mxu0 0.0
    %2161 = vmatpush.msra.mxu0 0.0
    %2162 = vmatpush.msra.mxu0 %v2021
    %2163 = vmatpush.msra.mxu0 %v2020
    %2164 = vmatpush.msra.mxu0 %v2019
    %2165 = vmatpush.msra.mxu0 %v2018
    %2166 = vmatpush.msra.mxu0 %v2017
    %2167 = vmatpush.msra.mxu0 %v2016
    %2168 = vmatpush.msra.mxu0 %v2015
    %2169 = vmatpush.msra.mxu0 %v2014
    %2170 = vmatmul.f32.gmra.mxu0 %v2152
    %v2171 = vpop.f32.mrf.mxu0
    %v2172 = vadd.f32 0.0, %v2171
    %2173 = vdwg.mxu0
    %2174 = vmatpush.msra.mxu0 0.0
    %2175 = vmatpush.msra.mxu0 0.0
    %2176 = vmatpush.msra.mxu0 0.0
    %2177 = vmatpush.msra.mxu0 0.0
    %2178 = vmatpush.msra.mxu0 0.0
    %2179 = vmatpush.msra.mxu0 0.0
    %2180 = vmatpush.msra.mxu0 0.0
    %2181 = vmatpush.msra.mxu0 0.0
    %2182 = vmatpush.msra.mxu0 %v2030
    %2183 = vmatpush.msra.mxu0 %v2029
    %2184 = vmatpush.msra.mxu0 %v2028
    %2185 = vmatpush.msra.mxu0 %v2027
    %2186 = vmatpush.msra.mxu0 %v2026
    %2187 = vmatpush.msra.mxu0 %v2025
    %2188 = vmatpush.msra.mxu0 %v2024
    %2189 = vmatpush.msra.mxu0 %v2023
    %2190 = vmatmul.f32.gmra.mxu0 %v2152
    %v2191 = vpop.f32.mrf.mxu0
    %v2192 = vadd.f32 0.0, %v2191
    %2193 = vdwg.mxu0
    %v2194 = vadd.f32 %v1881, %v2172
    %v2195 = vxor.u32 %v2194, 2147483648
    %v2196 = vmul.f32 %v2195, 1.442695
    %v2197 = vpow.pop %v2196
    %v2198 = vadd.f32 %v2197, 1.0
    %v2199 = vrcp.pop %v2198
    %v2200 = vmul.f32 %v2198, %v2199
    %v2201 = vsub.f32 1.0, %v2200
    %v2202 = vmul.f32 %v2199, %v2201
    %v2203 = vadd.f32 %v2199, %v2202
    %vm2204 = vweird.f32 %v2198
    %vm2205 = vweird.f32 %v2199
    %vm2206 = vmor %vm2204, %vm2205
    %v2207 = vsel %vm2206, %v2199, %v2203
    %v2208 = vand.u32 2147483647, %v2198
    %vm2209 = vcmp.eq.f32.partialorder %v2208, 8.507059e+37
    %v2210 = vand.u32 %v2198, 2147483648
    %v2211 = vor.u32 1.1754944e-38, %v2210
    %v2212 = vsel %vm2209, %v2211, %v2207
    %v2213 = vmul.f32 1.0, %v2212
    %v2214 = vadd.f32 %v1929, %v2192
    %v2215 = vxor.u32 %v2214, 2147483648
    %v2216 = vmul.f32 %v2215, 1.442695
    %v2217 = vpow.pop %v2216
    %v2218 = vadd.f32 %v2217, 1.0
    %v2219 = vrcp.pop %v2218
    %v2220 = vmul.f32 %v2218, %v2219
    %v2221 = vsub.f32 1.0, %v2220
    %v2222 = vmul.f32 %v2219, %v2221
    %v2223 = vadd.f32 %v2219, %v2222
    %vm2224 = vweird.f32 %v2218
    %vm2225 = vweird.f32 %v2219
    %vm2226 = vmor %vm2224, %vm2225
    %v2227 = vsel %vm2226, %v2219, %v2223
    %v2228 = vand.u32 2147483647, %v2218
    %vm2229 = vcmp.eq.f32.partialorder %v2228, 8.507059e+37
    %v2230 = vand.u32 %v2218, 2147483648
    %v2231 = vor.u32 1.1754944e-38, %v2230
    %v2232 = vsel %vm2229, %v2231, %v2227
    %v2233 = vmul.f32 1.0, %v2232
    %2234 = vmatpush.msra.mxu0 0.0
    %2235 = vmatpush.msra.mxu0 0.0
    %2236 = vmatpush.msra.mxu0 0.0
    %2237 = vmatpush.msra.mxu0 0.0
    %2238 = vmatpush.msra.mxu0 0.0
    %2239 = vmatpush.msra.mxu0 0.0
    %2240 = vmatpush.msra.mxu0 0.0
    %2241 = vmatpush.msra.mxu0 0.0
    %2242 = vmatpush.msra.mxu0 %v2039
    %2243 = vmatpush.msra.mxu0 %v2038
    %2244 = vmatpush.msra.mxu0 %v2037
    %2245 = vmatpush.msra.mxu0 %v2036
    %2246 = vmatpush.msra.mxu0 %v2035
    %2247 = vmatpush.msra.mxu0 %v2034
    %2248 = vmatpush.msra.mxu0 %v2033
    %2249 = vmatpush.msra.mxu0 %v2032
    %2250 = vmatmul.f32.gmra.mxu0 %v2152
    %v2251 = vpop.f32.mrf.mxu0
    %v2252 = vadd.f32 %v2122, %v2251
    %2253 = vdwg.mxu0
    %v2254 = vmul.f32 %v2213, %v2252
    %v2255 = vadd.f32 %v1977, %v2254
    %v2256 = vtanh.pop %v2255
    %v2257 = vsub.f32 1.0, %v2233
    %v2258 = vmul.f32 %v2257, %v2256
    %v2259 = vmul.f32 %v2233, %v2150
    %v2260 = vadd.f32 %v2258, %v2259
    %v2262 = vsel %vm533, %v2260, 0
    %2264 = vmatpush.msra.mxu0 0.0
    %2265 = vmatpush.msra.mxu0 0.0
    %2266 = vmatpush.msra.mxu0 0.0
    %2267 = vmatpush.msra.mxu0 0.0
    %2268 = vmatpush.msra.mxu0 0.0
    %2269 = vmatpush.msra.mxu0 0.0
    %2270 = vmatpush.msra.mxu0 0.0
    %2271 = vmatpush.msra.mxu0 0.0
    %2272 = vmatpush.msra.mxu0 %v2021
    %2273 = vmatpush.msra.mxu0 %v2020
    %2274 = vmatpush.msra.mxu0 %v2019
    %2275 = vmatpush.msra.mxu0 %v2018
    %2276 = vmatpush.msra.mxu0 %v2017
    %2277 = vmatpush.msra.mxu0 %v2016
    %2278 = vmatpush.msra.mxu0 %v2015
    %2279 = vmatpush.msra.mxu0 %v2014
    %2280 = vmatmul.f32.gmra.mxu0 %v2262
    %v2281 = vpop.f32.mrf.mxu0
    %v2282 = vadd.f32 0.0, %v2281
    %2283 = vdwg.mxu0
    %2284 = vmatpush.msra.mxu0 0.0
    %2285 = vmatpush.msra.mxu0 0.0
    %2286 = vmatpush.msra.mxu0 0.0
    %2287 = vmatpush.msra.mxu0 0.0
    %2288 = vmatpush.msra.mxu0 0.0
    %2289 = vmatpush.msra.mxu0 0.0
    %2290 = vmatpush.msra.mxu0 0.0
    %2291 = vmatpush.msra.mxu0 0.0
    %2292 = vmatpush.msra.mxu0 %v2030
    %2293 = vmatpush.msra.mxu0 %v2029
    %2294 = vmatpush.msra.mxu0 %v2028
    %2295 = vmatpush.msra.mxu0 %v2027
    %2296 = vmatpush.msra.mxu0 %v2026
    %2297 = vmatpush.msra.mxu0 %v2025
    %2298 = vmatpush.msra.mxu0 %v2024
    %2299 = vmatpush.msra.mxu0 %v2023
    %2300 = vmatmul.f32.gmra.mxu0 %v2262
    %v2301 = vpop.f32.mrf.mxu0
    %v2302 = vadd.f32 0.0, %v2301
    %2303 = vdwg.mxu0
    %v2304 = vadd.f32 %v1887, %v2282
    %v2305 = vxor.u32 %v2304, 2147483648
    %v2306 = vmul.f32 %v2305, 1.442695
    %v2307 = vpow.pop %v2306
    %v2308 = vadd.f32 %v2307, 1.0
    %v2309 = vrcp.pop %v2308
    %v2310 = vmul.f32 %v2308, %v2309
    %v2311 = vsub.f32 1.0, %v2310
    %v2312 = vmul.f32 %v2309, %v2311
    %v2313 = vadd.f32 %v2309, %v2312
    %vm2314 = vweird.f32 %v2308
    %vm2315 = vweird.f32 %v2309
    %vm2316 = vmor %vm2314, %vm2315
    %v2317 = vsel %vm2316, %v2309, %v2313
    %v2318 = vand.u32 2147483647, %v2308
    %vm2319 = vcmp.eq.f32.partialorder %v2318, 8.507059e+37
    %v2320 = vand.u32 %v2308, 2147483648
    %v2321 = vor.u32 1.1754944e-38, %v2320
    %v2322 = vsel %vm2319, %v2321, %v2317
    %v2323 = vmul.f32 1.0, %v2322
    %v2324 = vadd.f32 %v1935, %v2302
    %v2325 = vxor.u32 %v2324, 2147483648
    %v2326 = vmul.f32 %v2325, 1.442695
    %v2327 = vpow.pop %v2326
    %v2328 = vadd.f32 %v2327, 1.0
    %v2329 = vrcp.pop %v2328
    %v2330 = vmul.f32 %v2328, %v2329
    %v2331 = vsub.f32 1.0, %v2330
    %v2332 = vmul.f32 %v2329, %v2331
    %v2333 = vadd.f32 %v2329, %v2332
    %vm2334 = vweird.f32 %v2328
    %vm2335 = vweird.f32 %v2329
    %vm2336 = vmor %vm2334, %vm2335
    %v2337 = vsel %vm2336, %v2329, %v2333
    %v2338 = vand.u32 2147483647, %v2328
    %vm2339 = vcmp.eq.f32.partialorder %v2338, 8.507059e+37
    %v2340 = vand.u32 %v2328, 2147483648
    %v2341 = vor.u32 1.1754944e-38, %v2340
    %v2342 = vsel %vm2339, %v2341, %v2337
    %v2343 = vmul.f32 1.0, %v2342
    %2344 = vmatpush.msra.mxu0 0.0
    %2345 = vmatpush.msra.mxu0 0.0
    %2346 = vmatpush.msra.mxu0 0.0
    %2347 = vmatpush.msra.mxu0 0.0
    %2348 = vmatpush.msra.mxu0 0.0
    %2349 = vmatpush.msra.mxu0 0.0
    %2350 = vmatpush.msra.mxu0 0.0
    %2351 = vmatpush.msra.mxu0 0.0
    %2352 = vmatpush.msra.mxu0 %v2039
    %2353 = vmatpush.msra.mxu0 %v2038
    %2354 = vmatpush.msra.mxu0 %v2037
    %2355 = vmatpush.msra.mxu0 %v2036
    %2356 = vmatpush.msra.mxu0 %v2035
    %2357 = vmatpush.msra.mxu0 %v2034
    %2358 = vmatpush.msra.mxu0 %v2033
    %2359 = vmatpush.msra.mxu0 %v2032
    %2360 = vmatmul.f32.gmra.mxu0 %v2262
    %v2361 = vpop.f32.mrf.mxu0
    %v2362 = vadd.f32 %v2122, %v2361
    %2363 = vdwg.mxu0
    %v2364 = vmul.f32 %v2323, %v2362
    %v2365 = vadd.f32 %v1983, %v2364
    %v2366 = vtanh.pop %v2365
    %v2367 = vsub.f32 1.0, %v2343
    %v2368 = vmul.f32 %v2367, %v2366
    %v2369 = vmul.f32 %v2343, %v2260
    %v2370 = vadd.f32 %v2368, %v2369
    %v2372 = vsel %vm533, %v2370, 0
    %2374 = vmatpush.msra.mxu0 0.0
    %2375 = vmatpush.msra.mxu0 0.0
    %2376 = vmatpush.msra.mxu0 0.0
    %2377 = vmatpush.msra.mxu0 0.0
    %2378 = vmatpush.msra.mxu0 0.0
    %2379 = vmatpush.msra.mxu0 0.0
    %2380 = vmatpush.msra.mxu0 0.0
    %2381 = vmatpush.msra.mxu0 0.0
    %2382 = vmatpush.msra.mxu0 %v2021
    %2383 = vmatpush.msra.mxu0 %v2020
    %2384 = vmatpush.msra.mxu0 %v2019
    %2385 = vmatpush.msra.mxu0 %v2018
    %2386 = vmatpush.msra.mxu0 %v2017
    %2387 = vmatpush.msra.mxu0 %v2016
    %2388 = vmatpush.msra.mxu0 %v2015
    %2389 = vmatpush.msra.mxu0 %v2014
    %2390 = vmatmul.f32.gmra.mxu0 %v2372
    %v2391 = vpop.f32.mrf.mxu0
    %v2392 = vadd.f32 0.0, %v2391
    %2393 = vdwg.mxu0
    %2394 = vmatpush.msra.mxu0 0.0
    %2395 = vmatpush.msra.mxu0 0.0
    %2396 = vmatpush.msra.mxu0 0.0
    %2397 = vmatpush.msra.mxu0 0.0
    %2398 = vmatpush.msra.mxu0 0.0
    %2399 = vmatpush.msra.mxu0 0.0
    %2400 = vmatpush.msra.mxu0 0.0
    %2401 = vmatpush.msra.mxu0 0.0
    %2402 = vmatpush.msra.mxu0 %v2030
    %2403 = vmatpush.msra.mxu0 %v2029
    %2404 = vmatpush.msra.mxu0 %v2028
    %2405 = vmatpush.msra.mxu0 %v2027
    %2406 = vmatpush.msra.mxu0 %v2026
    %2407 = vmatpush.msra.mxu0 %v2025
    %2408 = vmatpush.msra.mxu0 %v2024
    %2409 = vmatpush.msra.mxu0 %v2023
    %2410 = vmatmul.f32.gmra.mxu0 %v2372
    %v2411 = vpop.f32.mrf.mxu0
    %v2412 = vadd.f32 0.0, %v2411
    %2413 = vdwg.mxu0
    %v2414 = vadd.f32 %v1893, %v2392
    %v2415 = vxor.u32 %v2414, 2147483648
    %v2416 = vmul.f32 %v2415, 1.442695
    %v2417 = vpow.pop %v2416
    %v2418 = vadd.f32 %v2417, 1.0
    %v2419 = vrcp.pop %v2418
    %v2420 = vmul.f32 %v2418, %v2419
    %v2421 = vsub.f32 1.0, %v2420
    %v2422 = vmul.f32 %v2419, %v2421
    %v2423 = vadd.f32 %v2419, %v2422
    %vm2424 = vweird.f32 %v2418
    %vm2425 = vweird.f32 %v2419
    %vm2426 = vmor %vm2424, %vm2425
    %v2427 = vsel %vm2426, %v2419, %v2423
    %v2428 = vand.u32 2147483647, %v2418
    %vm2429 = vcmp.eq.f32.partialorder %v2428, 8.507059e+37
    %v2430 = vand.u32 %v2418, 2147483648
    %v2431 = vor.u32 1.1754944e-38, %v2430
    %v2432 = vsel %vm2429, %v2431, %v2427
    %v2433 = vmul.f32 1.0, %v2432
    %v2434 = vadd.f32 %v1941, %v2412
    %v2435 = vxor.u32 %v2434, 2147483648
    %v2436 = vmul.f32 %v2435, 1.442695
    %v2437 = vpow.pop %v2436
    %v2438 = vadd.f32 %v2437, 1.0
    %v2439 = vrcp.pop %v2438
    %v2440 = vmul.f32 %v2438, %v2439
    %v2441 = vsub.f32 1.0, %v2440
    %v2442 = vmul.f32 %v2439, %v2441
    %v2443 = vadd.f32 %v2439, %v2442
    %vm2444 = vweird.f32 %v2438
    %vm2445 = vweird.f32 %v2439
    %vm2446 = vmor %vm2444, %vm2445
    %v2447 = vsel %vm2446, %v2439, %v2443
    %v2448 = vand.u32 2147483647, %v2438
    %vm2449 = vcmp.eq.f32.partialorder %v2448, 8.507059e+37
    %v2450 = vand.u32 %v2438, 2147483648
    %v2451 = vor.u32 1.1754944e-38, %v2450
    %v2452 = vsel %vm2449, %v2451, %v2447
    %v2453 = vmul.f32 1.0, %v2452
    %2454 = vmatpush.msra.mxu0 0.0
    %2455 = vmatpush.msra.mxu0 0.0
    %2456 = vmatpush.msra.mxu0 0.0
    %2457 = vmatpush.msra.mxu0 0.0
    %2458 = vmatpush.msra.mxu0 0.0
    %2459 = vmatpush.msra.mxu0 0.0
    %2460 = vmatpush.msra.mxu0 0.0
    %2461 = vmatpush.msra.mxu0 0.0
    %2462 = vmatpush.msra.mxu0 %v2039
    %2463 = vmatpush.msra.mxu0 %v2038
    %2464 = vmatpush.msra.mxu0 %v2037
    %2465 = vmatpush.msra.mxu0 %v2036
    %2466 = vmatpush.msra.mxu0 %v2035
    %2467 = vmatpush.msra.mxu0 %v2034
    %2468 = vmatpush.msra.mxu0 %v2033
    %2469 = vmatpush.msra.mxu0 %v2032
    %2470 = vmatmul.f32.gmra.mxu0 %v2372
    %v2471 = vpop.f32.mrf.mxu0
    %v2472 = vadd.f32 %v2122, %v2471
    %2473 = vdwg.mxu0
    %v2474 = vmul.f32 %v2433, %v2472
    %v2475 = vadd.f32 %v1989, %v2474
    %v2476 = vtanh.pop %v2475
    %v2477 = vsub.f32 1.0, %v2453
    %v2478 = vmul.f32 %v2477, %v2476
    %v2479 = vmul.f32 %v2453, %v2370
    %v2480 = vadd.f32 %v2478, %v2479
    %v2482 = vsel %vm533, %v2480, 0
    %2484 = vmatpush.msra.mxu0 0.0
    %2485 = vmatpush.msra.mxu0 0.0
    %2486 = vmatpush.msra.mxu0 0.0
    %2487 = vmatpush.msra.mxu0 0.0
    %2488 = vmatpush.msra.mxu0 0.0
    %2489 = vmatpush.msra.mxu0 0.0
    %2490 = vmatpush.msra.mxu0 0.0
    %2491 = vmatpush.msra.mxu0 0.0
    %2492 = vmatpush.msra.mxu0 %v2021
    %2493 = vmatpush.msra.mxu0 %v2020
    %2494 = vmatpush.msra.mxu0 %v2019
    %2495 = vmatpush.msra.mxu0 %v2018
    %2496 = vmatpush.msra.mxu0 %v2017
    %2497 = vmatpush.msra.mxu0 %v2016
    %2498 = vmatpush.msra.mxu0 %v2015
    %2499 = vmatpush.msra.mxu0 %v2014
    %2500 = vmatmul.f32.gmra.mxu0 %v2482
    %v2501 = vpop.f32.mrf.mxu0
    %v2502 = vadd.f32 0.0, %v2501
    %2503 = vdwg.mxu0
    %2504 = vmatpush.msra.mxu0 0.0
    %2505 = vmatpush.msra.mxu0 0.0
    %2506 = vmatpush.msra.mxu0 0.0
    %2507 = vmatpush.msra.mxu0 0.0
    %2508 = vmatpush.msra.mxu0 0.0
    %2509 = vmatpush.msra.mxu0 0.0
    %2510 = vmatpush.msra.mxu0 0.0
    %2511 = vmatpush.msra.mxu0 0.0
    %2512 = vmatpush.msra.mxu0 %v2030
    %2513 = vmatpush.msra.mxu0 %v2029
    %2514 = vmatpush.msra.mxu0 %v2028
    %2515 = vmatpush.msra.mxu0 %v2027
    %2516 = vmatpush.msra.mxu0 %v2026
    %2517 = vmatpush.msra.mxu0 %v2025
    %2518 = vmatpush.msra.mxu0 %v2024
    %2519 = vmatpush.msra.mxu0 %v2023
    %2520 = vmatmul.f32.gmra.mxu0 %v2482
    %v2521 = vpop.f32.mrf.mxu0
    %v2522 = vadd.f32 0.0, %v2521
    %2523 = vdwg.mxu0
    %v2524 = vadd.f32 %v1899, %v2502
    %v2525 = vxor.u32 %v2524, 2147483648
    %v2526 = vmul.f32 %v2525, 1.442695
    %v2527 = vpow.pop %v2526
    %v2528 = vadd.f32 %v2527, 1.0
    %v2529 = vrcp.pop %v2528
    %v2530 = vmul.f32 %v2528, %v2529
    %v2531 = vsub.f32 1.0, %v2530
    %v2532 = vmul.f32 %v2529, %v2531
    %v2533 = vadd.f32 %v2529, %v2532
    %vm2534 = vweird.f32 %v2528
    %vm2535 = vweird.f32 %v2529
    %vm2536 = vmor %vm2534, %vm2535
    %v2537 = vsel %vm2536, %v2529, %v2533
    %v2538 = vand.u32 2147483647, %v2528
    %vm2539 = vcmp.eq.f32.partialorder %v2538, 8.507059e+37
    %v2540 = vand.u32 %v2528, 2147483648
    %v2541 = vor.u32 1.1754944e-38, %v2540
    %v2542 = vsel %vm2539, %v2541, %v2537
    %v2543 = vmul.f32 1.0, %v2542
    %v2544 = vadd.f32 %v1947, %v2522
    %v2545 = vxor.u32 %v2544, 2147483648
    %v2546 = vmul.f32 %v2545, 1.442695
    %v2547 = vpow.pop %v2546
    %v2548 = vadd.f32 %v2547, 1.0
    %v2549 = vrcp.pop %v2548
    %v2550 = vmul.f32 %v2548, %v2549
    %v2551 = vsub.f32 1.0, %v2550
    %v2552 = vmul.f32 %v2549, %v2551
    %v2553 = vadd.f32 %v2549, %v2552
    %vm2554 = vweird.f32 %v2548
    %vm2555 = vweird.f32 %v2549
    %vm2556 = vmor %vm2554, %vm2555
    %v2557 = vsel %vm2556, %v2549, %v2553
    %v2558 = vand.u32 2147483647, %v2548
    %vm2559 = vcmp.eq.f32.partialorder %v2558, 8.507059e+37
    %v2560 = vand.u32 %v2548, 2147483648
    %v2561 = vor.u32 1.1754944e-38, %v2560
    %v2562 = vsel %vm2559, %v2561, %v2557
    %v2563 = vmul.f32 1.0, %v2562
    %2564 = vmatpush.msra.mxu0 0.0
    %2565 = vmatpush.msra.mxu0 0.0
    %2566 = vmatpush.msra.mxu0 0.0
    %2567 = vmatpush.msra.mxu0 0.0
    %2568 = vmatpush.msra.mxu0 0.0
    %2569 = vmatpush.msra.mxu0 0.0
    %2570 = vmatpush.msra.mxu0 0.0
    %2571 = vmatpush.msra.mxu0 0.0
    %2572 = vmatpush.msra.mxu0 %v2039
    %2573 = vmatpush.msra.mxu0 %v2038
    %2574 = vmatpush.msra.mxu0 %v2037
    %2575 = vmatpush.msra.mxu0 %v2036
    %2576 = vmatpush.msra.mxu0 %v2035
    %2577 = vmatpush.msra.mxu0 %v2034
    %2578 = vmatpush.msra.mxu0 %v2033
    %2579 = vmatpush.msra.mxu0 %v2032
    %2580 = vmatmul.f32.gmra.mxu0 %v2482
    %v2581 = vpop.f32.mrf.mxu0
    %v2582 = vadd.f32 %v2122, %v2581
    %2583 = vdwg.mxu0
    %v2584 = vmul.f32 %v2543, %v2582
    %v2585 = vadd.f32 %v1995, %v2584
    %v2586 = vtanh.pop %v2585
    %v2587 = vsub.f32 1.0, %v2563
    %v2588 = vmul.f32 %v2587, %v2586
    %v2589 = vmul.f32 %v2563, %v2480
    %v2590 = vadd.f32 %v2588, %v2589
    %v2592 = vsel %vm533, %v2590, 0
    %2594 = vmatpush.msra.mxu0 0.0
    %2595 = vmatpush.msra.mxu0 0.0
    %2596 = vmatpush.msra.mxu0 0.0
    %2597 = vmatpush.msra.mxu0 0.0
    %2598 = vmatpush.msra.mxu0 0.0
    %2599 = vmatpush.msra.mxu0 0.0
    %2600 = vmatpush.msra.mxu0 0.0
    %2601 = vmatpush.msra.mxu0 0.0
    %2602 = vmatpush.msra.mxu0 %v2021
    %2603 = vmatpush.msra.mxu0 %v2020
    %2604 = vmatpush.msra.mxu0 %v2019
    %2605 = vmatpush.msra.mxu0 %v2018
    %2606 = vmatpush.msra.mxu0 %v2017
    %2607 = vmatpush.msra.mxu0 %v2016
    %2608 = vmatpush.msra.mxu0 %v2015
    %2609 = vmatpush.msra.mxu0 %v2014
    %2610 = vmatmul.f32.gmra.mxu0 %v2592
    %v2611 = vpop.f32.mrf.mxu0
    %v2612 = vadd.f32 0.0, %v2611
    %2613 = vdwg.mxu0
    %2614 = vmatpush.msra.mxu0 0.0
    %2615 = vmatpush.msra.mxu0 0.0
    %2616 = vmatpush.msra.mxu0 0.0
    %2617 = vmatpush.msra.mxu0 0.0
    %2618 = vmatpush.msra.mxu0 0.0
    %2619 = vmatpush.msra.mxu0 0.0
    %2620 = vmatpush.msra.mxu0 0.0
    %2621 = vmatpush.msra.mxu0 0.0
    %2622 = vmatpush.msra.mxu0 %v2030
    %2623 = vmatpush.msra.mxu0 %v2029
    %2624 = vmatpush.msra.mxu0 %v2028
    %2625 = vmatpush.msra.mxu0 %v2027
    %2626 = vmatpush.msra.mxu0 %v2026
    %2627 = vmatpush.msra.mxu0 %v2025
    %2628 = vmatpush.msra.mxu0 %v2024
    %2629 = vmatpush.msra.mxu0 %v2023
    %2630 = vmatmul.f32.gmra.mxu0 %v2592
    %v2631 = vpop.f32.mrf.mxu0
    %v2632 = vadd.f32 0.0, %v2631
    %2633 = vdwg.mxu0
    %v2634 = vadd.f32 %v1905, %v2612
    %v2635 = vxor.u32 %v2634, 2147483648
    %v2636 = vmul.f32 %v2635, 1.442695
    %v2637 = vpow.pop %v2636
    %v2638 = vadd.f32 %v2637, 1.0
    %v2639 = vrcp.pop %v2638
    %v2640 = vmul.f32 %v2638, %v2639
    %v2641 = vsub.f32 1.0, %v2640
    %v2642 = vmul.f32 %v2639, %v2641
    %v2643 = vadd.f32 %v2639, %v2642
    %vm2644 = vweird.f32 %v2638
    %vm2645 = vweird.f32 %v2639
    %vm2646 = vmor %vm2644, %vm2645
    %v2647 = vsel %vm2646, %v2639, %v2643
    %v2648 = vand.u32 2147483647, %v2638
    %vm2649 = vcmp.eq.f32.partialorder %v2648, 8.507059e+37
    %v2650 = vand.u32 %v2638, 2147483648
    %v2651 = vor.u32 1.1754944e-38, %v2650
    %v2652 = vsel %vm2649, %v2651, %v2647
    %v2653 = vmul.f32 1.0, %v2652
    %v2654 = vadd.f32 %v1953, %v2632
    %v2655 = vxor.u32 %v2654, 2147483648
    %v2656 = vmul.f32 %v2655, 1.442695
    %v2657 = vpow.pop %v2656
    %v2658 = vadd.f32 %v2657, 1.0
    %v2659 = vrcp.pop %v2658
    %v2660 = vmul.f32 %v2658, %v2659
    %v2661 = vsub.f32 1.0, %v2660
    %v2662 = vmul.f32 %v2659, %v2661
    %v2663 = vadd.f32 %v2659, %v2662
    %vm2664 = vweird.f32 %v2658
    %vm2665 = vweird.f32 %v2659
    %vm2666 = vmor %vm2664, %vm2665
    %v2667 = vsel %vm2666, %v2659, %v2663
    %v2668 = vand.u32 2147483647, %v2658
    %vm2669 = vcmp.eq.f32.partialorder %v2668, 8.507059e+37
    %v2670 = vand.u32 %v2658, 2147483648
    %v2671 = vor.u32 1.1754944e-38, %v2670
    %v2672 = vsel %vm2669, %v2671, %v2667
    %v2673 = vmul.f32 1.0, %v2672
    %2674 = vmatpush.msra.mxu0 0.0
    %2675 = vmatpush.msra.mxu0 0.0
    %2676 = vmatpush.msra.mxu0 0.0
    %2677 = vmatpush.msra.mxu0 0.0
    %2678 = vmatpush.msra.mxu0 0.0
    %2679 = vmatpush.msra.mxu0 0.0
    %2680 = vmatpush.msra.mxu0 0.0
    %2681 = vmatpush.msra.mxu0 0.0
    %2682 = vmatpush.msra.mxu0 %v2039
    %2683 = vmatpush.msra.mxu0 %v2038
    %2684 = vmatpush.msra.mxu0 %v2037
    %2685 = vmatpush.msra.mxu0 %v2036
    %2686 = vmatpush.msra.mxu0 %v2035
    %2687 = vmatpush.msra.mxu0 %v2034
    %2688 = vmatpush.msra.mxu0 %v2033
    %2689 = vmatpush.msra.mxu0 %v2032
    %2690 = vmatmul.f32.gmra.mxu0 %v2592
    %v2691 = vpop.f32.mrf.mxu0
    %v2692 = vadd.f32 %v2122, %v2691
    %2693 = vdwg.mxu0
    %v2694 = vmul.f32 %v2653, %v2692
    %v2695 = vadd.f32 %v2001, %v2694
    %v2696 = vtanh.pop %v2695
    %v2697 = vsub.f32 1.0, %v2673
    %v2698 = vmul.f32 %v2697, %v2696
    %v2699 = vmul.f32 %v2673, %v2590
    %v2700 = vadd.f32 %v2698, %v2699
    %v2702 = vsel %vm533, %v2700, 0
    %2704 = vmatpush.msra.mxu0 0.0
    %2705 = vmatpush.msra.mxu0 0.0
    %2706 = vmatpush.msra.mxu0 0.0
    %2707 = vmatpush.msra.mxu0 0.0
    %2708 = vmatpush.msra.mxu0 0.0
    %2709 = vmatpush.msra.mxu0 0.0
    %2710 = vmatpush.msra.mxu0 0.0
    %2711 = vmatpush.msra.mxu0 0.0
    %2712 = vmatpush.msra.mxu0 %v2021
    %2713 = vmatpush.msra.mxu0 %v2020
    %2714 = vmatpush.msra.mxu0 %v2019
    %2715 = vmatpush.msra.mxu0 %v2018
    %2716 = vmatpush.msra.mxu0 %v2017
    %2717 = vmatpush.msra.mxu0 %v2016
    %2718 = vmatpush.msra.mxu0 %v2015
    %2719 = vmatpush.msra.mxu0 %v2014
    %2720 = vmatmul.f32.gmra.mxu0 %v2702
    %v2721 = vpop.f32.mrf.mxu0
    %v2722 = vadd.f32 0.0, %v2721
    %2723 = vdwg.mxu0
    %2724 = vmatpush.msra.mxu0 0.0
    %2725 = vmatpush.msra.mxu0 0.0
    %2726 = vmatpush.msra.mxu0 0.0
    %2727 = vmatpush.msra.mxu0 0.0
    %2728 = vmatpush.msra.mxu0 0.0
    %2729 = vmatpush.msra.mxu0 0.0
    %2730 = vmatpush.msra.mxu0 0.0
    %2731 = vmatpush.msra.mxu0 0.0
    %2732 = vmatpush.msra.mxu0 %v2030
    %2733 = vmatpush.msra.mxu0 %v2029
    %2734 = vmatpush.msra.mxu0 %v2028
    %2735 = vmatpush.msra.mxu0 %v2027
    %2736 = vmatpush.msra.mxu0 %v2026
    %2737 = vmatpush.msra.mxu0 %v2025
    %2738 = vmatpush.msra.mxu0 %v2024
    %2739 = vmatpush.msra.mxu0 %v2023
    %2740 = vmatmul.f32.gmra.mxu0 %v2702
    %v2741 = vpop.f32.mrf.mxu0
    %v2742 = vadd.f32 0.0, %v2741
    %2743 = vdwg.mxu0
    %v2744 = vadd.f32 %v1911, %v2722
    %v2745 = vxor.u32 %v2744, 2147483648
    %v2746 = vmul.f32 %v2745, 1.442695
    %v2747 = vpow.pop %v2746
    %v2748 = vadd.f32 %v2747, 1.0
    %v2749 = vrcp.pop %v2748
    %v2750 = vmul.f32 %v2748, %v2749
    %v2751 = vsub.f32 1.0, %v2750
    %v2752 = vmul.f32 %v2749, %v2751
    %v2753 = vadd.f32 %v2749, %v2752
    %vm2754 = vweird.f32 %v2748
    %vm2755 = vweird.f32 %v2749
    %vm2756 = vmor %vm2754, %vm2755
    %v2757 = vsel %vm2756, %v2749, %v2753
    %v2758 = vand.u32 2147483647, %v2748
    %vm2759 = vcmp.eq.f32.partialorder %v2758, 8.507059e+37
    %v2760 = vand.u32 %v2748, 2147483648
    %v2761 = vor.u32 1.1754944e-38, %v2760
    %v2762 = vsel %vm2759, %v2761, %v2757
    %v2763 = vmul.f32 1.0, %v2762
    %v2764 = vadd.f32 %v1959, %v2742
    %v2765 = vxor.u32 %v2764, 2147483648
    %v2766 = vmul.f32 %v2765, 1.442695
    %v2767 = vpow.pop %v2766
    %v2768 = vadd.f32 %v2767, 1.0
    %v2769 = vrcp.pop %v2768
    %v2770 = vmul.f32 %v2768, %v2769
    %v2771 = vsub.f32 1.0, %v2770
    %v2772 = vmul.f32 %v2769, %v2771
    %v2773 = vadd.f32 %v2769, %v2772
    %vm2774 = vweird.f32 %v2768
    %vm2775 = vweird.f32 %v2769
    %vm2776 = vmor %vm2774, %vm2775
    %v2777 = vsel %vm2776, %v2769, %v2773
    %v2778 = vand.u32 2147483647, %v2768
    %vm2779 = vcmp.eq.f32.partialorder %v2778, 8.507059e+37
    %v2780 = vand.u32 %v2768, 2147483648
    %v2781 = vor.u32 1.1754944e-38, %v2780
    %v2782 = vsel %vm2779, %v2781, %v2777
    %v2783 = vmul.f32 1.0, %v2782
    %2784 = vmatpush.msra.mxu0 0.0
    %2785 = vmatpush.msra.mxu0 0.0
    %2786 = vmatpush.msra.mxu0 0.0
    %2787 = vmatpush.msra.mxu0 0.0
    %2788 = vmatpush.msra.mxu0 0.0
    %2789 = vmatpush.msra.mxu0 0.0
    %2790 = vmatpush.msra.mxu0 0.0
    %2791 = vmatpush.msra.mxu0 0.0
    %2792 = vmatpush.msra.mxu0 %v2039
    %2793 = vmatpush.msra.mxu0 %v2038
    %2794 = vmatpush.msra.mxu0 %v2037
    %2795 = vmatpush.msra.mxu0 %v2036
    %2796 = vmatpush.msra.mxu0 %v2035
    %2797 = vmatpush.msra.mxu0 %v2034
    %2798 = vmatpush.msra.mxu0 %v2033
    %2799 = vmatpush.msra.mxu0 %v2032
    %2800 = vmatmul.f32.gmra.mxu0 %v2702
    %v2801 = vpop.f32.mrf.mxu0
    %v2802 = vadd.f32 %v2122, %v2801
    %2803 = vdwg.mxu0
    %v2804 = vmul.f32 %v2763, %v2802
    %v2805 = vadd.f32 %v2007, %v2804
    %v2806 = vtanh.pop %v2805
    %v2807 = vsub.f32 1.0, %v2783
    %v2808 = vmul.f32 %v2807, %v2806
    %v2809 = vmul.f32 %v2783, %v2700
    %v2810 = vadd.f32 %v2808, %v2809
    %v2812 = vsel %vm533, %v2810, 0
    %2814 = vmatpush.msra.mxu0 0.0
    %2815 = vmatpush.msra.mxu0 0.0
    %2816 = vmatpush.msra.mxu0 0.0
    %2817 = vmatpush.msra.mxu0 0.0
    %2818 = vmatpush.msra.mxu0 0.0
    %2819 = vmatpush.msra.mxu0 0.0
    %2820 = vmatpush.msra.mxu0 0.0
    %2821 = vmatpush.msra.mxu0 0.0
    %2822 = vmatpush.msra.mxu0 %v2021
    %2823 = vmatpush.msra.mxu0 %v2020
    %2824 = vmatpush.msra.mxu0 %v2019
    %2825 = vmatpush.msra.mxu0 %v2018
    %2826 = vmatpush.msra.mxu0 %v2017
    %2827 = vmatpush.msra.mxu0 %v2016
    %2828 = vmatpush.msra.mxu0 %v2015
    %2829 = vmatpush.msra.mxu0 %v2014
    %2830 = vmatmul.f32.gmra.mxu0 %v2812
    %v2831 = vpop.f32.mrf.mxu0
    %v2832 = vadd.f32 0.0, %v2831
    %2833 = vdwg.mxu0
    %2834 = vmatpush.msra.mxu0 0.0
    %2835 = vmatpush.msra.mxu0 0.0
    %2836 = vmatpush.msra.mxu0 0.0
    %2837 = vmatpush.msra.mxu0 0.0
    %2838 = vmatpush.msra.mxu0 0.0
    %2839 = vmatpush.msra.mxu0 0.0
    %2840 = vmatpush.msra.mxu0 0.0
    %2841 = vmatpush.msra.mxu0 0.0
    %2842 = vmatpush.msra.mxu0 %v2030
    %2843 = vmatpush.msra.mxu0 %v2029
    %2844 = vmatpush.msra.mxu0 %v2028
    %2845 = vmatpush.msra.mxu0 %v2027
    %2846 = vmatpush.msra.mxu0 %v2026
    %2847 = vmatpush.msra.mxu0 %v2025
    %2848 = vmatpush.msra.mxu0 %v2024
    %2849 = vmatpush.msra.mxu0 %v2023
    %2850 = vmatmul.f32.gmra.mxu0 %v2812
    %v2851 = vpop.f32.mrf.mxu0
    %v2852 = vadd.f32 0.0, %v2851
    %2853 = vdwg.mxu0
    %v2854 = vadd.f32 %v1917, %v2832
    %v2855 = vxor.u32 %v2854, 2147483648
    %v2856 = vmul.f32 %v2855, 1.442695
    %v2857 = vpow.pop %v2856
    %v2858 = vadd.f32 %v2857, 1.0
    %v2859 = vrcp.pop %v2858
    %v2860 = vmul.f32 %v2858, %v2859
    %v2861 = vsub.f32 1.0, %v2860
    %v2862 = vmul.f32 %v2859, %v2861
    %v2863 = vadd.f32 %v2859, %v2862
    %vm2864 = vweird.f32 %v2858
    %vm2865 = vweird.f32 %v2859
    %vm2866 = vmor %vm2864, %vm2865
    %v2867 = vsel %vm2866, %v2859, %v2863
    %v2868 = vand.u32 2147483647, %v2858
    %vm2869 = vcmp.eq.f32.partialorder %v2868, 8.507059e+37
    %v2870 = vand.u32 %v2858, 2147483648
    %v2871 = vor.u32 1.1754944e-38, %v2870
    %v2872 = vsel %vm2869, %v2871, %v2867
    %v2873 = vmul.f32 1.0, %v2872
    %v2874 = vadd.f32 %v1965, %v2852
    %v2875 = vxor.u32 %v2874, 2147483648
    %v2876 = vmul.f32 %v2875, 1.442695
    %v2877 = vpow.pop %v2876
    %v2878 = vadd.f32 %v2877, 1.0
    %v2879 = vrcp.pop %v2878
    %v2880 = vmul.f32 %v2878, %v2879
    %v2881 = vsub.f32 1.0, %v2880
    %v2882 = vmul.f32 %v2879, %v2881
    %v2883 = vadd.f32 %v2879, %v2882
    %vm2884 = vweird.f32 %v2878
    %vm2885 = vweird.f32 %v2879
    %vm2886 = vmor %vm2884, %vm2885
    %v2887 = vsel %vm2886, %v2879, %v2883
    %v2888 = vand.u32 2147483647, %v2878
    %vm2889 = vcmp.eq.f32.partialorder %v2888, 8.507059e+37
    %v2890 = vand.u32 %v2878, 2147483648
    %v2891 = vor.u32 1.1754944e-38, %v2890
    %v2892 = vsel %vm2889, %v2891, %v2887
    %v2893 = vmul.f32 1.0, %v2892
    %2894 = vmatpush.msra.mxu0 0.0
    %2895 = vmatpush.msra.mxu0 0.0
    %2896 = vmatpush.msra.mxu0 0.0
    %2897 = vmatpush.msra.mxu0 0.0
    %2898 = vmatpush.msra.mxu0 0.0
    %2899 = vmatpush.msra.mxu0 0.0
    %2900 = vmatpush.msra.mxu0 0.0
    %2901 = vmatpush.msra.mxu0 0.0
    %2902 = vmatpush.msra.mxu0 %v2039
    %2903 = vmatpush.msra.mxu0 %v2038
    %2904 = vmatpush.msra.mxu0 %v2037
    %2905 = vmatpush.msra.mxu0 %v2036
    %2906 = vmatpush.msra.mxu0 %v2035
    %2907 = vmatpush.msra.mxu0 %v2034
    %2908 = vmatpush.msra.mxu0 %v2033
    %2909 = vmatpush.msra.mxu0 %v2032
    %2910 = vmatmul.f32.gmra.mxu0 %v2812
    %v2911 = vpop.f32.mrf.mxu0
    %v2912 = vadd.f32 %v2122, %v2911
    %2913 = vdwg.mxu0
    %v2914 = vmul.f32 %v2873, %v2912
    %v2915 = vadd.f32 %v2013, %v2914
    %v2916 = vtanh.pop %v2915
    %v2917 = vsub.f32 1.0, %v2893
    %v2918 = vmul.f32 %v2917, %v2916
    %v2919 = vmul.f32 %v2893, %v2810
    %v2920 = vadd.f32 %v2918, %v2919
    %2922 = vrot.lane.b32.xlu0 %v2920, 64
    %v2923 = vpop.permute.xlu0 %2922
    %v2925 = vsel %vm533, %v1439, %v2923
    %v2926 = vld [vmem:[%s9] sm:$0xff]
    %v2927 = vld [vmem:[%s9 + $0x8] sm:$0xff]
    %v2928 = vld [vmem:[%s9 + $0x10] sm:$0xff]
    %v2929 = vld [vmem:[%s9 + $0x18] sm:$0xff]
    %v2930 = vld [vmem:[%s9 + $0x20] sm:$0xff]
    %v2931 = vld [vmem:[%s9 + $0x28] sm:$0xff]
    %v2932 = vld [vmem:[%s9 + $0x30] sm:$0xff]
    %v2933 = vld [vmem:[%s9 + $0x38] sm:$0xff]
    %v2934 = vld [vmem:[%s9 + $0x40] sm:$0xff]
    %v2935 = vld [vmem:[%s9 + $0x48] sm:$0xff]
    %v2936 = vld [vmem:[%s9 + $0x50] sm:$0xff]
    %v2937 = vld [vmem:[%s9 + $0x58] sm:$0xff]
    %v2938 = vld [vmem:[%s9 + $0x60] sm:$0xff]
    %v2939 = vld [vmem:[%s9 + $0x68] sm:$0xff]
    %v2940 = vld [vmem:[%s9 + $0x70] sm:$0xff]
    %v2941 = vld [vmem:[%s9 + $0x78] sm:$0xff]
    %v2942 = vld [vmem:[#allocation8] sm:$0x1]
    %v2944 = vperm.slane %v2942, 0
    %2946 = vmatpush.msra.mxu0 %v2941
    %2947 = vmatpush.msra.mxu0 %v2940
    %2948 = vmatpush.msra.mxu0 %v2939
    %2949 = vmatpush.msra.mxu0 %v2938
    %2950 = vmatpush.msra.mxu0 %v2937
    %2951 = vmatpush.msra.mxu0 %v2936
    %2952 = vmatpush.msra.mxu0 %v2935
    %2953 = vmatpush.msra.mxu0 %v2934
    %2954 = vmatpush.msra.mxu0 %v2933
    %2955 = vmatpush.msra.mxu0 %v2932
    %2956 = vmatpush.msra.mxu0 %v2931
    %2957 = vmatpush.msra.mxu0 %v2930
    %2958 = vmatpush.msra.mxu0 %v2929
    %2959 = vmatpush.msra.mxu0 %v2928
    %2960 = vmatpush.msra.mxu0 %v2927
    %2961 = vmatpush.msra.mxu0 %v2926
    %2962 = vmatmul.f32.gmra.mxu0 %v2925
    %v2963 = vpop.f32.mrf.mxu0
    %v2964 = vadd.f32 %v2944, %v2963
    %2965 = vdwg.mxu0
    %v2966 = vtanh.pop %v2964
    %v2967 = vld [vmem:[%s11] sm:$0xff]
    %v2968 = vld [vmem:[%s11 + $0x8] sm:$0xff]
    %v2969 = vld [vmem:[%s11 + $0x10] sm:$0xff]
    %v2970 = vld [vmem:[%s11 + $0x18] sm:$0xff]
    %v2971 = vld [vmem:[#allocation3] sm:$0x1]
    %v2973 = vperm.slane %v2971, 0
    %v2976 = vsel %vm101, %v2966, 0
    %2978 = vmatpush.msra.mxu0 0.0
    %2979 = vmatpush.msra.mxu0 0.0
    %2980 = vmatpush.msra.mxu0 0.0
    %2981 = vmatpush.msra.mxu0 0.0
    %2982 = vmatpush.msra.mxu0 0.0
    %2983 = vmatpush.msra.mxu0 0.0
    %2984 = vmatpush.msra.mxu0 0.0
    %2985 = vmatpush.msra.mxu0 0.0
    %2986 = vmatpush.msra.mxu0 0.0
    %2987 = vmatpush.msra.mxu0 0.0
    %2988 = vmatpush.msra.mxu0 0.0
    %2989 = vmatpush.msra.mxu0 0.0
    %2990 = vmatpush.msra.mxu0 %v2970
    %2991 = vmatpush.msra.mxu0 %v2969
    %2992 = vmatpush.msra.mxu0 %v2968
    %2993 = vmatpush.msra.mxu0 %v2967
    %2994 = vmatmul.f32.gmra.mxu0 %v2976
    %v2995 = vpop.f32.mrf.mxu0
    %v2996 = vadd.f32 %v2973, %v2995
    %2997 = vdwg.mxu0
    %v2998 = vxor.u32 %v2996, 2147483648
    %v2999 = vmul.f32 %v2998, 1.442695
    %v3000 = vpow.pop %v2999
    %v3001 = vadd.f32 %v3000, 1.0
    %v3002 = vrcp.pop %v3001
    %v3003 = vmul.f32 %v3001, %v3002
    %v3004 = vsub.f32 1.0, %v3003
    %v3005 = vmul.f32 %v3002, %v3004
    %v3006 = vadd.f32 %v3002, %v3005
    %vm3007 = vweird.f32 %v3001
    %vm3008 = vweird.f32 %v3002
    %vm3009 = vmor %vm3007, %vm3008
    %v3010 = vsel %vm3009, %v3002, %v3006
    %v3011 = vand.u32 2147483647, %v3001
    %vm3012 = vcmp.eq.f32.partialorder %v3011, 8.507059e+37
    %v3013 = vand.u32 %v3001, 2147483648
    %v3014 = vor.u32 1.1754944e-38, %v3013
    %v3015 = vsel %vm3012, %v3014, %v3010
    %v3016 = vmul.f32 1.0, %v3015
    %vm3017 = vcmask 1024
    %3018 = vst.msk [vmem:[%s13] sm:$0x3] %vm3017, %v3016
    // Predicated region
    $region66: #{tpu_custom_call.1} parent=1 // pred_check
      _
    $region67: #{tpu_custom_call.1} parent=1 // pred_check_branch
      %3020 = sbr.rel (0) target = $region69
    $region68: #{tpu_custom_call.1} parent=1 // pred_region
      _
    $region69: #{tpu_custom_call.1} parent=1 // pred_fallthru
      _
    // Predicated region
    $region70: #{tpu_custom_call.1} parent=1 // pred_check
      _
    $region71: #{tpu_custom_call.1} parent=1 // pred_check_branch
      %3022 = sbr.rel (0) target = $region73
    $region72: #{tpu_custom_call.1} parent=1 // pred_region
      _
    $region73: #{tpu_custom_call.1} parent=1 // pred_fallthru
      _
    %3023 = vsyncpa [#allocation5], 1
    %3024 = vsyncpa [#allocation7], 1

</llo_original>
